<compile_context>
chip_gen: v7x
topology: tpu7x:2x2x1
jax: 0.10.0
libtpu: 0.0.40
codegen_flags: <defaults>
</compile_context>

<pallas_src>
import functools

import jax
import jax.numpy as jnp
from jax import lax
from jax.experimental import pallas as pl
from jax.experimental.pallas import tpu as pltpu

NEG_INF = -1e30  # finite "-inf" for masking (avoids inf-inf NaN paths)


def _mhsa_kernel(x_q_ref, x_kv_ref,
                 wq_ref, wk_ref, wv_ref,
                 bq_ref, bk_ref, bv_ref,
                 wp_ref, bp_ref,
                 o_ref,
                 q_scr, m_scr, l_scr, acc_scr,
                 *, n_heads, head_dim, block_q, block_k, scale):
    qi = pl.program_id(1)
    ki = pl.program_id(2)
    nk = pl.num_programs(2)
    dt = x_q_ref.dtype            # MXU compute dtype (bf16 or f32), f32 accum
    H, hd = n_heads, head_dim

    # ---- init (once per (batch, q-tile)): project q for all heads ----------
    @pl.when(ki == 0)
    def _init():
        q = jnp.dot(x_q_ref[...], wq_ref[...],
                    preferred_element_type=jnp.float32)
        q = q + bq_ref[...].astype(jnp.float32)
        q_scr[...] = q * scale                     # scale folded into q once
        m_scr[...] = jnp.full(m_scr.shape, NEG_INF, jnp.float32)
        l_scr[...] = jnp.zeros(l_scr.shape, jnp.float32)
        acc_scr[...] = jnp.zeros(acc_scr.shape, jnp.float32)

    # ---- online-softmax update; skip fully-masked (kv > q) blocks ----------
    @pl.when(ki <= qi)
    def _update():
        x_kv = x_kv_ref[...]
        k = jnp.dot(x_kv, wk_ref[...], preferred_element_type=jnp.float32)
        k = k + bk_ref[...].astype(jnp.float32)
        v = jnp.dot(x_kv, wv_ref[...], preferred_element_type=jnp.float32)
        v = v + bv_ref[...].astype(jnp.float32)

        q_pos = qi * block_q + lax.broadcasted_iota(
            jnp.int32, (block_q, block_k), 0)
        k_pos = ki * block_k + lax.broadcasted_iota(
            jnp.int32, (block_q, block_k), 1)
        causal = k_pos <= q_pos

        for h in range(H):                         # static, unrolled
            sl = slice(h * hd, (h + 1) * hd)
            q_h = q_scr[:, sl]                     # (tq, hd) f32, pre-scaled
            # q @ k^T via dot_general on the last dims (no explicit transpose)
            s = lax.dot_general(q_h.astype(dt), k[:, sl].astype(dt),
                                (((1,), (1,)), ((), ())),
                                preferred_element_type=jnp.float32)
            s = jnp.where(causal, s, NEG_INF)      # (tq, tk)

            m_prev = m_scr[h]                      # (tq, 1)
            m_new = jnp.maximum(m_prev, jnp.max(s, axis=-1, keepdims=True))
            alpha = jnp.exp(m_prev - m_new)
            p = jnp.exp(s - m_new)

            l_scr[h] = alpha * l_scr[h] + jnp.sum(p, axis=-1, keepdims=True)
            m_scr[h] = m_new
            acc_scr[:, sl] = alpha * acc_scr[:, sl] + jnp.dot(
                p.astype(dt), v[:, sl].astype(dt),
                preferred_element_type=jnp.float32)

    # ---- epilogue: normalise per head, fused output projection -------------
    @pl.when(ki == nk - 1)
    def _finalize():
        for h in range(H):
            sl = slice(h * hd, (h + 1) * hd)
            acc_scr[:, sl] = acc_scr[:, sl] * pl.reciprocal(
                l_scr[h], approx=True)             # EUP reciprocal, no divide
        y = acc_scr[...]                           # (tq, C) f32, heads concat
        out = jnp.dot(y.astype(dt), wp_ref[...],
                      preferred_element_type=jnp.float32)
        out = out + bp_ref[...].astype(jnp.float32)
        o_ref[...] = out.astype(o_ref.dtype)       # lane-dense (tq, C) store


@functools.partial(jax.jit, static_argnames=("n_heads", "block_q", "block_k"))
def mhsa_forward(x, w_qkv, b_qkv, w_p, b_p, *, n_heads,
                 block_q=128, block_k=128):
    """x: (B,T,C); w_qkv: (H,hd,3hd); b_qkv: (H,1,3hd); w_p: (C,C); b_p: (1,C)."""
    B, T, C = x.shape
    assert C % n_heads == 0
    hd = C // n_heads
    block_q = min(block_q, T)
    block_k = min(block_k, T)
    assert block_q == block_k, "causal block-skip assumes square tiles"
    assert T % block_q == 0, "demo requires T divisible by the tile size"

    # Per-head Linear(hd, 3*hd) -> block-diagonal (C, C) Wq/Wk/Wv and (1, C)
    # biases.  Weight prep is O(C^2) (negligible vs. activations) and would be
    # cached in a real model.
    def bdiag(w_h):                       # (H, hd, hd) -> (C, C) block diag
        full = jnp.zeros((C, C), w_h.dtype)
        for h in range(n_heads):
            full = full.at[h * hd:(h + 1) * hd, h * hd:(h + 1) * hd].set(w_h[h])
        return full

    w_q = bdiag(w_qkv[:, :, 0 * hd:1 * hd])
    w_k = bdiag(w_qkv[:, :, 1 * hd:2 * hd])
    w_v = bdiag(w_qkv[:, :, 2 * hd:3 * hd])
    b_q = b_qkv[:, 0, 0 * hd:1 * hd].reshape(1, C)
    b_k = b_qkv[:, 0, 1 * hd:2 * hd].reshape(1, C)
    b_v = b_qkv[:, 0, 2 * hd:3 * hd].reshape(1, C)

    scale = 1.0 / (hd ** 0.5 + 1e-5)      # matches torch: / (sqrt(hd) + 1e-5)
    nq, nk = T // block_q, T // block_k

    kernel = functools.partial(
        _mhsa_kernel, n_heads=n_heads, head_dim=hd,
        block_q=block_q, block_k=block_k, scale=scale)

    itemsize = x.dtype.itemsize
    cost = pl.CostEstimate(
        flops=int(2 * B * T * C * C * (2 + 2 * nq) + 4 * B * T * T * C),
        transcendentals=int(B * n_heads * T * T),
        bytes_accessed=int((B * T * C * (2 + nq) + 4 * C * C + 4 * C)
                           * itemsize))

    return pl.pallas_call(
        kernel,
        out_shape=jax.ShapeDtypeStruct((B, T, C), x.dtype),
        grid_spec=pltpu.PrefetchScalarGridSpec(
            num_scalar_prefetch=0,
            grid=(B, nq, nk),
            in_specs=[
                pl.BlockSpec((None, block_q, C), lambda b, q, k: (b, q, 0)),  # x (q rows)
                pl.BlockSpec((None, block_k, C), lambda b, q, k: (b, k, 0)),  # x (kv rows)
                pl.BlockSpec((C, C), lambda b, q, k: (0, 0)),                 # Wq
                pl.BlockSpec((C, C), lambda b, q, k: (0, 0)),                 # Wk
                pl.BlockSpec((C, C), lambda b, q, k: (0, 0)),                 # Wv
                pl.BlockSpec((1, C), lambda b, q, k: (0, 0)),                 # bq
                pl.BlockSpec((1, C), lambda b, q, k: (0, 0)),                 # bk
                pl.BlockSpec((1, C), lambda b, q, k: (0, 0)),                 # bv
                pl.BlockSpec((C, C), lambda b, q, k: (0, 0)),                 # Wp
                pl.BlockSpec((1, C), lambda b, q, k: (0, 0)),                 # bp
            ],
            out_specs=pl.BlockSpec((None, block_q, C),
                                   lambda b, q, k: (b, q, 0)),
            scratch_shapes=[
                pltpu.VMEM((block_q, C), jnp.float32),           # scaled q
                pltpu.VMEM((n_heads, block_q, 1), jnp.float32),  # running max
                pltpu.VMEM((n_heads, block_q, 1), jnp.float32),  # running sum
                pltpu.VMEM((block_q, C), jnp.float32),           # accumulator
            ]),
        compiler_params=pltpu.CompilerParams(
            dimension_semantics=("parallel", "parallel", "arbitrary"),
            vmem_limit_bytes=32 * 1024 * 1024),
        cost_estimate=cost,
    )(x, x, w_q, w_k, w_v, b_q, b_k, b_v, w_p, b_p)


# ----------------------------------------------------------------------------
# Pure-JAX reference (mirrors the PyTorch forward exactly, eval mode)
# ----------------------------------------------------------------------------
def mhsa_reference(x, w_qkv, b_qkv, w_p, b_p, n_heads):
    B, T, C = x.shape
    hd = C // n_heads
    outs = []
    for h in range(n_heads):
        xh = x[:, :, h * hd:(h + 1) * hd]
        qkv = jnp.einsum("btd,de->bte", xh, w_qkv[h]) + b_qkv[h, 0]
        q, k, v = qkv[..., :hd], qkv[..., hd:2 * hd], qkv[..., 2 * hd:]
        attn = jnp.einsum("btd,bsd->bts", q, k) / (hd ** 0.5 + 1e-5)
        mask = jnp.tril(jnp.ones((T, T))) == 0
        attn = jnp.where(mask, -jnp.inf, attn)
        attn = jax.nn.softmax(attn, axis=-1)
        outs.append(jnp.einsum("bts,bsd->btd", attn, v))
    y = jnp.concatenate(outs, axis=-1)
    return jnp.einsum("btc,cd->btd", y, w_p) + b_p[0]


if __name__ == "__main__":
    # Small but lane-friendly config: head_dim = 128 keeps per-head slices
    # aligned to the 128-lane vreg width; 2 q-tiles x 2 kv-tiles exercises
    # both the causal block skip and the online-softmax accumulation.
    B, T, C, H = 2, 256, 256, 2
    hd = C // H

    key = jax.random.PRNGKey(0)
    kx, kwq, kbq, kwp, kbp = jax.random.split(key, 5)

    x = jax.random.normal(kx, (B, T, C), dtype=jnp.float32)

    lim_qkv = 1.0 / (hd ** 0.5)
    w_qkv = jax.random.uniform(kwq, (H, hd, 3 * hd), jnp.float32,
                               minval=-lim_qkv, maxval=lim_qkv)
    b_qkv = jax.random.uniform(kbq, (H, 1, 3 * hd), jnp.float32,
                               minval=-lim_qkv, maxval=lim_qkv)

    lim_p = 1.0 / (C ** 0.5)
    w_p = jax.random.uniform(kwp, (C, C), jnp.float32,
                             minval=-lim_p, maxval=lim_p)
    b_p = jax.random.uniform(kbp, (1, C), jnp.float32,
                             minval=-lim_p, maxval=lim_p)

    ref = mhsa_reference(x, w_qkv, b_qkv, w_p, b_p, H)

    # f32 path (tolerance covers the approx-EUP reciprocal in the softmax
    # normalisation and MXU default matmul precision).
    out = jax.block_until_ready(mhsa_forward(x, w_qkv, b_qkv, w_p, b_p,
                                             n_heads=H))
    assert out.shape == (B, T, C)
    assert jnp.allclose(out, ref, atol=1e-2, rtol=1e-2), (
        "f32 mismatch: max|err|=%f" % float(jnp.max(jnp.abs(out - ref))))

    # bf16 path: matmuls run on the MXU in bf16 with f32 accumulation.
    bf = lambda a: a.astype(jnp.bfloat16)
    out_bf = jax.block_until_ready(
        mhsa_forward(bf(x), bf(w_qkv), bf(b_qkv), bf(w_p), bf(b_p), n_heads=H))
    err_bf = jnp.abs(out_bf.astype(jnp.float32) - ref)
    assert jnp.allclose(out_bf.astype(jnp.float32), ref, atol=1e-1, rtol=1e-1), (
        "bf16 mismatch: max|err|=%f" % float(jnp.max(err_bf)))

    print("KERNEL_OK")
</pallas_src>

<mosaic_0001>
module attributes {stable_mosaic.version = 11 : i64} {
  func.func @_mhsa_kernel(%arg0: i32, %arg1: i32, %arg2: i32, %arg3: memref<1x128x256xf32, #tpu.memory_space<vmem>>, %arg4: memref<1x128x256xf32, #tpu.memory_space<vmem>>, %arg5: memref<256x256xf32, #tpu.memory_space<vmem>>, %arg6: memref<256x256xf32, #tpu.memory_space<vmem>>, %arg7: memref<256x256xf32, #tpu.memory_space<vmem>>, %arg8: memref<1x256xf32, #tpu.memory_space<vmem>>, %arg9: memref<1x256xf32, #tpu.memory_space<vmem>>, %arg10: memref<1x256xf32, #tpu.memory_space<vmem>>, %arg11: memref<256x256xf32, #tpu.memory_space<vmem>>, %arg12: memref<1x256xf32, #tpu.memory_space<vmem>>, %arg13: memref<1x128x256xf32, #tpu.memory_space<vmem>>, %arg14: memref<128x256xf32, #tpu.memory_space<vmem>>, %arg15: memref<2x128x1xf32, #tpu.memory_space<vmem>>, %arg16: memref<2x128x1xf32, #tpu.memory_space<vmem>>, %arg17: memref<128x256xf32, #tpu.memory_space<vmem>>) attributes {dimension_semantics = [#tpu.dimension_semantics<parallel>, #tpu.dimension_semantics<parallel>, #tpu.dimension_semantics<arbitrary>], iteration_bounds = array<i64: 2, 2, 2>, scalar_prefetch = 0 : i64, scratch_operands = 4 : i64, tpu.core_type = #tpu.core_type<tc>, window_params = [{transform_indices = @transform_0, window_bounds = array<i64: 1, 128, 256>}, {transform_indices = @transform_1, window_bounds = array<i64: 1, 128, 256>}, {pipeline_mode = #tpu.pipeline_mode<synchronous>, transform_indices = @transform_2, window_bounds = array<i64: 256, 256>}, {pipeline_mode = #tpu.pipeline_mode<synchronous>, transform_indices = @transform_3, window_bounds = array<i64: 256, 256>}, {pipeline_mode = #tpu.pipeline_mode<synchronous>, transform_indices = @transform_4, window_bounds = array<i64: 256, 256>}, {pipeline_mode = #tpu.pipeline_mode<synchronous>, transform_indices = @transform_5, window_bounds = array<i64: 1, 256>}, {pipeline_mode = #tpu.pipeline_mode<synchronous>, transform_indices = @transform_6, window_bounds = array<i64: 1, 256>}, {pipeline_mode = #tpu.pipeline_mode<synchronous>, transform_indices = @transform_7, window_bounds = array<i64: 1, 256>}, {pipeline_mode = #tpu.pipeline_mode<synchronous>, transform_indices = @transform_8, window_bounds = array<i64: 256, 256>}, {pipeline_mode = #tpu.pipeline_mode<synchronous>, transform_indices = @transform_9, window_bounds = array<i64: 1, 256>}, {transform_indices = @transform_10, window_bounds = array<i64: 1, 128, 256>}]} {
    %c0_i32 = arith.constant 0 : i32
    %0 = arith.cmpi eq, %arg2, %c0_i32 : i32
    %1 = arith.extui %0 : i1 to i32
    %c0_i32_0 = arith.constant 0 : i32
    %2 = arith.cmpi ne, %1, %c0_i32_0 : i32
    scf.if %2 {
      %c0 = arith.constant 0 : index
      %c0_3 = arith.constant 0 : index
      %c0_4 = arith.constant 0 : index
      %9 = vector.load %arg3[%c0, %c0_3, %c0_4] : memref<1x128x256xf32, #tpu.memory_space<vmem>>, vector<1x128x256xf32>
      %10 = vector.shape_cast %9 : vector<1x128x256xf32> to vector<128x256xf32>
      %c0_5 = arith.constant 0 : index
      %c0_6 = arith.constant 0 : index
      %11 = vector.load %arg5[%c0_5, %c0_6] : memref<256x256xf32, #tpu.memory_space<vmem>>, vector<256x256xf32>
      %cst = arith.constant dense<0.000000e+00> : vector<128x256xf32>
      %12 = tpu.matmul %10, %11, %cst {dimension_numbers = #tpu.dot_dimension_numbers<[1], [0], [0], [1], [0, 0, 1, 1], [], []>} : vector<128x256xf32>, vector<256x256xf32>, vector<128x256xf32> -> vector<128x256xf32>
      %c0_7 = arith.constant 0 : index
      %c0_8 = arith.constant 0 : index
      %13 = vector.load %arg8[%c0_7, %c0_8] : memref<1x256xf32, #tpu.memory_space<vmem>>, vector<1x256xf32>
      %14 = vector.broadcast %13 : vector<1x256xf32> to vector<128x256xf32>
      %15 = arith.addf %12, %14 : vector<128x256xf32>
      %cst_9 = arith.constant 0.0883882716 : f32
      %16 = vector.broadcast %cst_9 : f32 to vector<128x256xf32>
      %17 = arith.mulf %15, %16 : vector<128x256xf32>
      %c0_10 = arith.constant 0 : index
      %c0_11 = arith.constant 0 : index
      %18 = vector.load %arg14[%c0_10, %c0_11] : memref<128x256xf32, #tpu.memory_space<vmem>>, vector<128x256xf32>
      tpu.vector_store %arg14[%c0_10, %c0_11], %17 {strides = array<i32>} : memref<128x256xf32, #tpu.memory_space<vmem>>, vector<128x256xf32>,
      %cst_12 = arith.constant -1.000000e+30 : f32
      %19 = vector.broadcast %cst_12 : f32 to vector<2x128x1xf32>
      %c0_13 = arith.constant 0 : index
      %c0_14 = arith.constant 0 : index
      %c0_15 = arith.constant 0 : index
      %20 = vector.load %arg15[%c0_13, %c0_14, %c0_15] : memref<2x128x1xf32, #tpu.memory_space<vmem>>, vector<2x128x1xf32>
      tpu.vector_store %arg15[%c0_13, %c0_14, %c0_15], %19 {strides = array<i32>} : memref<2x128x1xf32, #tpu.memory_space<vmem>>, vector<2x128x1xf32>,
      %cst_16 = arith.constant 0.000000e+00 : f32
      %21 = vector.broadcast %cst_16 : f32 to vector<2x128x1xf32>
      %c0_17 = arith.constant 0 : index
      %c0_18 = arith.constant 0 : index
      %c0_19 = arith.constant 0 : index
      %22 = vector.load %arg16[%c0_17, %c0_18, %c0_19] : memref<2x128x1xf32, #tpu.memory_space<vmem>>, vector<2x128x1xf32>
      tpu.vector_store %arg16[%c0_17, %c0_18, %c0_19], %21 {strides = array<i32>} : memref<2x128x1xf32, #tpu.memory_space<vmem>>, vector<2x128x1xf32>,
      %cst_20 = arith.constant 0.000000e+00 : f32
      %23 = vector.broadcast %cst_20 : f32 to vector<128x256xf32>
      %c0_21 = arith.constant 0 : index
      %c0_22 = arith.constant 0 : index
      %24 = vector.load %arg17[%c0_21, %c0_22] : memref<128x256xf32, #tpu.memory_space<vmem>>, vector<128x256xf32>
      tpu.vector_store %arg17[%c0_21, %c0_22], %23 {strides = array<i32>} : memref<128x256xf32, #tpu.memory_space<vmem>>, vector<128x256xf32>,
    } else {
    }
    %3 = arith.cmpi sle, %arg2, %arg1 : i32
    %4 = arith.extui %3 : i1 to i32
    %c0_i32_1 = arith.constant 0 : i32
    %5 = arith.cmpi ne, %4, %c0_i32_1 : i32
    scf.if %5 {
      %c0 = arith.constant 0 : index
      %c0_3 = arith.constant 0 : index
      %c0_4 = arith.constant 0 : index
      %9 = vector.load %arg4[%c0, %c0_3, %c0_4] : memref<1x128x256xf32, #tpu.memory_space<vmem>>, vector<1x128x256xf32>
      %10 = vector.shape_cast %9 : vector<1x128x256xf32> to vector<128x256xf32>
      %c0_5 = arith.constant 0 : index
      %c0_6 = arith.constant 0 : index
      %11 = vector.load %arg6[%c0_5, %c0_6] : memref<256x256xf32, #tpu.memory_space<vmem>>, vector<256x256xf32>
      %cst = arith.constant dense<0.000000e+00> : vector<128x256xf32>
      %12 = tpu.matmul %10, %11, %cst {dimension_numbers = #tpu.dot_dimension_numbers<[1], [0], [0], [1], [0, 0, 1, 1], [], []>} : vector<128x256xf32>, vector<256x256xf32>, vector<128x256xf32> -> vector<128x256xf32>
      %c0_7 = arith.constant 0 : index
      %c0_8 = arith.constant 0 : index
      %13 = vector.load %arg9[%c0_7, %c0_8] : memref<1x256xf32, #tpu.memory_space<vmem>>, vector<1x256xf32>
      %14 = vector.broadcast %13 : vector<1x256xf32> to vector<128x256xf32>
      %15 = arith.addf %12, %14 : vector<128x256xf32>
      %c0_9 = arith.constant 0 : index
      %c0_10 = arith.constant 0 : index
      %16 = vector.load %arg7[%c0_9, %c0_10] : memref<256x256xf32, #tpu.memory_space<vmem>>, vector<256x256xf32>
      %cst_11 = arith.constant dense<0.000000e+00> : vector<128x256xf32>
      %17 = tpu.matmul %10, %16, %cst_11 {dimension_numbers = #tpu.dot_dimension_numbers<[1], [0], [0], [1], [0, 0, 1, 1], [], []>} : vector<128x256xf32>, vector<256x256xf32>, vector<128x256xf32> -> vector<128x256xf32>
      %c0_12 = arith.constant 0 : index
      %c0_13 = arith.constant 0 : index
      %18 = vector.load %arg10[%c0_12, %c0_13] : memref<1x256xf32, #tpu.memory_space<vmem>>, vector<1x256xf32>
      %19 = vector.broadcast %18 : vector<1x256xf32> to vector<128x256xf32>
      %20 = arith.addf %17, %19 : vector<128x256xf32>
      %c128_i32 = arith.constant 128 : i32
      %21 = arith.muli %arg1, %c128_i32 : i32
      %22 = tpu.iota {dimensions = array<i32: 0>} : vector<128x128xi32>
      %23 = vector.broadcast %21 : i32 to vector<128x128xi32>
      %24 = arith.addi %23, %22 : vector<128x128xi32>
      %c128_i32_14 = arith.constant 128 : i32
      %25 = arith.muli %arg2, %c128_i32_14 : i32
      %26 = tpu.iota {dimensions = array<i32: 1>} : vector<128x128xi32>
      %27 = vector.broadcast %25 : i32 to vector<128x128xi32>
      %28 = arith.addi %27, %26 : vector<128x128xi32>
      %29 = arith.cmpi sle, %28, %24 : vector<128x128xi32>
      %c0_15 = arith.constant 0 : index
      %c0_16 = arith.constant 0 : index
      %30 = vector.load %arg14[%c0_15, %c0_16] : memref<128x256xf32, #tpu.memory_space<vmem>>, vector<128x128xf32>
      %31 = vector.extract_strided_slice %15 {offsets = [0, 0], sizes = [128, 128], strides = [1, 1]} : vector<128x256xf32> to vector<128x128xf32>
      %cst_17 = arith.constant dense<0.000000e+00> : vector<128x128xf32>
      %32 = tpu.matmul %30, %31, %cst_17 {dimension_numbers = #tpu.dot_dimension_numbers<[1], [1], [0], [0], [0, 0, 1, 0], [], []>} : vector<128x128xf32>, vector<128x128xf32>, vector<128x128xf32> -> vector<128x128xf32>
      %cst_18 = arith.constant -1.000000e+30 : f32
      %33 = vector.broadcast %cst_18 : f32 to vector<128x128xf32>
      %34 = arith.select %29, %32, %33 : vector<128x128xi1>, vector<128x128xf32>
      %c0_19 = arith.constant 0 : index
      %c0_20 = arith.constant 0 : index
      %c0_21 = arith.constant 0 : index
      %35 = vector.load %arg15[%c0_19, %c0_20, %c0_21] : memref<2x128x1xf32, #tpu.memory_space<vmem>>, vector<1x128x1xf32>
      %36 = vector.shape_cast %35 : vector<1x128x1xf32> to vector<128x1xf32>
      %cst_22 = arith.constant dense<0xFF800000> : vector<128xf32>
      %37 = vector.multi_reduction <maximumf>, %34, %cst_22 [1] : vector<128x128xf32> to vector<128xf32>
      %38 = vector.shape_cast %37 : vector<128xf32> to vector<128x1xf32>
      %39 = arith.maximumf %36, %38 : vector<128x1xf32>
      %40 = arith.subf %36, %39 : vector<128x1xf32>
      %41 = math.exp %40 : vector<128x1xf32>
      %42 = vector.broadcast %39 : vector<128x1xf32> to vector<128x128xf32>
      %43 = arith.subf %34, %42 : vector<128x128xf32>
      %44 = math.exp %43 : vector<128x128xf32>
      %c0_23 = arith.constant 0 : index
      %c0_24 = arith.constant 0 : index
      %c0_25 = arith.constant 0 : index
      %45 = vector.load %arg16[%c0_23, %c0_24, %c0_25] : memref<2x128x1xf32, #tpu.memory_space<vmem>>, vector<1x128x1xf32>
      %46 = vector.shape_cast %45 : vector<1x128x1xf32> to vector<128x1xf32>
      %47 = arith.mulf %41, %46 : vector<128x1xf32>
      %cst_26 = arith.constant dense<0.000000e+00> : vector<128xf32>
      %48 = vector.multi_reduction <add>, %44, %cst_26 [1] : vector<128x128xf32> to vector<128xf32>
      %49 = vector.shape_cast %48 : vector<128xf32> to vector<128x1xf32>
      %50 = arith.addf %47, %49 : vector<128x1xf32>
      %c0_27 = arith.constant 0 : index
      %c0_28 = arith.constant 0 : index
      %c0_29 = arith.constant 0 : index
      %51 = vector.load %arg16[%c0_27, %c0_28, %c0_29] : memref<2x128x1xf32, #tpu.memory_space<vmem>>, vector<1x128x1xf32>
      %52 = vector.shape_cast %51 : vector<1x128x1xf32> to vector<128x1xf32>
      %53 = vector.shape_cast %50 : vector<128x1xf32> to vector<1x128x1xf32>
      tpu.vector_store %arg16[%c0_27, %c0_28, %c0_29], %53 {strides = array<i32>} : memref<2x128x1xf32, #tpu.memory_space<vmem>>, vector<1x128x1xf32>,
      %c0_30 = arith.constant 0 : index
      %c0_31 = arith.constant 0 : index
      %c0_32 = arith.constant 0 : index
      %54 = vector.load %arg15[%c0_30, %c0_31, %c0_32] : memref<2x128x1xf32, #tpu.memory_space<vmem>>, vector<1x128x1xf32>
      %55 = vector.shape_cast %54 : vector<1x128x1xf32> to vector<128x1xf32>
      %56 = vector.shape_cast %39 : vector<128x1xf32> to vector<1x128x1xf32>
      tpu.vector_store %arg15[%c0_30, %c0_31, %c0_32], %56 {strides = array<i32>} : memref<2x128x1xf32, #tpu.memory_space<vmem>>, vector<1x128x1xf32>,
      %c0_33 = arith.constant 0 : index
      %c0_34 = arith.constant 0 : index
      %57 = vector.load %arg17[%c0_33, %c0_34] : memref<128x256xf32, #tpu.memory_space<vmem>>, vector<128x128xf32>
      %58 = vector.broadcast %41 : vector<128x1xf32> to vector<128x128xf32>
      %59 = arith.mulf %58, %57 : vector<128x128xf32>
      %60 = vector.extract_strided_slice %20 {offsets = [0, 0], sizes = [128, 128], strides = [1, 1]} : vector<128x256xf32> to vector<128x128xf32>
      %cst_35 = arith.constant dense<0.000000e+00> : vector<128x128xf32>
      %61 = tpu.matmul %44, %60, %cst_35 {dimension_numbers = #tpu.dot_dimension_numbers<[1], [0], [0], [1], [0, 0, 1, 1], [], []>} : vector<128x128xf32>, vector<128x128xf32>, vector<128x128xf32> -> vector<128x128xf32>
      %62 = arith.addf %59, %61 : vector<128x128xf32>
      %c0_36 = arith.constant 0 : index
      %c0_37 = arith.constant 0 : index
      %63 = vector.load %arg17[%c0_36, %c0_37] : memref<128x256xf32, #tpu.memory_space<vmem>>, vector<128x128xf32>
      tpu.vector_store %arg17[%c0_36, %c0_37], %62 {strides = array<i32>} : memref<128x256xf32, #tpu.memory_space<vmem>>, vector<128x128xf32>,
      %c0_38 = arith.constant 0 : index
      %c128 = arith.constant 128 : index
      %64 = vector.load %arg14[%c0_38, %c128] : memref<128x256xf32, #tpu.memory_space<vmem>>, vector<128x128xf32>
      %65 = vector.extract_strided_slice %15 {offsets = [0, 128], sizes = [128, 128], strides = [1, 1]} : vector<128x256xf32> to vector<128x128xf32>
      %cst_39 = arith.constant dense<0.000000e+00> : vector<128x128xf32>
      %66 = tpu.matmul %64, %65, %cst_39 {dimension_numbers = #tpu.dot_dimension_numbers<[1], [1], [0], [0], [0, 0, 1, 0], [], []>} : vector<128x128xf32>, vector<128x128xf32>, vector<128x128xf32> -> vector<128x128xf32>
      %cst_40 = arith.constant -1.000000e+30 : f32
      %67 = vector.broadcast %cst_40 : f32 to vector<128x128xf32>
      %68 = arith.select %29, %66, %67 : vector<128x128xi1>, vector<128x128xf32>
      %c1 = arith.constant 1 : index
      %c0_41 = arith.constant 0 : index
      %c0_42 = arith.constant 0 : index
      %69 = vector.load %arg15[%c1, %c0_41, %c0_42] : memref<2x128x1xf32, #tpu.memory_space<vmem>>, vector<1x128x1xf32>
      %70 = vector.shape_cast %69 : vector<1x128x1xf32> to vector<128x1xf32>
      %cst_43 = arith.constant dense<0xFF800000> : vector<128xf32>
      %71 = vector.multi_reduction <maximumf>, %68, %cst_43 [1] : vector<128x128xf32> to vector<128xf32>
      %72 = vector.shape_cast %71 : vector<128xf32> to vector<128x1xf32>
      %73 = arith.maximumf %70, %72 : vector<128x1xf32>
      %74 = arith.subf %70, %73 : vector<128x1xf32>
      %75 = math.exp %74 : vector<128x1xf32>
      %76 = vector.broadcast %73 : vector<128x1xf32> to vector<128x128xf32>
      %77 = arith.subf %68, %76 : vector<128x128xf32>
      %78 = math.exp %77 : vector<128x128xf32>
      %c1_44 = arith.constant 1 : index
      %c0_45 = arith.constant 0 : index
      %c0_46 = arith.constant 0 : index
      %79 = vector.load %arg16[%c1_44, %c0_45, %c0_46] : memref<2x128x1xf32, #tpu.memory_space<vmem>>, vector<1x128x1xf32>
      %80 = vector.shape_cast %79 : vector<1x128x1xf32> to vector<128x1xf32>
      %81 = arith.mulf %75, %80 : vector<128x1xf32>
      %cst_47 = arith.constant dense<0.000000e+00> : vector<128xf32>
      %82 = vector.multi_reduction <add>, %78, %cst_47 [1] : vector<128x128xf32> to vector<128xf32>
      %83 = vector.shape_cast %82 : vector<128xf32> to vector<128x1xf32>
      %84 = arith.addf %81, %83 : vector<128x1xf32>
      %c1_48 = arith.constant 1 : index
      %c0_49 = arith.constant 0 : index
      %c0_50 = arith.constant 0 : index
      %85 = vector.load %arg16[%c1_48, %c0_49, %c0_50] : memref<2x128x1xf32, #tpu.memory_space<vmem>>, vector<1x128x1xf32>
      %86 = vector.shape_cast %85 : vector<1x128x1xf32> to vector<128x1xf32>
      %87 = vector.shape_cast %84 : vector<128x1xf32> to vector<1x128x1xf32>
      tpu.vector_store %arg16[%c1_48, %c0_49, %c0_50], %87 {strides = array<i32>} : memref<2x128x1xf32, #tpu.memory_space<vmem>>, vector<1x128x1xf32>,
      %c1_51 = arith.constant 1 : index
      %c0_52 = arith.constant 0 : index
      %c0_53 = arith.constant 0 : index
      %88 = vector.load %arg15[%c1_51, %c0_52, %c0_53] : memref<2x128x1xf32, #tpu.memory_space<vmem>>, vector<1x128x1xf32>
      %89 = vector.shape_cast %88 : vector<1x128x1xf32> to vector<128x1xf32>
      %90 = vector.shape_cast %73 : vector<128x1xf32> to vector<1x128x1xf32>
      tpu.vector_store %arg15[%c1_51, %c0_52, %c0_53], %90 {strides = array<i32>} : memref<2x128x1xf32, #tpu.memory_space<vmem>>, vector<1x128x1xf32>,
      %c0_54 = arith.constant 0 : index
      %c128_55 = arith.constant 128 : index
      %91 = vector.load %arg17[%c0_54, %c128_55] : memref<128x256xf32, #tpu.memory_space<vmem>>, vector<128x128xf32>
      %92 = vector.broadcast %75 : vector<128x1xf32> to vector<128x128xf32>
      %93 = arith.mulf %92, %91 : vector<128x128xf32>
      %94 = vector.extract_strided_slice %20 {offsets = [0, 128], sizes = [128, 128], strides = [1, 1]} : vector<128x256xf32> to vector<128x128xf32>
      %cst_56 = arith.constant dense<0.000000e+00> : vector<128x128xf32>
      %95 = tpu.matmul %78, %94, %cst_56 {dimension_numbers = #tpu.dot_dimension_numbers<[1], [0], [0], [1], [0, 0, 1, 1], [], []>} : vector<128x128xf32>, vector<128x128xf32>, vector<128x128xf32> -> vector<128x128xf32>
      %96 = arith.addf %93, %95 : vector<128x128xf32>
      %c0_57 = arith.constant 0 : index
      %c128_58 = arith.constant 128 : index
      %97 = vector.load %arg17[%c0_57, %c128_58] : memref<128x256xf32, #tpu.memory_space<vmem>>, vector<128x128xf32>
      tpu.vector_store %arg17[%c0_57, %c128_58], %96 {strides = array<i32>} : memref<128x256xf32, #tpu.memory_space<vmem>>, vector<128x128xf32>,
    } else {
    }
    %c1_i32 = arith.constant 1 : i32
    %6 = arith.cmpi eq, %arg2, %c1_i32 : i32
    %7 = arith.extui %6 : i1 to i32
    %c0_i32_2 = arith.constant 0 : i32
    %8 = arith.cmpi ne, %7, %c0_i32_2 : i32
    scf.if %8 {
      %c0 = arith.constant 0 : index
      %c0_3 = arith.constant 0 : index
      %9 = vector.load %arg17[%c0, %c0_3] : memref<128x256xf32, #tpu.memory_space<vmem>>, vector<128x128xf32>
      %c0_4 = arith.constant 0 : index
      %c0_5 = arith.constant 0 : index
      %c0_6 = arith.constant 0 : index
      %10 = vector.load %arg16[%c0_4, %c0_5, %c0_6] : memref<2x128x1xf32, #tpu.memory_space<vmem>>, vector<1x128x1xf32>
      %11 = vector.shape_cast %10 : vector<1x128x1xf32> to vector<128x1xf32>
      %12 = tpu.reciprocal %11 {approx = true} : vector<128x1xf32> -> vector<128x1xf32>
      %13 = vector.broadcast %12 : vector<128x1xf32> to vector<128x128xf32>
      %14 = arith.mulf %9, %13 : vector<128x128xf32>
      %c0_7 = arith.constant 0 : index
      %c0_8 = arith.constant 0 : index
      %15 = vector.load %arg17[%c0_7, %c0_8] : memref<128x256xf32, #tpu.memory_space<vmem>>, vector<128x128xf32>
      tpu.vector_store %arg17[%c0_7, %c0_8], %14 {strides = array<i32>} : memref<128x256xf32, #tpu.memory_space<vmem>>, vector<128x128xf32>,
      %c0_9 = arith.constant 0 : index
      %c128 = arith.constant 128 : index
      %16 = vector.load %arg17[%c0_9, %c128] : memref<128x256xf32, #tpu.memory_space<vmem>>, vector<128x128xf32>
      %c1 = arith.constant 1 : index
      %c0_10 = arith.constant 0 : index
      %c0_11 = arith.constant 0 : index
      %17 = vector.load %arg16[%c1, %c0_10, %c0_11] : memref<2x128x1xf32, #tpu.memory_space<vmem>>, vector<1x128x1xf32>
      %18 = vector.shape_cast %17 : vector<1x128x1xf32> to vector<128x1xf32>
      %19 = tpu.reciprocal %18 {approx = true} : vector<128x1xf32> -> vector<128x1xf32>
      %20 = vector.broadcast %19 : vector<128x1xf32> to vector<128x128xf32>
      %21 = arith.mulf %16, %20 : vector<128x128xf32>
      %c0_12 = arith.constant 0 : index
      %c128_13 = arith.constant 128 : index
      %22 = vector.load %arg17[%c0_12, %c128_13] : memref<128x256xf32, #tpu.memory_space<vmem>>, vector<128x128xf32>
      tpu.vector_store %arg17[%c0_12, %c128_13], %21 {strides = array<i32>} : memref<128x256xf32, #tpu.memory_space<vmem>>, vector<128x128xf32>,
      %c0_14 = arith.constant 0 : index
      %c0_15 = arith.constant 0 : index
      %23 = vector.load %arg17[%c0_14, %c0_15] : memref<128x256xf32, #tpu.memory_space<vmem>>, vector<128x256xf32>
      %c0_16 = arith.constant 0 : index
      %c0_17 = arith.constant 0 : index
      %24 = vector.load %arg11[%c0_16, %c0_17] : memref<256x256xf32, #tpu.memory_space<vmem>>, vector<256x256xf32>
      %cst = arith.constant dense<0.000000e+00> : vector<128x256xf32>
      %25 = tpu.matmul %23, %24, %cst {dimension_numbers = #tpu.dot_dimension_numbers<[1], [0], [0], [1], [0, 0, 1, 1], [], []>} : vector<128x256xf32>, vector<256x256xf32>, vector<128x256xf32> -> vector<128x256xf32>
      %c0_18 = arith.constant 0 : index
      %c0_19 = arith.constant 0 : index
      %26 = vector.load %arg12[%c0_18, %c0_19] : memref<1x256xf32, #tpu.memory_space<vmem>>, vector<1x256xf32>
      %27 = vector.broadcast %26 : vector<1x256xf32> to vector<128x256xf32>
      %28 = arith.addf %25, %27 : vector<128x256xf32>
      %c0_20 = arith.constant 0 : index
      %c0_21 = arith.constant 0 : index
      %c0_22 = arith.constant 0 : index
      %29 = vector.load %arg13[%c0_20, %c0_21, %c0_22] : memref<1x128x256xf32, #tpu.memory_space<vmem>>, vector<1x128x256xf32>
      %30 = vector.shape_cast %29 : vector<1x128x256xf32> to vector<128x256xf32>
      %31 = vector.shape_cast %28 : vector<128x256xf32> to vector<1x128x256xf32>
      tpu.vector_store %arg13[%c0_20, %c0_21, %c0_22], %31 {strides = array<i32>} : memref<1x128x256xf32, #tpu.memory_space<vmem>>, vector<1x128x256xf32>,
    } else {
    }
    return
  }
  func.func @transform_0(%arg0: i32, %arg1: i32, %arg2: i32) -> (i32, i32, i32) {
    %c0_i32 = arith.constant 0 : i32
    %c0_i32_0 = arith.constant 0 : i32
    return %arg0, %arg1, %c0_i32 : i32, i32, i32
  }
  func.func @transform_1(%arg0: i32, %arg1: i32, %arg2: i32) -> (i32, i32, i32) {
    %c0_i32 = arith.constant 0 : i32
    %c0_i32_0 = arith.constant 0 : i32
    return %arg0, %arg2, %c0_i32 : i32, i32, i32
  }
  func.func @transform_2(%arg0: i32, %arg1: i32, %arg2: i32) -> (i32, i32) {
    %c0_i32 = arith.constant 0 : i32
    %c0_i32_0 = arith.constant 0 : i32
    %c0_i32_1 = arith.constant 0 : i32
    return %c0_i32, %c0_i32_0 : i32, i32
  }
  func.func @transform_3(%arg0: i32, %arg1: i32, %arg2: i32) -> (i32, i32) {
    %c0_i32 = arith.constant 0 : i32
    %c0_i32_0 = arith.constant 0 : i32
    %c0_i32_1 = arith.constant 0 : i32
    return %c0_i32, %c0_i32_0 : i32, i32
  }
  func.func @transform_4(%arg0: i32, %arg1: i32, %arg2: i32) -> (i32, i32) {
    %c0_i32 = arith.constant 0 : i32
    %c0_i32_0 = arith.constant 0 : i32
    %c0_i32_1 = arith.constant 0 : i32
    return %c0_i32, %c0_i32_0 : i32, i32
  }
  func.func @transform_5(%arg0: i32, %arg1: i32, %arg2: i32) -> (i32, i32) {
    %c0_i32 = arith.constant 0 : i32
    %c0_i32_0 = arith.constant 0 : i32
    %c0_i32_1 = arith.constant 0 : i32
    return %c0_i32, %c0_i32_0 : i32, i32
  }
  func.func @transform_6(%arg0: i32, %arg1: i32, %arg2: i32) -> (i32, i32) {
    %c0_i32 = arith.constant 0 : i32
    %c0_i32_0 = arith.constant 0 : i32
    %c0_i32_1 = arith.constant 0 : i32
    return %c0_i32, %c0_i32_0 : i32, i32
  }
  func.func @transform_7(%arg0: i32, %arg1: i32, %arg2: i32) -> (i32, i32) {
    %c0_i32 = arith.constant 0 : i32
    %c0_i32_0 = arith.constant 0 : i32
    %c0_i32_1 = arith.constant 0 : i32
    return %c0_i32, %c0_i32_0 : i32, i32
  }
  func.func @transform_8(%arg0: i32, %arg1: i32, %arg2: i32) -> (i32, i32) {
    %c0_i32 = arith.constant 0 : i32
    %c0_i32_0 = arith.constant 0 : i32
    %c0_i32_1 = arith.constant 0 : i32
    return %c0_i32, %c0_i32_0 : i32, i32
  }
  func.func @transform_9(%arg0: i32, %arg1: i32, %arg2: i32) -> (i32, i32) {
    %c0_i32 = arith.constant 0 : i32
    %c0_i32_0 = arith.constant 0 : i32
    %c0_i32_1 = arith.constant 0 : i32
    return %c0_i32, %c0_i32_0 : i32, i32
  }
  func.func @transform_10(%arg0: i32, %arg1: i32, %arg2: i32) -> (i32, i32, i32) {
    %c0_i32 = arith.constant 0 : i32
    %c0_i32_0 = arith.constant 0 : i32
    return %arg0, %arg1, %c0_i32 : i32, i32, i32
  }
}

</mosaic_0001>

<llo_original>
// kernel: mhsa_forward.1
$region0: #{mhsa_forward.1}
  #allocation0 [shape = 'u32[]', space=smem, size = 0x4, offset = 0x4, fixed_abs, tag = 'smem constant byte address 0x4 - core index']
  #allocation1 [shape = 'u32[144,128]{1,0:T(1,128)}', space=vmem, size = 0x12000, scoped, tag = 'internal scratch']
  #allocation2 [shape = 'f32[128,256]{1,0:T(8,128)}', space=vmem, size = 0x20000, scoped, tag = 'scratch operand']
  #allocation3 [shape = 'f32[2,128,1]{2,1,0:T(8,128)}', space=vmem, size = 0x20000, scoped, tag = 'scratch operand']
  #allocation4 [shape = 'f32[2,128,1]{2,1,0:T(8,128)}', space=vmem, size = 0x20000, scoped, tag = 'scratch operand']
  #allocation5 [shape = 'f32[128,256]{1,0:T(8,128)}', space=vmem, size = 0x20000, scoped, tag = 'scratch operand']
  %s0 = inlined_call_operand.vmem [shape: f32[2,256,256], index: 0, kind: input, shape index: {}, may-alias: {0,1}]
  %s1 = inlined_call_operand.vmem [shape: f32[2,256,256], index: 1, kind: input, shape index: {}, may-alias: {0,1}]
  %s2 = inlined_call_operand.vmem [shape: f32[256,256], index: 2, kind: input, shape index: {}]
  %s3 = inlined_call_operand.vmem [shape: f32[256,256], index: 3, kind: input, shape index: {}]
  %s4 = inlined_call_operand.vmem [shape: f32[256,256], index: 4, kind: input, shape index: {}]
  %s5 = inlined_call_operand.vmem [shape: f32[1,256], index: 5, kind: input, shape index: {}]
  %s6 = inlined_call_operand.vmem [shape: f32[1,256], index: 6, kind: input, shape index: {}]
  %s7 = inlined_call_operand.vmem [shape: f32[1,256], index: 7, kind: input, shape index: {}]
  %s8 = inlined_call_operand.vmem [shape: f32[256,256], index: 8, kind: input, shape index: {}]
  %s9 = inlined_call_operand.vmem [shape: f32[1,256], index: 9, kind: input, shape index: {}]
  %s10 = inlined_call_operand.hbm [shape: f32[2,256,256], index: 10, kind: output, shape index: {}]
  %s11 = sld [smem:[#allocation0]]
  $region85: #{mhsa_forward.1} parent=0
    _
  %s13 = ssub.s32 1, %s11
  %s14 = scalar_select 0, %s13, %s11
  $region1: #{mhsa_forward.1} parent=0
    #allocation6 [shape = 'u8[262144]{0}', space=vmem, size = 0x40000, scoped, tag = 'output window, operand 0']
    #allocation7 [shape = 's32[2]{0}', space=sflag, size = 0x8, scoped, tag = 'scoped memory for mhsa_forward.1']
    %15 = vsyncpa [#allocation7], 0
    %s16 = scalar_lea.sflag [#allocation7], 1
    %17 = vsyncpa %s16, 0
    loop: start=0, step=1, limit=10
    $region2: #{mhsa_forward.1} parent=1 // loop_pre_header
      _
    $region3: #{mhsa_forward.1} parent=1 // loop_header
      %s19 = sphi 0, %s23
      %p20 = scmp.ge.s32.totalorder %s19, 10
      %s26 = sphi 0, %s45
      %s27 = sphi 0, %s41
      %s28 = sphi 0, %s37
      %s29 = sphi 0, %s26
      %s30 = sphi 0, %s27
      %s31 = sphi 0, %s28
      %s32 = sphi 0, %s29
      %s33 = sphi 0, %s30
      %s34 = sphi 0, %s31
      %s50 = sphi 0, %s52
      %s53 = sphi 0, %s50
      %s54 = sphi 0, %s53
      %s70 = sphi 0, %s54
      %s78 = sphi 0, %s80
      %s81 = sphi 0, %s78
      %s82 = sphi 0, %s81
      %s98 = sphi 0, %s82
      %s102 = sphi 0, %s102
      %s104 = sphi 0, %s102
      %s105 = sphi 0, %s104
      %s119 = sphi 0, %s105
      %s123 = sphi 0, %s123
      %s125 = sphi 0, %s123
      %s126 = sphi 0, %s125
      %s140 = sphi 0, %s126
      %s144 = sphi 0, %s144
      %s146 = sphi 0, %s144
      %s147 = sphi 0, %s146
      %s161 = sphi 0, %s147
      %s165 = sphi 0, %s165
      %s167 = sphi 0, %s165
      %s168 = sphi 0, %s167
      %s182 = sphi 0, %s168
      %s186 = sphi 0, %s186
      %s188 = sphi 0, %s186
      %s189 = sphi 0, %s188
      %s203 = sphi 0, %s189
      %s207 = sphi 0, %s207
      %s209 = sphi 0, %s207
      %s210 = sphi 0, %s209
      %s224 = sphi 0, %s210
      %s228 = sphi 0, %s228
      %s230 = sphi 0, %s228
      %s231 = sphi 0, %s230
      %s245 = sphi 0, %s231
      %s249 = sphi 0, %s249
      %s251 = sphi 0, %s249
      %s252 = sphi 0, %s251
      %s266 = sphi 0, %s252
      %s274 = sphi 0, %s276
      %s277 = sphi 0, %s274
      %s278 = sphi 0, %s277
      %s294 = sphi 0, %s278
    $region4: #{mhsa_forward.1} parent=1 // loop_header_branch
      %22 = sbr.rel (%p20) target = $region8
    $region5: #{mhsa_forward.1} parent=1 // loop_body
      %s24 = ssub.s32 %s19, 1
      %s25 = ssub.s32 %s19, 2
      %s35 = sadd.s32 1, %s28
      %p36 = scmp.ge.s32.totalorder %s35, 2
      %s37 = scalar_select %p36, 0, %s35
      %s38 = sadd.s32 1, %s27
      %s39 = scalar_select %p36, %s38, %s27
      %p40 = scmp.ge.s32.totalorder %s39, 2
      %s41 = scalar_select %p40, 0, %s39
      %s42 = sadd.s32 1, %s26
      %s43 = scalar_select %p40, %s42, %s26
      %p44 = scmp.ge.s32.totalorder %s43, 2
      %s45 = scalar_select %p44, 0, %s43
      %s46 = ssub.s32 %s26, %s45
      %s47 = ssub.s32 %s27, %s41
      %s48 = sor.u32 %s46, %s47
      %p49 = scmp.eq.s32.totalorder %s48, 0
      %s51 = sadd.s32 %s50, 1
      %s52 = scalar_select %p49, %s50, %s51
      %p55 = pneg %p49
      %p56 = scmp.eq.s32.totalorder %s19, 7
      %p57 = por %p55, %p56
      %p58 = scmp.ne.s32.totalorder %s50, %s53
      %p59 = scmp.eq.s32.totalorder %s19, 0
      %p60 = por %p58, %p59
      %p61 = scmp.ne.s32.totalorder %s50, %s53
      %p62 = scmp.eq.s32.totalorder %s24, 7
      %p63 = por %p61, %p62
      %p64 = scmp.ne.s32.totalorder %s53, %s54
      %p65 = scmp.eq.s32.totalorder %s24, 0
      %p66 = por %p64, %p65
      %p67 = scmp.ne.s32.totalorder %s53, %s54
      %p68 = scmp.eq.s32.totalorder %s25, 7
      %p69 = por %p67, %p68
      %p71 = scmp.ne.s32.totalorder %s54, %s70
      %p72 = scmp.eq.s32.totalorder %s25, 0
      %p73 = por %p71, %p72
      %s74 = ssub.s32 %s26, %s45
      %s75 = ssub.s32 %s28, %s37
      %s76 = sor.u32 %s74, %s75
      %p77 = scmp.eq.s32.totalorder %s76, 0
      %s79 = sadd.s32 %s78, 1
      %s80 = scalar_select %p77, %s78, %s79
      %p83 = pneg %p77
      %p84 = scmp.eq.s32.totalorder %s19, 7
      %p85 = por %p83, %p84
      %p86 = scmp.ne.s32.totalorder %s78, %s81
      %p87 = scmp.eq.s32.totalorder %s19, 0
      %p88 = por %p86, %p87
      %p89 = scmp.ne.s32.totalorder %s78, %s81
      %p90 = scmp.eq.s32.totalorder %s24, 7
      %p91 = por %p89, %p90
      %p92 = scmp.ne.s32.totalorder %s81, %s82
      %p93 = scmp.eq.s32.totalorder %s24, 0
      %p94 = por %p92, %p93
      %p95 = scmp.ne.s32.totalorder %s81, %s82
      %p96 = scmp.eq.s32.totalorder %s25, 7
      %p97 = por %p95, %p96
      %p99 = scmp.ne.s32.totalorder %s82, %s98
      %p100 = scmp.eq.s32.totalorder %s25, 0
      %p101 = por %p99, %p100
      %s103 = sadd.s32 %s102, 1
      %p106 = scmp.eq.s32.totalorder %s19, 7
      %p107 = scmp.ne.s32.totalorder %s102, %s104
      %p108 = scmp.eq.s32.totalorder %s19, 0
      %p109 = por %p107, %p108
      %p110 = scmp.ne.s32.totalorder %s102, %s104
      %p111 = scmp.eq.s32.totalorder %s24, 7
      %p112 = por %p110, %p111
      %p113 = scmp.ne.s32.totalorder %s104, %s105
      %p114 = scmp.eq.s32.totalorder %s24, 0
      %p115 = por %p113, %p114
      %p116 = scmp.ne.s32.totalorder %s104, %s105
      %p117 = scmp.eq.s32.totalorder %s25, 7
      %p118 = por %p116, %p117
      %p120 = scmp.ne.s32.totalorder %s105, %s119
      %p121 = scmp.eq.s32.totalorder %s25, 0
      %p122 = por %p120, %p121
      %s124 = sadd.s32 %s123, 1
      %p127 = scmp.eq.s32.totalorder %s19, 7
      %p128 = scmp.ne.s32.totalorder %s123, %s125
      %p129 = scmp.eq.s32.totalorder %s19, 0
      %p130 = por %p128, %p129
      %p131 = scmp.ne.s32.totalorder %s123, %s125
      %p132 = scmp.eq.s32.totalorder %s24, 7
      %p133 = por %p131, %p132
      %p134 = scmp.ne.s32.totalorder %s125, %s126
      %p135 = scmp.eq.s32.totalorder %s24, 0
      %p136 = por %p134, %p135
      %p137 = scmp.ne.s32.totalorder %s125, %s126
      %p138 = scmp.eq.s32.totalorder %s25, 7
      %p139 = por %p137, %p138
      %p141 = scmp.ne.s32.totalorder %s126, %s140
      %p142 = scmp.eq.s32.totalorder %s25, 0
      %p143 = por %p141, %p142
      %s145 = sadd.s32 %s144, 1
      %p148 = scmp.eq.s32.totalorder %s19, 7
      %p149 = scmp.ne.s32.totalorder %s144, %s146
      %p150 = scmp.eq.s32.totalorder %s19, 0
      %p151 = por %p149, %p150
      %p152 = scmp.ne.s32.totalorder %s144, %s146
      %p153 = scmp.eq.s32.totalorder %s24, 7
      %p154 = por %p152, %p153
      %p155 = scmp.ne.s32.totalorder %s146, %s147
      %p156 = scmp.eq.s32.totalorder %s24, 0
      %p157 = por %p155, %p156
      %p158 = scmp.ne.s32.totalorder %s146, %s147
      %p159 = scmp.eq.s32.totalorder %s25, 7
      %p160 = por %p158, %p159
      %p162 = scmp.ne.s32.totalorder %s147, %s161
      %p163 = scmp.eq.s32.totalorder %s25, 0
      %p164 = por %p162, %p163
      %s166 = sadd.s32 %s165, 1
      %p169 = scmp.eq.s32.totalorder %s19, 7
      %p170 = scmp.ne.s32.totalorder %s165, %s167
      %p171 = scmp.eq.s32.totalorder %s19, 0
      %p172 = por %p170, %p171
      %p173 = scmp.ne.s32.totalorder %s165, %s167
      %p174 = scmp.eq.s32.totalorder %s24, 7
      %p175 = por %p173, %p174
      %p176 = scmp.ne.s32.totalorder %s167, %s168
      %p177 = scmp.eq.s32.totalorder %s24, 0
      %p178 = por %p176, %p177
      %p179 = scmp.ne.s32.totalorder %s167, %s168
      %p180 = scmp.eq.s32.totalorder %s25, 7
      %p181 = por %p179, %p180
      %p183 = scmp.ne.s32.totalorder %s168, %s182
      %p184 = scmp.eq.s32.totalorder %s25, 0
      %p185 = por %p183, %p184
      %s187 = sadd.s32 %s186, 1
      %p190 = scmp.eq.s32.totalorder %s19, 7
      %p191 = scmp.ne.s32.totalorder %s186, %s188
      %p192 = scmp.eq.s32.totalorder %s19, 0
      %p193 = por %p191, %p192
      %p194 = scmp.ne.s32.totalorder %s186, %s188
      %p195 = scmp.eq.s32.totalorder %s24, 7
      %p196 = por %p194, %p195
      %p197 = scmp.ne.s32.totalorder %s188, %s189
      %p198 = scmp.eq.s32.totalorder %s24, 0
      %p199 = por %p197, %p198
      %p200 = scmp.ne.s32.totalorder %s188, %s189
      %p201 = scmp.eq.s32.totalorder %s25, 7
      %p202 = por %p200, %p201
      %p204 = scmp.ne.s32.totalorder %s189, %s203
      %p205 = scmp.eq.s32.totalorder %s25, 0
      %p206 = por %p204, %p205
      %s208 = sadd.s32 %s207, 1
      %p211 = scmp.eq.s32.totalorder %s19, 7
      %p212 = scmp.ne.s32.totalorder %s207, %s209
      %p213 = scmp.eq.s32.totalorder %s19, 0
      %p214 = por %p212, %p213
      %p215 = scmp.ne.s32.totalorder %s207, %s209
      %p216 = scmp.eq.s32.totalorder %s24, 7
      %p217 = por %p215, %p216
      %p218 = scmp.ne.s32.totalorder %s209, %s210
      %p219 = scmp.eq.s32.totalorder %s24, 0
      %p220 = por %p218, %p219
      %p221 = scmp.ne.s32.totalorder %s209, %s210
      %p222 = scmp.eq.s32.totalorder %s25, 7
      %p223 = por %p221, %p222
      %p225 = scmp.ne.s32.totalorder %s210, %s224
      %p226 = scmp.eq.s32.totalorder %s25, 0
      %p227 = por %p225, %p226
      %s229 = sadd.s32 %s228, 1
      %p232 = scmp.eq.s32.totalorder %s19, 7
      %p233 = scmp.ne.s32.totalorder %s228, %s230
      %p234 = scmp.eq.s32.totalorder %s19, 0
      %p235 = por %p233, %p234
      %p236 = scmp.ne.s32.totalorder %s228, %s230
      %p237 = scmp.eq.s32.totalorder %s24, 7
      %p238 = por %p236, %p237
      %p239 = scmp.ne.s32.totalorder %s230, %s231
      %p240 = scmp.eq.s32.totalorder %s24, 0
      %p241 = por %p239, %p240
      %p242 = scmp.ne.s32.totalorder %s230, %s231
      %p243 = scmp.eq.s32.totalorder %s25, 7
      %p244 = por %p242, %p243
      %p246 = scmp.ne.s32.totalorder %s231, %s245
      %p247 = scmp.eq.s32.totalorder %s25, 0
      %p248 = por %p246, %p247
      %s250 = sadd.s32 %s249, 1
      %p253 = scmp.eq.s32.totalorder %s19, 7
      %p254 = scmp.ne.s32.totalorder %s249, %s251
      %p255 = scmp.eq.s32.totalorder %s19, 0
      %p256 = por %p254, %p255
      %p257 = scmp.ne.s32.totalorder %s249, %s251
      %p258 = scmp.eq.s32.totalorder %s24, 7
      %p259 = por %p257, %p258
      %p260 = scmp.ne.s32.totalorder %s251, %s252
      %p261 = scmp.eq.s32.totalorder %s24, 0
      %p262 = por %p260, %p261
      %p263 = scmp.ne.s32.totalorder %s251, %s252
      %p264 = scmp.eq.s32.totalorder %s25, 7
      %p265 = por %p263, %p264
      %p267 = scmp.ne.s32.totalorder %s252, %s266
      %p268 = scmp.eq.s32.totalorder %s25, 0
      %p269 = por %p267, %p268
      %s270 = ssub.s32 %s26, %s45
      %s271 = ssub.s32 %s27, %s41
      %s272 = sor.u32 %s270, %s271
      %p273 = scmp.eq.s32.totalorder %s272, 0
      %s275 = sadd.s32 %s274, 1
      %s276 = scalar_select %p273, %s274, %s275
      %p279 = pneg %p273
      %p280 = scmp.eq.s32.totalorder %s19, 7
      %p281 = por %p279, %p280
      %p282 = scmp.ne.s32.totalorder %s274, %s277
      %p283 = scmp.eq.s32.totalorder %s19, 0
      %p284 = por %p282, %p283
      %p285 = scmp.ne.s32.totalorder %s274, %s277
      %p286 = scmp.eq.s32.totalorder %s24, 7
      %p287 = por %p285, %p286
      %p288 = scmp.ne.s32.totalorder %s277, %s278
      %p289 = scmp.eq.s32.totalorder %s24, 0
      %p290 = por %p288, %p289
      %p291 = scmp.ne.s32.totalorder %s277, %s278
      %p292 = scmp.eq.s32.totalorder %s25, 7
      %p293 = por %p291, %p292
      %p295 = scmp.ne.s32.totalorder %s278, %s294
      %p296 = scmp.eq.s32.totalorder %s25, 0
      %p297 = por %p295, %p296
      %p298 = scmp.le.s32.totalorder 1, %s19
      %p299 = scmp.lt.s32.totalorder %s19, 9
      %p300 = pnand %p298, %p299
      %p301 = pneg %p300
      // Predicated region
      $region9: #{mhsa_forward.1} parent=5 // pred_check
        _
      $region10: #{mhsa_forward.1} parent=5 // pred_check_branch
        %303 = sbr.rel (%p300) target = $region12
      $region11: #{mhsa_forward.1} parent=5 // pred_region
        %s304 = ssub.s32 %s19, 1
        // Predicated region
        $region13: #{mhsa_forward.1} parent=11 // pred_check
          %p305 = pneg %p115
        $region14: #{mhsa_forward.1} parent=11 // pred_check_branch
          %307 = sbr.rel (%p305) target = $region16
        $region15: #{mhsa_forward.1} parent=11 // pred_region
          _
        $region16: #{mhsa_forward.1} parent=11 // pred_fallthru
          _
        // Predicated region
        $region17: #{mhsa_forward.1} parent=11 // pred_check
          %p308 = pneg %p136
        $region18: #{mhsa_forward.1} parent=11 // pred_check_branch
          %310 = sbr.rel (%p308) target = $region20
        $region19: #{mhsa_forward.1} parent=11 // pred_region
          _
        $region20: #{mhsa_forward.1} parent=11 // pred_fallthru
          _
        // Predicated region
        $region21: #{mhsa_forward.1} parent=11 // pred_check
          %p311 = pneg %p157
        $region22: #{mhsa_forward.1} parent=11 // pred_check_branch
          %313 = sbr.rel (%p311) target = $region24
        $region23: #{mhsa_forward.1} parent=11 // pred_region
          _
        $region24: #{mhsa_forward.1} parent=11 // pred_fallthru
          _
        // Predicated region
        $region25: #{mhsa_forward.1} parent=11 // pred_check
          %p314 = pneg %p178
        $region26: #{mhsa_forward.1} parent=11 // pred_check_branch
          %316 = sbr.rel (%p314) target = $region28
        $region27: #{mhsa_forward.1} parent=11 // pred_region
          _
        $region28: #{mhsa_forward.1} parent=11 // pred_fallthru
          _
        // Predicated region
        $region29: #{mhsa_forward.1} parent=11 // pred_check
          %p317 = pneg %p199
        $region30: #{mhsa_forward.1} parent=11 // pred_check_branch
          %319 = sbr.rel (%p317) target = $region32
        $region31: #{mhsa_forward.1} parent=11 // pred_region
          _
        $region32: #{mhsa_forward.1} parent=11 // pred_fallthru
          _
        // Predicated region
        $region33: #{mhsa_forward.1} parent=11 // pred_check
          %p320 = pneg %p220
        $region34: #{mhsa_forward.1} parent=11 // pred_check_branch
          %322 = sbr.rel (%p320) target = $region36
        $region35: #{mhsa_forward.1} parent=11 // pred_region
          _
        $region36: #{mhsa_forward.1} parent=11 // pred_fallthru
          _
        // Predicated region
        $region37: #{mhsa_forward.1} parent=11 // pred_check
          %p323 = pneg %p241
        $region38: #{mhsa_forward.1} parent=11 // pred_check_branch
          %325 = sbr.rel (%p323) target = $region40
        $region39: #{mhsa_forward.1} parent=11 // pred_region
          _
        $region40: #{mhsa_forward.1} parent=11 // pred_fallthru
          _
        // Predicated region
        $region41: #{mhsa_forward.1} parent=11 // pred_check
          %p326 = pneg %p262
        $region42: #{mhsa_forward.1} parent=11 // pred_check_branch
          %328 = sbr.rel (%p326) target = $region44
        $region43: #{mhsa_forward.1} parent=11 // pred_region
          _
        $region44: #{mhsa_forward.1} parent=11 // pred_fallthru
          _
      $region12: #{mhsa_forward.1} parent=5 // pred_fallthru
        _
      %p329 = scmp.lt.s32.totalorder %s19, 8
      // Predicated region
      $region45: #{mhsa_forward.1} parent=5 // pred_check
        %p330 = pneg %p329
      $region46: #{mhsa_forward.1} parent=5 // pred_check_branch
        %332 = sbr.rel (%p330) target = $region48
      $region47: #{mhsa_forward.1} parent=5 // pred_region
        // Predicated region
        $region49: #{mhsa_forward.1} parent=47 // pred_check
          %p333 = pneg %p60
        $region50: #{mhsa_forward.1} parent=47 // pred_check_branch
          %335 = sbr.rel (%p333) target = $region52
        $region51: #{mhsa_forward.1} parent=47 // pred_region
          %s336 = smul.u32 16, %s27
          %p337 = scmp.lt.s32.totalorder %s26, 1
          %s338 = scalar_select %p337, %s26, 1
          %p339 = scmp.lt.s32.totalorder %s336, 31
          %s340 = scalar_select %p339, %s336, 31
          %s341 = smul.addr %s340, 2
          %s342 = smul.addr %s338, 64
          %s343 = sadd.s32 %s341, %s342
          %s344 = smul.addr %s343, 8
          %s345 = scalar_lea.vmem %s0, %s344
          %s346 = smul.u32 16, %s27
        $region52: #{mhsa_forward.1} parent=47 // pred_fallthru
          _
        // Predicated region
        $region53: #{mhsa_forward.1} parent=47 // pred_check
          %p347 = pneg %p88
        $region54: #{mhsa_forward.1} parent=47 // pred_check_branch
          %349 = sbr.rel (%p347) target = $region56
        $region55: #{mhsa_forward.1} parent=47 // pred_region
          %s350 = smul.u32 16, %s28
          %p351 = scmp.lt.s32.totalorder %s26, 1
          %s352 = scalar_select %p351, %s26, 1
          %p353 = scmp.lt.s32.totalorder %s350, 31
          %s354 = scalar_select %p353, %s350, 31
          %s355 = smul.addr %s354, 2
          %s356 = smul.addr %s352, 64
          %s357 = sadd.s32 %s355, %s356
          %s358 = smul.addr %s357, 8
          %s359 = scalar_lea.vmem %s1, %s358
          %s360 = smul.u32 16, %s28
        $region56: #{mhsa_forward.1} parent=47 // pred_fallthru
          _
      $region48: #{mhsa_forward.1} parent=5 // pred_fallthru
        _
      %p361 = scmp.le.s32.totalorder 1, %s19
      %p362 = scmp.lt.s32.totalorder %s19, 9
      %p363 = pnand %p361, %p362
      %p364 = pneg %p363
      // Predicated region
      $region57: #{mhsa_forward.1} parent=5 // pred_check
        _
      $region58: #{mhsa_forward.1} parent=5 // pred_check_branch
        %366 = sbr.rel (%p363) target = $region60
      $region59: #{mhsa_forward.1} parent=5 // pred_region
        %s367 = ssub.s32 %s19, 1
        %s368 = smul.u32 16, %s30
        %p369 = scmp.lt.s32.totalorder %s29, 1
        %s370 = scalar_select %p369, %s29, 1
        %p371 = scmp.lt.s32.totalorder %s368, 31
        %s372 = scalar_select %p371, %s368, 31
        %s373 = smul.addr %s372, 2
        %s374 = smul.addr %s370, 64
        %s375 = sadd.s32 %s373, %s374
        %s376 = smul.addr %s375, 8
        %s377 = scalar_lea.vmem %s0, %s376
        %p378 = pneg %p66
        %p379 = pneg %p63
        %s380 = smul.u32 16, %s31
        %p381 = scmp.lt.s32.totalorder %s29, 1
        %s382 = scalar_select %p381, %s29, 1
        %p383 = scmp.lt.s32.totalorder %s380, 31
        %s384 = scalar_select %p383, %s380, 31
        %s385 = smul.addr %s384, 2
        %s386 = smul.addr %s382, 64
        %s387 = sadd.s32 %s385, %s386
        %s388 = smul.addr %s387, 8
        %s389 = scalar_lea.vmem %s1, %s388
        %p390 = pneg %p94
        %p391 = pneg %p91
        %p392 = pneg %p115
        %p393 = pneg %p112
        %p394 = pneg %p136
        %p395 = pneg %p133
        %p396 = pneg %p157
        %p397 = pneg %p154
        %p398 = pneg %p178
        %p399 = pneg %p175
        %p400 = pneg %p199
        %p401 = pneg %p196
        %p402 = pneg %p220
        %p403 = pneg %p217
        %p404 = pneg %p241
        %p405 = pneg %p238
        %p406 = pneg %p262
        %p407 = pneg %p259
        %p408 = pneg %p290
        %p409 = pneg %p287
        %s410 = sand.u32 %s277, 1
        %s411 = scalar_lea.sflag [#allocation7], %s410
        %s412 = sand.u32 %s277, 1
        %s413 = smul.addr %s412, 256
        %s414 = scalar_lea.vmem [#allocation6], %s413
        %s415 = smul.u32 16, %s30
        %p416 = scmp.lt.s32.totalorder %s29, 1
        %s417 = scalar_select %p416, %s29, 1
        %p418 = scmp.lt.s32.totalorder %s415, 31
        %s419 = scalar_select %p418, %s415, 31
        %s420 = smul.addr %s419, 2
        %s421 = smul.addr %s417, 64
        %s422 = sadd.s32 %s420, %s421
        %s423 = smul.addr %s422, 8
        %s424 = scalar_lea.vmem %s0, %s423
        %s425 = smul.u32 16, %s30
        %s426 = smul.u32 16, %s31
        %p427 = scmp.lt.s32.totalorder %s29, 1
        %s428 = scalar_select %p427, %s29, 1
        %p429 = scmp.lt.s32.totalorder %s426, 31
        %s430 = scalar_select %p429, %s426, 31
        %s431 = smul.addr %s430, 2
        %s432 = smul.addr %s428, 64
        %s433 = sadd.s32 %s431, %s432
        %s434 = smul.addr %s433, 8
        %s435 = scalar_lea.vmem %s1, %s434
        %s436 = smul.u32 16, %s31
        %s437 = smul.u32 16, %s30
        %p438 = scmp.eq.s32.totalorder %s31, 0
        // Predicated region
        $region61: #{mhsa_forward.1} parent=59 // pred_check
          %p439 = pneg %p438
        $region62: #{mhsa_forward.1} parent=59 // pred_check_branch
          %441 = sbr.rel (%p439) target = $region64
        $region63: #{mhsa_forward.1} parent=59 // pred_region
          %v442 = vld [vmem:[%s424] sm:$0xff]
          %v443 = vld [vmem:[%s424 + $0x8] sm:$0xff]
          %v444 = vld [vmem:[%s424 + $0x10] sm:$0xff]
          %v445 = vld [vmem:[%s424 + $0x18] sm:$0xff]
          %v446 = vld [vmem:[%s424 + $0x20] sm:$0xff]
          %v447 = vld [vmem:[%s424 + $0x28] sm:$0xff]
          %v448 = vld [vmem:[%s424 + $0x30] sm:$0xff]
          %v449 = vld [vmem:[%s424 + $0x38] sm:$0xff]
          %v450 = vld [vmem:[%s424 + $0x40] sm:$0xff]
          %v451 = vld [vmem:[%s424 + $0x48] sm:$0xff]
          %v452 = vld [vmem:[%s424 + $0x50] sm:$0xff]
          %v453 = vld [vmem:[%s424 + $0x58] sm:$0xff]
          %v454 = vld [vmem:[%s424 + $0x60] sm:$0xff]
          %v455 = vld [vmem:[%s424 + $0x68] sm:$0xff]
          %v456 = vld [vmem:[%s424 + $0x70] sm:$0xff]
          %v457 = vld [vmem:[%s424 + $0x78] sm:$0xff]
          %v458 = vld [vmem:[%s424 + $0x80] sm:$0xff]
          %v459 = vld [vmem:[%s424 + $0x88] sm:$0xff]
          %v460 = vld [vmem:[%s424 + $0x90] sm:$0xff]
          %v461 = vld [vmem:[%s424 + $0x98] sm:$0xff]
          %v462 = vld [vmem:[%s424 + $0xa0] sm:$0xff]
          %v463 = vld [vmem:[%s424 + $0xa8] sm:$0xff]
          %v464 = vld [vmem:[%s424 + $0xb0] sm:$0xff]
          %v465 = vld [vmem:[%s424 + $0xb8] sm:$0xff]
          %v466 = vld [vmem:[%s424 + $0xc0] sm:$0xff]
          %v467 = vld [vmem:[%s424 + $0xc8] sm:$0xff]
          %v468 = vld [vmem:[%s424 + $0xd0] sm:$0xff]
          %v469 = vld [vmem:[%s424 + $0xd8] sm:$0xff]
          %v470 = vld [vmem:[%s424 + $0xe0] sm:$0xff]
          %v471 = vld [vmem:[%s424 + $0xe8] sm:$0xff]
          %v472 = vld [vmem:[%s424 + $0xf0] sm:$0xff]
          %v473 = vld [vmem:[%s424 + $0xf8] sm:$0xff]
          %v474 = vld [vmem:[%s2] sm:$0xff]
          %v475 = vld [vmem:[%s2 + $0x8] sm:$0xff]
          %v476 = vld [vmem:[%s2 + $0x10] sm:$0xff]
          %v477 = vld [vmem:[%s2 + $0x18] sm:$0xff]
          %v478 = vld [vmem:[%s2 + $0x20] sm:$0xff]
          %v479 = vld [vmem:[%s2 + $0x28] sm:$0xff]
          %v480 = vld [vmem:[%s2 + $0x30] sm:$0xff]
          %v481 = vld [vmem:[%s2 + $0x38] sm:$0xff]
          %v482 = vld [vmem:[%s2 + $0x40] sm:$0xff]
          %v483 = vld [vmem:[%s2 + $0x48] sm:$0xff]
          %v484 = vld [vmem:[%s2 + $0x50] sm:$0xff]
          %v485 = vld [vmem:[%s2 + $0x58] sm:$0xff]
          %v486 = vld [vmem:[%s2 + $0x60] sm:$0xff]
          %v487 = vld [vmem:[%s2 + $0x68] sm:$0xff]
          %v488 = vld [vmem:[%s2 + $0x70] sm:$0xff]
          %v489 = vld [vmem:[%s2 + $0x78] sm:$0xff]
          %v490 = vld [vmem:[%s2 + $0x80] sm:$0xff]
          %v491 = vld [vmem:[%s2 + $0x88] sm:$0xff]
          %v492 = vld [vmem:[%s2 + $0x90] sm:$0xff]
          %v493 = vld [vmem:[%s2 + $0x98] sm:$0xff]
          %v494 = vld [vmem:[%s2 + $0xa0] sm:$0xff]
          %v495 = vld [vmem:[%s2 + $0xa8] sm:$0xff]
          %v496 = vld [vmem:[%s2 + $0xb0] sm:$0xff]
          %v497 = vld [vmem:[%s2 + $0xb8] sm:$0xff]
          %v498 = vld [vmem:[%s2 + $0xc0] sm:$0xff]
          %v499 = vld [vmem:[%s2 + $0xc8] sm:$0xff]
          %v500 = vld [vmem:[%s2 + $0xd0] sm:$0xff]
          %v501 = vld [vmem:[%s2 + $0xd8] sm:$0xff]
          %v502 = vld [vmem:[%s2 + $0xe0] sm:$0xff]
          %v503 = vld [vmem:[%s2 + $0xe8] sm:$0xff]
          %v504 = vld [vmem:[%s2 + $0xf0] sm:$0xff]
          %v505 = vld [vmem:[%s2 + $0xf8] sm:$0xff]
          %v506 = vld [vmem:[%s2 + $0x100] sm:$0xff]
          %v507 = vld [vmem:[%s2 + $0x108] sm:$0xff]
          %v508 = vld [vmem:[%s2 + $0x110] sm:$0xff]
          %v509 = vld [vmem:[%s2 + $0x118] sm:$0xff]
          %v510 = vld [vmem:[%s2 + $0x120] sm:$0xff]
          %v511 = vld [vmem:[%s2 + $0x128] sm:$0xff]
          %v512 = vld [vmem:[%s2 + $0x130] sm:$0xff]
          %v513 = vld [vmem:[%s2 + $0x138] sm:$0xff]
          %v514 = vld [vmem:[%s2 + $0x140] sm:$0xff]
          %v515 = vld [vmem:[%s2 + $0x148] sm:$0xff]
          %v516 = vld [vmem:[%s2 + $0x150] sm:$0xff]
          %v517 = vld [vmem:[%s2 + $0x158] sm:$0xff]
          %v518 = vld [vmem:[%s2 + $0x160] sm:$0xff]
          %v519 = vld [vmem:[%s2 + $0x168] sm:$0xff]
          %v520 = vld [vmem:[%s2 + $0x170] sm:$0xff]
          %v521 = vld [vmem:[%s2 + $0x178] sm:$0xff]
          %v522 = vld [vmem:[%s2 + $0x180] sm:$0xff]
          %v523 = vld [vmem:[%s2 + $0x188] sm:$0xff]
          %v524 = vld [vmem:[%s2 + $0x190] sm:$0xff]
          %v525 = vld [vmem:[%s2 + $0x198] sm:$0xff]
          %v526 = vld [vmem:[%s2 + $0x1a0] sm:$0xff]
          %v527 = vld [vmem:[%s2 + $0x1a8] sm:$0xff]
          %v528 = vld [vmem:[%s2 + $0x1b0] sm:$0xff]
          %v529 = vld [vmem:[%s2 + $0x1b8] sm:$0xff]
          %v530 = vld [vmem:[%s2 + $0x1c0] sm:$0xff]
          %v531 = vld [vmem:[%s2 + $0x1c8] sm:$0xff]
          %v532 = vld [vmem:[%s2 + $0x1d0] sm:$0xff]
          %v533 = vld [vmem:[%s2 + $0x1d8] sm:$0xff]
          %v534 = vld [vmem:[%s2 + $0x1e0] sm:$0xff]
          %v535 = vld [vmem:[%s2 + $0x1e8] sm:$0xff]
          %v536 = vld [vmem:[%s2 + $0x1f0] sm:$0xff]
          %v537 = vld [vmem:[%s2 + $0x1f8] sm:$0xff]
          %v538 = vld [vmem:[%s5] sm:$0x3]
          %v540 = vlaneseq
          %v541 = vshrl.u32 %v540, 7
          %v542 = vsub.s32 0, %v541
          %v543 = vrot.slane %v538, %v542
          %v544 = vlaneseq
          %v545 = vshrl.u32 %v544, 7
          %v546 = vsub.s32 1, %v545
          %v547 = vrot.slane %v538, %v546
          %550 = vmatprep.subr.mxu0 %v475
          %551 = vmatpush1.msra.mxu0 %v474
          %552 = vmatprep.subr.mxu0 %v477
          %553 = vmatpush1.msra.mxu0 %v476
          %554 = vmatprep.subr.mxu0 %v479
          %555 = vmatpush1.msra.mxu0 %v478
          %556 = vmatprep.subr.mxu0 %v481
          %557 = vmatpush1.msra.mxu0 %v480
          %558 = vmatprep.subr.mxu0 %v483
          %559 = vmatpush1.msra.mxu0 %v482
          %560 = vmatprep.subr.mxu0 %v485
          %561 = vmatpush1.msra.mxu0 %v484
          %562 = vmatprep.subr.mxu0 %v487
          %563 = vmatpush1.msra.mxu0 %v486
          %564 = vmatprep.subr.mxu0 %v489
          %565 = vmatpush1.msra.mxu0 %v488
          %566 = vmatprep.subr.mxu0 %v491
          %567 = vmatpush1.msra.mxu0 %v490
          %568 = vmatprep.subr.mxu0 %v493
          %569 = vmatpush1.msra.mxu0 %v492
          %570 = vmatprep.subr.mxu0 %v495
          %571 = vmatpush1.msra.mxu0 %v494
          %572 = vmatprep.subr.mxu0 %v497
          %573 = vmatpush1.msra.mxu0 %v496
          %574 = vmatprep.subr.mxu0 %v499
          %575 = vmatpush1.msra.mxu0 %v498
          %576 = vmatprep.subr.mxu0 %v501
          %577 = vmatpush1.msra.mxu0 %v500
          %578 = vmatprep.subr.mxu0 %v503
          %579 = vmatpush1.msra.mxu0 %v502
          %580 = vmatprep.subr.mxu0 %v505
          %581 = vmatpush1.msra.mxu0 %v504
          %582 = vmatprep.subr.mxu0 %v507
          %583 = vmatpush1.msra.mxu0 %v506
          %584 = vmatprep.subr.mxu0 %v509
          %585 = vmatpush1.msra.mxu0 %v508
          %586 = vmatprep.subr.mxu0 %v511
          %587 = vmatpush1.msra.mxu0 %v510
          %588 = vmatprep.subr.mxu0 %v513
          %589 = vmatpush1.msra.mxu0 %v512
          %590 = vmatprep.subr.mxu0 %v515
          %591 = vmatpush1.msra.mxu0 %v514
          %592 = vmatprep.subr.mxu0 %v517
          %593 = vmatpush1.msra.mxu0 %v516
          %594 = vmatprep.subr.mxu0 %v519
          %595 = vmatpush1.msra.mxu0 %v518
          %596 = vmatprep.subr.mxu0 %v521
          %597 = vmatpush1.msra.mxu0 %v520
          %598 = vmatprep.subr.mxu0 %v523
          %599 = vmatpush1.msra.mxu0 %v522
          %600 = vmatprep.subr.mxu0 %v525
          %601 = vmatpush1.msra.mxu0 %v524
          %602 = vmatprep.subr.mxu0 %v527
          %603 = vmatpush1.msra.mxu0 %v526
          %604 = vmatprep.subr.mxu0 %v529
          %605 = vmatpush1.msra.mxu0 %v528
          %606 = vmatprep.subr.mxu0 %v531
          %607 = vmatpush1.msra.mxu0 %v530
          %608 = vmatprep.subr.mxu0 %v533
          %609 = vmatpush1.msra.mxu0 %v532
          %610 = vmatprep.subr.mxu0 %v535
          %611 = vmatpush1.msra.mxu0 %v534
          %612 = vmatprep.subr.mxu0 %v537
          %613 = vmatpush1.msra.mxu0 %v536
          %614 = vmatprep.mubr.f32.mxu0 %v443
          %615 = vmatmul.mubr.f32.gmra.mrb[0].mxu0 %v442
          %v616 = vpop.f32.mrb[0].mxu0
          %v617 = vadd.f32 %v543, %v616
          %v618 = vpop.f32.mrb[0].mxu0
          %v619 = vadd.f32 %v547, %v618
          %620 = vmatprep.mubr.f32.mxu0 %v445
          %621 = vmatmul.mubr.f32.gmra.mrb[0].mxu0 %v444
          %v622 = vpop.f32.mrb[0].mxu0
          %v623 = vadd.f32 %v543, %v622
          %v624 = vpop.f32.mrb[0].mxu0
          %v625 = vadd.f32 %v547, %v624
          %626 = vmatprep.mubr.f32.mxu0 %v447
          %627 = vmatmul.mubr.f32.gmra.mrb[0].mxu0 %v446
          %v628 = vpop.f32.mrb[0].mxu0
          %v629 = vadd.f32 %v543, %v628
          %v630 = vpop.f32.mrb[0].mxu0
          %v631 = vadd.f32 %v547, %v630
          %632 = vmatprep.mubr.f32.mxu0 %v449
          %633 = vmatmul.mubr.f32.gmra.mrb[0].mxu0 %v448
          %v634 = vpop.f32.mrb[0].mxu0
          %v635 = vadd.f32 %v543, %v634
          %v636 = vpop.f32.mrb[0].mxu0
          %v637 = vadd.f32 %v547, %v636
          %638 = vmatprep.mubr.f32.mxu0 %v451
          %639 = vmatmul.mubr.f32.gmra.mrb[0].mxu0 %v450
          %v640 = vpop.f32.mrb[0].mxu0
          %v641 = vadd.f32 %v543, %v640
          %v642 = vpop.f32.mrb[0].mxu0
          %v643 = vadd.f32 %v547, %v642
          %644 = vmatprep.mubr.f32.mxu0 %v453
          %645 = vmatmul.mubr.f32.gmra.mrb[0].mxu0 %v452
          %v646 = vpop.f32.mrb[0].mxu0
          %v647 = vadd.f32 %v543, %v646
          %v648 = vpop.f32.mrb[0].mxu0
          %v649 = vadd.f32 %v547, %v648
          %650 = vmatprep.mubr.f32.mxu0 %v455
          %651 = vmatmul.mubr.f32.gmra.mrb[0].mxu0 %v454
          %v652 = vpop.f32.mrb[0].mxu0
          %v653 = vadd.f32 %v543, %v652
          %v654 = vpop.f32.mrb[0].mxu0
          %v655 = vadd.f32 %v547, %v654
          %656 = vmatprep.mubr.f32.mxu0 %v457
          %657 = vmatmul.mubr.f32.gmra.mrb[0].mxu0 %v456
          %v658 = vpop.f32.mrb[0].mxu0
          %v659 = vadd.f32 %v543, %v658
          %v660 = vpop.f32.mrb[0].mxu0
          %v661 = vadd.f32 %v547, %v660
          %662 = vmatprep.mubr.f32.mxu0 %v459
          %663 = vmatmul.mubr.f32.gmra.mrb[0].mxu0 %v458
          %v664 = vpop.f32.mrb[0].mxu0
          %v665 = vadd.f32 %v543, %v664
          %v666 = vpop.f32.mrb[0].mxu0
          %v667 = vadd.f32 %v547, %v666
          %668 = vmatprep.mubr.f32.mxu0 %v461
          %669 = vmatmul.mubr.f32.gmra.mrb[0].mxu0 %v460
          %v670 = vpop.f32.mrb[0].mxu0
          %v671 = vadd.f32 %v543, %v670
          %v672 = vpop.f32.mrb[0].mxu0
          %v673 = vadd.f32 %v547, %v672
          %674 = vmatprep.mubr.f32.mxu0 %v463
          %675 = vmatmul.mubr.f32.gmra.mrb[0].mxu0 %v462
          %v676 = vpop.f32.mrb[0].mxu0
          %v677 = vadd.f32 %v543, %v676
          %v678 = vpop.f32.mrb[0].mxu0
          %v679 = vadd.f32 %v547, %v678
          %680 = vmatprep.mubr.f32.mxu0 %v465
          %681 = vmatmul.mubr.f32.gmra.mrb[0].mxu0 %v464
          %v682 = vpop.f32.mrb[0].mxu0
          %v683 = vadd.f32 %v543, %v682
          %v684 = vpop.f32.mrb[0].mxu0
          %v685 = vadd.f32 %v547, %v684
          %686 = vmatprep.mubr.f32.mxu0 %v467
          %687 = vmatmul.mubr.f32.gmra.mrb[0].mxu0 %v466
          %v688 = vpop.f32.mrb[0].mxu0
          %v689 = vadd.f32 %v543, %v688
          %v690 = vpop.f32.mrb[0].mxu0
          %v691 = vadd.f32 %v547, %v690
          %692 = vmatprep.mubr.f32.mxu0 %v469
          %693 = vmatmul.mubr.f32.gmra.mrb[0].mxu0 %v468
          %v694 = vpop.f32.mrb[0].mxu0
          %v695 = vadd.f32 %v543, %v694
          %v696 = vpop.f32.mrb[0].mxu0
          %v697 = vadd.f32 %v547, %v696
          %698 = vmatprep.mubr.f32.mxu0 %v471
          %699 = vmatmul.mubr.f32.gmra.mrb[0].mxu0 %v470
          %v700 = vpop.f32.mrb[0].mxu0
          %v701 = vadd.f32 %v543, %v700
          %v702 = vpop.f32.mrb[0].mxu0
          %v703 = vadd.f32 %v547, %v702
          %704 = vmatprep.mubr.f32.mxu0 %v473
          %705 = vmatmul.mubr.f32.gmra.mrb[0].mxu0 %v472
          %v706 = vpop.f32.mrb[0].mxu0
          %v707 = vadd.f32 %v543, %v706
          %v708 = vpop.f32.mrb[0].mxu0
          %v709 = vadd.f32 %v547, %v708
          %710 = vdwg.mxu0
          %v711 = vmul.f32 %v617, 0.08838827
          %v712 = vmul.f32 %v619, 0.08838827
          %v713 = vmul.f32 %v623, 0.08838827
          %v714 = vmul.f32 %v625, 0.08838827
          %v715 = vmul.f32 %v629, 0.08838827
          %v716 = vmul.f32 %v631, 0.08838827
          %v717 = vmul.f32 %v635, 0.08838827
          %v718 = vmul.f32 %v637, 0.08838827
          %v719 = vmul.f32 %v641, 0.08838827
          %v720 = vmul.f32 %v643, 0.08838827
          %v721 = vmul.f32 %v647, 0.08838827
          %v722 = vmul.f32 %v649, 0.08838827
          %v723 = vmul.f32 %v653, 0.08838827
          %v724 = vmul.f32 %v655, 0.08838827
          %v725 = vmul.f32 %v659, 0.08838827
          %v726 = vmul.f32 %v661, 0.08838827
          %v727 = vmul.f32 %v665, 0.08838827
          %v728 = vmul.f32 %v667, 0.08838827
          %v729 = vmul.f32 %v671, 0.08838827
          %v730 = vmul.f32 %v673, 0.08838827
          %v731 = vmul.f32 %v677, 0.08838827
          %v732 = vmul.f32 %v679, 0.08838827
          %v733 = vmul.f32 %v683, 0.08838827
          %v734 = vmul.f32 %v685, 0.08838827
          %v735 = vmul.f32 %v689, 0.08838827
          %v736 = vmul.f32 %v691, 0.08838827
          %v737 = vmul.f32 %v695, 0.08838827
          %v738 = vmul.f32 %v697, 0.08838827
          %v739 = vmul.f32 %v701, 0.08838827
          %v740 = vmul.f32 %v703, 0.08838827
          %v741 = vmul.f32 %v707, 0.08838827
          %v742 = vmul.f32 %v709, 0.08838827
          %743 = vst [vmem:[#allocation2] sm:$0xff] %v711
          %744 = vst [vmem:[#allocation2 + $0x8] sm:$0xff] %v712
          %745 = vst [vmem:[#allocation2 + $0x10] sm:$0xff] %v713
          %746 = vst [vmem:[#allocation2 + $0x18] sm:$0xff] %v714
          %747 = vst [vmem:[#allocation2 + $0x20] sm:$0xff] %v715
          %748 = vst [vmem:[#allocation2 + $0x28] sm:$0xff] %v716
          %749 = vst [vmem:[#allocation2 + $0x30] sm:$0xff] %v717
          %750 = vst [vmem:[#allocation2 + $0x38] sm:$0xff] %v718
          %751 = vst [vmem:[#allocation2 + $0x40] sm:$0xff] %v719
          %752 = vst [vmem:[#allocation2 + $0x48] sm:$0xff] %v720
          %753 = vst [vmem:[#allocation2 + $0x50] sm:$0xff] %v721
          %754 = vst [vmem:[#allocation2 + $0x58] sm:$0xff] %v722
          %755 = vst [vmem:[#allocation2 + $0x60] sm:$0xff] %v723
          %756 = vst [vmem:[#allocation2 + $0x68] sm:$0xff] %v724
          %757 = vst [vmem:[#allocation2 + $0x70] sm:$0xff] %v725
          %758 = vst [vmem:[#allocation2 + $0x78] sm:$0xff] %v726
          %759 = vst [vmem:[#allocation2 + $0x80] sm:$0xff] %v727
          %760 = vst [vmem:[#allocation2 + $0x88] sm:$0xff] %v728
          %761 = vst [vmem:[#allocation2 + $0x90] sm:$0xff] %v729
          %762 = vst [vmem:[#allocation2 + $0x98] sm:$0xff] %v730
          %763 = vst [vmem:[#allocation2 + $0xa0] sm:$0xff] %v731
          %764 = vst [vmem:[#allocation2 + $0xa8] sm:$0xff] %v732
          %765 = vst [vmem:[#allocation2 + $0xb0] sm:$0xff] %v733
          %766 = vst [vmem:[#allocation2 + $0xb8] sm:$0xff] %v734
          %767 = vst [vmem:[#allocation2 + $0xc0] sm:$0xff] %v735
          %768 = vst [vmem:[#allocation2 + $0xc8] sm:$0xff] %v736
          %769 = vst [vmem:[#allocation2 + $0xd0] sm:$0xff] %v737
          %770 = vst [vmem:[#allocation2 + $0xd8] sm:$0xff] %v738
          %771 = vst [vmem:[#allocation2 + $0xe0] sm:$0xff] %v739
          %772 = vst [vmem:[#allocation2 + $0xe8] sm:$0xff] %v740
          %773 = vst [vmem:[#allocation2 + $0xf0] sm:$0xff] %v741
          %774 = vst [vmem:[#allocation2 + $0xf8] sm:$0xff] %v742
          %vm775 = vcmask 7168
          %776 = vst.msk [vmem:[#allocation3] sm:$0xff] %vm775, -1e+30
          %777 = vst.msk [vmem:[#allocation3 + $0x8] sm:$0xff] %vm775, -1e+30
          %778 = vst.msk [vmem:[#allocation3 + $0x10] sm:$0xff] %vm775, -1e+30
          %779 = vst.msk [vmem:[#allocation3 + $0x18] sm:$0xff] %vm775, -1e+30
          %780 = vst.msk [vmem:[#allocation3 + $0x20] sm:$0xff] %vm775, -1e+30
          %781 = vst.msk [vmem:[#allocation3 + $0x28] sm:$0xff] %vm775, -1e+30
          %782 = vst.msk [vmem:[#allocation3 + $0x30] sm:$0xff] %vm775, -1e+30
          %783 = vst.msk [vmem:[#allocation3 + $0x38] sm:$0xff] %vm775, -1e+30
          %784 = vst.msk [vmem:[#allocation3 + $0x40] sm:$0xff] %vm775, -1e+30
          %785 = vst.msk [vmem:[#allocation3 + $0x48] sm:$0xff] %vm775, -1e+30
          %786 = vst.msk [vmem:[#allocation3 + $0x50] sm:$0xff] %vm775, -1e+30
          %787 = vst.msk [vmem:[#allocation3 + $0x58] sm:$0xff] %vm775, -1e+30
          %788 = vst.msk [vmem:[#allocation3 + $0x60] sm:$0xff] %vm775, -1e+30
          %789 = vst.msk [vmem:[#allocation3 + $0x68] sm:$0xff] %vm775, -1e+30
          %790 = vst.msk [vmem:[#allocation3 + $0x70] sm:$0xff] %vm775, -1e+30
          %791 = vst.msk [vmem:[#allocation3 + $0x78] sm:$0xff] %vm775, -1e+30
          %792 = vst.msk [vmem:[#allocation3 + $0x80] sm:$0xff] %vm775, -1e+30
          %793 = vst.msk [vmem:[#allocation3 + $0x88] sm:$0xff] %vm775, -1e+30
          %794 = vst.msk [vmem:[#allocation3 + $0x90] sm:$0xff] %vm775, -1e+30
          %795 = vst.msk [vmem:[#allocation3 + $0x98] sm:$0xff] %vm775, -1e+30
          %796 = vst.msk [vmem:[#allocation3 + $0xa0] sm:$0xff] %vm775, -1e+30
          %797 = vst.msk [vmem:[#allocation3 + $0xa8] sm:$0xff] %vm775, -1e+30
          %798 = vst.msk [vmem:[#allocation3 + $0xb0] sm:$0xff] %vm775, -1e+30
          %799 = vst.msk [vmem:[#allocation3 + $0xb8] sm:$0xff] %vm775, -1e+30
          %800 = vst.msk [vmem:[#allocation3 + $0xc0] sm:$0xff] %vm775, -1e+30
          %801 = vst.msk [vmem:[#allocation3 + $0xc8] sm:$0xff] %vm775, -1e+30
          %802 = vst.msk [vmem:[#allocation3 + $0xd0] sm:$0xff] %vm775, -1e+30
          %803 = vst.msk [vmem:[#allocation3 + $0xd8] sm:$0xff] %vm775, -1e+30
          %804 = vst.msk [vmem:[#allocation3 + $0xe0] sm:$0xff] %vm775, -1e+30
          %805 = vst.msk [vmem:[#allocation3 + $0xe8] sm:$0xff] %vm775, -1e+30
          %806 = vst.msk [vmem:[#allocation3 + $0xf0] sm:$0xff] %vm775, -1e+30
          %807 = vst.msk [vmem:[#allocation3 + $0xf8] sm:$0xff] %vm775, -1e+30
          %808 = vst.msk [vmem:[#allocation4] sm:$0xff] %vm775, 0.0
          %809 = vst.msk [vmem:[#allocation4 + $0x8] sm:$0xff] %vm775, 0.0
          %810 = vst.msk [vmem:[#allocation4 + $0x10] sm:$0xff] %vm775, 0.0
          %811 = vst.msk [vmem:[#allocation4 + $0x18] sm:$0xff] %vm775, 0.0
          %812 = vst.msk [vmem:[#allocation4 + $0x20] sm:$0xff] %vm775, 0.0
          %813 = vst.msk [vmem:[#allocation4 + $0x28] sm:$0xff] %vm775, 0.0
          %814 = vst.msk [vmem:[#allocation4 + $0x30] sm:$0xff] %vm775, 0.0
          %815 = vst.msk [vmem:[#allocation4 + $0x38] sm:$0xff] %vm775, 0.0
          %816 = vst.msk [vmem:[#allocation4 + $0x40] sm:$0xff] %vm775, 0.0
          %817 = vst.msk [vmem:[#allocation4 + $0x48] sm:$0xff] %vm775, 0.0
          %818 = vst.msk [vmem:[#allocation4 + $0x50] sm:$0xff] %vm775, 0.0
          %819 = vst.msk [vmem:[#allocation4 + $0x58] sm:$0xff] %vm775, 0.0
          %820 = vst.msk [vmem:[#allocation4 + $0x60] sm:$0xff] %vm775, 0.0
          %821 = vst.msk [vmem:[#allocation4 + $0x68] sm:$0xff] %vm775, 0.0
          %822 = vst.msk [vmem:[#allocation4 + $0x70] sm:$0xff] %vm775, 0.0
          %823 = vst.msk [vmem:[#allocation4 + $0x78] sm:$0xff] %vm775, 0.0
          %824 = vst.msk [vmem:[#allocation4 + $0x80] sm:$0xff] %vm775, 0.0
          %825 = vst.msk [vmem:[#allocation4 + $0x88] sm:$0xff] %vm775, 0.0
          %826 = vst.msk [vmem:[#allocation4 + $0x90] sm:$0xff] %vm775, 0.0
          %827 = vst.msk [vmem:[#allocation4 + $0x98] sm:$0xff] %vm775, 0.0
          %828 = vst.msk [vmem:[#allocation4 + $0xa0] sm:$0xff] %vm775, 0.0
          %829 = vst.msk [vmem:[#allocation4 + $0xa8] sm:$0xff] %vm775, 0.0
          %830 = vst.msk [vmem:[#allocation4 + $0xb0] sm:$0xff] %vm775, 0.0
          %831 = vst.msk [vmem:[#allocation4 + $0xb8] sm:$0xff] %vm775, 0.0
          %832 = vst.msk [vmem:[#allocation4 + $0xc0] sm:$0xff] %vm775, 0.0
          %833 = vst.msk [vmem:[#allocation4 + $0xc8] sm:$0xff] %vm775, 0.0
          %834 = vst.msk [vmem:[#allocation4 + $0xd0] sm:$0xff] %vm775, 0.0
          %835 = vst.msk [vmem:[#allocation4 + $0xd8] sm:$0xff] %vm775, 0.0
          %836 = vst.msk [vmem:[#allocation4 + $0xe0] sm:$0xff] %vm775, 0.0
          %837 = vst.msk [vmem:[#allocation4 + $0xe8] sm:$0xff] %vm775, 0.0
          %838 = vst.msk [vmem:[#allocation4 + $0xf0] sm:$0xff] %vm775, 0.0
          %839 = vst.msk [vmem:[#allocation4 + $0xf8] sm:$0xff] %vm775, 0.0
          %840 = vst [vmem:[#allocation5] sm:$0xff] 0.0
          %841 = vst [vmem:[#allocation5 + $0x8] sm:$0xff] 0.0
          %842 = vst [vmem:[#allocation5 + $0x10] sm:$0xff] 0.0
          %843 = vst [vmem:[#allocation5 + $0x18] sm:$0xff] 0.0
          %844 = vst [vmem:[#allocation5 + $0x20] sm:$0xff] 0.0
          %845 = vst [vmem:[#allocation5 + $0x28] sm:$0xff] 0.0
          %846 = vst [vmem:[#allocation5 + $0x30] sm:$0xff] 0.0
          %847 = vst [vmem:[#allocation5 + $0x38] sm:$0xff] 0.0
          %848 = vst [vmem:[#allocation5 + $0x40] sm:$0xff] 0.0
          %849 = vst [vmem:[#allocation5 + $0x48] sm:$0xff] 0.0
          %850 = vst [vmem:[#allocation5 + $0x50] sm:$0xff] 0.0
          %851 = vst [vmem:[#allocation5 + $0x58] sm:$0xff] 0.0
          %852 = vst [vmem:[#allocation5 + $0x60] sm:$0xff] 0.0
          %853 = vst [vmem:[#allocation5 + $0x68] sm:$0xff] 0.0
          %854 = vst [vmem:[#allocation5 + $0x70] sm:$0xff] 0.0
          %855 = vst [vmem:[#allocation5 + $0x78] sm:$0xff] 0.0
          %856 = vst [vmem:[#allocation5 + $0x80] sm:$0xff] 0.0
          %857 = vst [vmem:[#allocation5 + $0x88] sm:$0xff] 0.0
          %858 = vst [vmem:[#allocation5 + $0x90] sm:$0xff] 0.0
          %859 = vst [vmem:[#allocation5 + $0x98] sm:$0xff] 0.0
          %860 = vst [vmem:[#allocation5 + $0xa0] sm:$0xff] 0.0
          %861 = vst [vmem:[#allocation5 + $0xa8] sm:$0xff] 0.0
          %862 = vst [vmem:[#allocation5 + $0xb0] sm:$0xff] 0.0
          %863 = vst [vmem:[#allocation5 + $0xb8] sm:$0xff] 0.0
          %864 = vst [vmem:[#allocation5 + $0xc0] sm:$0xff] 0.0
          %865 = vst [vmem:[#allocation5 + $0xc8] sm:$0xff] 0.0
          %866 = vst [vmem:[#allocation5 + $0xd0] sm:$0xff] 0.0
          %867 = vst [vmem:[#allocation5 + $0xd8] sm:$0xff] 0.0
          %868 = vst [vmem:[#allocation5 + $0xe0] sm:$0xff] 0.0
          %869 = vst [vmem:[#allocation5 + $0xe8] sm:$0xff] 0.0
          %870 = vst [vmem:[#allocation5 + $0xf0] sm:$0xff] 0.0
          %871 = vst [vmem:[#allocation5 + $0xf8] sm:$0xff] 0.0
        $region64: #{mhsa_forward.1} parent=59 // pred_fallthru
          _
        %p872 = scmp.le.s32.totalorder %s31, %s30
        // Predicated region
        $region65: #{mhsa_forward.1} parent=59 // pred_check
          %p873 = pneg %p872
        $region66: #{mhsa_forward.1} parent=59 // pred_check_branch
          %875 = sbr.rel (%p873) target = $region68
        $region67: #{mhsa_forward.1} parent=59 // pred_region
          %v876 = vld [vmem:[%s435] sm:$0xff]
          %v877 = vld [vmem:[%s435 + $0x8] sm:$0xff]
          %v878 = vld [vmem:[%s435 + $0x10] sm:$0xff]
          %v879 = vld [vmem:[%s435 + $0x18] sm:$0xff]
          %v880 = vld [vmem:[%s435 + $0x20] sm:$0xff]
          %v881 = vld [vmem:[%s435 + $0x28] sm:$0xff]
          %v882 = vld [vmem:[%s435 + $0x30] sm:$0xff]
          %v883 = vld [vmem:[%s435 + $0x38] sm:$0xff]
          %v884 = vld [vmem:[%s435 + $0x40] sm:$0xff]
          %v885 = vld [vmem:[%s435 + $0x48] sm:$0xff]
          %v886 = vld [vmem:[%s435 + $0x50] sm:$0xff]
          %v887 = vld [vmem:[%s435 + $0x58] sm:$0xff]
          %v888 = vld [vmem:[%s435 + $0x60] sm:$0xff]
          %v889 = vld [vmem:[%s435 + $0x68] sm:$0xff]
          %v890 = vld [vmem:[%s435 + $0x70] sm:$0xff]
          %v891 = vld [vmem:[%s435 + $0x78] sm:$0xff]
          %v892 = vld [vmem:[%s435 + $0x80] sm:$0xff]
          %v893 = vld [vmem:[%s435 + $0x88] sm:$0xff]
          %v894 = vld [vmem:[%s435 + $0x90] sm:$0xff]
          %v895 = vld [vmem:[%s435 + $0x98] sm:$0xff]
          %v896 = vld [vmem:[%s435 + $0xa0] sm:$0xff]
          %v897 = vld [vmem:[%s435 + $0xa8] sm:$0xff]
          %v898 = vld [vmem:[%s435 + $0xb0] sm:$0xff]
          %v899 = vld [vmem:[%s435 + $0xb8] sm:$0xff]
          %v900 = vld [vmem:[%s435 + $0xc0] sm:$0xff]
          %v901 = vld [vmem:[%s435 + $0xc8] sm:$0xff]
          %v902 = vld [vmem:[%s435 + $0xd0] sm:$0xff]
          %v903 = vld [vmem:[%s435 + $0xd8] sm:$0xff]
          %v904 = vld [vmem:[%s435 + $0xe0] sm:$0xff]
          %v905 = vld [vmem:[%s435 + $0xe8] sm:$0xff]
          %v906 = vld [vmem:[%s435 + $0xf0] sm:$0xff]
          %v907 = vld [vmem:[%s435 + $0xf8] sm:$0xff]
          %v908 = vld [vmem:[%s3] sm:$0xff]
          %v909 = vld [vmem:[%s3 + $0x8] sm:$0xff]
          %v910 = vld [vmem:[%s3 + $0x10] sm:$0xff]
          %v911 = vld [vmem:[%s3 + $0x18] sm:$0xff]
          %v912 = vld [vmem:[%s3 + $0x20] sm:$0xff]
          %v913 = vld [vmem:[%s3 + $0x28] sm:$0xff]
          %v914 = vld [vmem:[%s3 + $0x30] sm:$0xff]
          %v915 = vld [vmem:[%s3 + $0x38] sm:$0xff]
          %v916 = vld [vmem:[%s3 + $0x40] sm:$0xff]
          %v917 = vld [vmem:[%s3 + $0x48] sm:$0xff]
          %v918 = vld [vmem:[%s3 + $0x50] sm:$0xff]
          %v919 = vld [vmem:[%s3 + $0x58] sm:$0xff]
          %v920 = vld [vmem:[%s3 + $0x60] sm:$0xff]
          %v921 = vld [vmem:[%s3 + $0x68] sm:$0xff]
          %v922 = vld [vmem:[%s3 + $0x70] sm:$0xff]
          %v923 = vld [vmem:[%s3 + $0x78] sm:$0xff]
          %v924 = vld [vmem:[%s3 + $0x80] sm:$0xff]
          %v925 = vld [vmem:[%s3 + $0x88] sm:$0xff]
          %v926 = vld [vmem:[%s3 + $0x90] sm:$0xff]
          %v927 = vld [vmem:[%s3 + $0x98] sm:$0xff]
          %v928 = vld [vmem:[%s3 + $0xa0] sm:$0xff]
          %v929 = vld [vmem:[%s3 + $0xa8] sm:$0xff]
          %v930 = vld [vmem:[%s3 + $0xb0] sm:$0xff]
          %v931 = vld [vmem:[%s3 + $0xb8] sm:$0xff]
          %v932 = vld [vmem:[%s3 + $0xc0] sm:$0xff]
          %v933 = vld [vmem:[%s3 + $0xc8] sm:$0xff]
          %v934 = vld [vmem:[%s3 + $0xd0] sm:$0xff]
          %v935 = vld [vmem:[%s3 + $0xd8] sm:$0xff]
          %v936 = vld [vmem:[%s3 + $0xe0] sm:$0xff]
          %v937 = vld [vmem:[%s3 + $0xe8] sm:$0xff]
          %v938 = vld [vmem:[%s3 + $0xf0] sm:$0xff]
          %v939 = vld [vmem:[%s3 + $0xf8] sm:$0xff]
          %v940 = vld [vmem:[%s3 + $0x100] sm:$0xff]
          %v941 = vld [vmem:[%s3 + $0x108] sm:$0xff]
          %v942 = vld [vmem:[%s3 + $0x110] sm:$0xff]
          %v943 = vld [vmem:[%s3 + $0x118] sm:$0xff]
          %v944 = vld [vmem:[%s3 + $0x120] sm:$0xff]
          %v945 = vld [vmem:[%s3 + $0x128] sm:$0xff]
          %v946 = vld [vmem:[%s3 + $0x130] sm:$0xff]
          %v947 = vld [vmem:[%s3 + $0x138] sm:$0xff]
          %v948 = vld [vmem:[%s3 + $0x140] sm:$0xff]
          %v949 = vld [vmem:[%s3 + $0x148] sm:$0xff]
          %v950 = vld [vmem:[%s3 + $0x150] sm:$0xff]
          %v951 = vld [vmem:[%s3 + $0x158] sm:$0xff]
          %v952 = vld [vmem:[%s3 + $0x160] sm:$0xff]
          %v953 = vld [vmem:[%s3 + $0x168] sm:$0xff]
          %v954 = vld [vmem:[%s3 + $0x170] sm:$0xff]
          %v955 = vld [vmem:[%s3 + $0x178] sm:$0xff]
          %v956 = vld [vmem:[%s3 + $0x180] sm:$0xff]
          %v957 = vld [vmem:[%s3 + $0x188] sm:$0xff]
          %v958 = vld [vmem:[%s3 + $0x190] sm:$0xff]
          %v959 = vld [vmem:[%s3 + $0x198] sm:$0xff]
          %v960 = vld [vmem:[%s3 + $0x1a0] sm:$0xff]
          %v961 = vld [vmem:[%s3 + $0x1a8] sm:$0xff]
          %v962 = vld [vmem:[%s3 + $0x1b0] sm:$0xff]
          %v963 = vld [vmem:[%s3 + $0x1b8] sm:$0xff]
          %v964 = vld [vmem:[%s3 + $0x1c0] sm:$0xff]
          %v965 = vld [vmem:[%s3 + $0x1c8] sm:$0xff]
          %v966 = vld [vmem:[%s3 + $0x1d0] sm:$0xff]
          %v967 = vld [vmem:[%s3 + $0x1d8] sm:$0xff]
          %v968 = vld [vmem:[%s3 + $0x1e0] sm:$0xff]
          %v969 = vld [vmem:[%s3 + $0x1e8] sm:$0xff]
          %v970 = vld [vmem:[%s3 + $0x1f0] sm:$0xff]
          %v971 = vld [vmem:[%s3 + $0x1f8] sm:$0xff]
          %v972 = vld [vmem:[%s6] sm:$0x3]
          %v974 = vlaneseq
          %v975 = vshrl.u32 %v974, 7
          %v976 = vsub.s32 0, %v975
          %v977 = vrot.slane %v972, %v976
          %v978 = vlaneseq
          %v979 = vshrl.u32 %v978, 7
          %v980 = vsub.s32 1, %v979
          %v981 = vrot.slane %v972, %v980
          %984 = vmatprep.subr.mxu0 %v909
          %985 = vmatpush1.msra.mxu0 %v908
          %986 = vmatprep.subr.mxu0 %v911
          %987 = vmatpush1.msra.mxu0 %v910
          %988 = vmatprep.subr.mxu0 %v913
          %989 = vmatpush1.msra.mxu0 %v912
          %990 = vmatprep.subr.mxu0 %v915
          %991 = vmatpush1.msra.mxu0 %v914
          %992 = vmatprep.subr.mxu0 %v917
          %993 = vmatpush1.msra.mxu0 %v916
          %994 = vmatprep.subr.mxu0 %v919
          %995 = vmatpush1.msra.mxu0 %v918
          %996 = vmatprep.subr.mxu0 %v921
          %997 = vmatpush1.msra.mxu0 %v920
          %998 = vmatprep.subr.mxu0 %v923
          %999 = vmatpush1.msra.mxu0 %v922
          %1000 = vmatprep.subr.mxu0 %v925
          %1001 = vmatpush1.msra.mxu0 %v924
          %1002 = vmatprep.subr.mxu0 %v927
          %1003 = vmatpush1.msra.mxu0 %v926
          %1004 = vmatprep.subr.mxu0 %v929
          %1005 = vmatpush1.msra.mxu0 %v928
          %1006 = vmatprep.subr.mxu0 %v931
          %1007 = vmatpush1.msra.mxu0 %v930
          %1008 = vmatprep.subr.mxu0 %v933
          %1009 = vmatpush1.msra.mxu0 %v932
          %1010 = vmatprep.subr.mxu0 %v935
          %1011 = vmatpush1.msra.mxu0 %v934
          %1012 = vmatprep.subr.mxu0 %v937
          %1013 = vmatpush1.msra.mxu0 %v936
          %1014 = vmatprep.subr.mxu0 %v939
          %1015 = vmatpush1.msra.mxu0 %v938
          %1016 = vmatprep.subr.mxu0 %v941
          %1017 = vmatpush1.msra.mxu0 %v940
          %1018 = vmatprep.subr.mxu0 %v943
          %1019 = vmatpush1.msra.mxu0 %v942
          %1020 = vmatprep.subr.mxu0 %v945
          %1021 = vmatpush1.msra.mxu0 %v944
          %1022 = vmatprep.subr.mxu0 %v947
          %1023 = vmatpush1.msra.mxu0 %v946
          %1024 = vmatprep.subr.mxu0 %v949
          %1025 = vmatpush1.msra.mxu0 %v948
          %1026 = vmatprep.subr.mxu0 %v951
          %1027 = vmatpush1.msra.mxu0 %v950
          %1028 = vmatprep.subr.mxu0 %v953
          %1029 = vmatpush1.msra.mxu0 %v952
          %1030 = vmatprep.subr.mxu0 %v955
          %1031 = vmatpush1.msra.mxu0 %v954
          %1032 = vmatprep.subr.mxu0 %v957
          %1033 = vmatpush1.msra.mxu0 %v956
          %1034 = vmatprep.subr.mxu0 %v959
          %1035 = vmatpush1.msra.mxu0 %v958
          %1036 = vmatprep.subr.mxu0 %v961
          %1037 = vmatpush1.msra.mxu0 %v960
          %1038 = vmatprep.subr.mxu0 %v963
          %1039 = vmatpush1.msra.mxu0 %v962
          %1040 = vmatprep.subr.mxu0 %v965
          %1041 = vmatpush1.msra.mxu0 %v964
          %1042 = vmatprep.subr.mxu0 %v967
          %1043 = vmatpush1.msra.mxu0 %v966
          %1044 = vmatprep.subr.mxu0 %v969
          %1045 = vmatpush1.msra.mxu0 %v968
          %1046 = vmatprep.subr.mxu0 %v971
          %1047 = vmatpush1.msra.mxu0 %v970
          %1048 = vmatprep.mubr.f32.mxu0 %v877
          %1049 = vmatmul.mubr.f32.gmra.mrb[0].mxu0 %v876
          %v1050 = vpop.f32.mrb[0].mxu0
          %v1051 = vadd.f32 %v977, %v1050
          %v1052 = vpop.f32.mrb[0].mxu0
          %v1053 = vadd.f32 %v981, %v1052
          %1054 = vmatprep.mubr.f32.mxu0 %v879
          %1055 = vmatmul.mubr.f32.gmra.mrb[0].mxu0 %v878
          %v1056 = vpop.f32.mrb[0].mxu0
          %v1057 = vadd.f32 %v977, %v1056
          %v1058 = vpop.f32.mrb[0].mxu0
          %v1059 = vadd.f32 %v981, %v1058
          %1060 = vmatprep.mubr.f32.mxu0 %v881
          %1061 = vmatmul.mubr.f32.gmra.mrb[0].mxu0 %v880
          %v1062 = vpop.f32.mrb[0].mxu0
          %v1063 = vadd.f32 %v977, %v1062
          %v1064 = vpop.f32.mrb[0].mxu0
          %v1065 = vadd.f32 %v981, %v1064
          %1066 = vmatprep.mubr.f32.mxu0 %v883
          %1067 = vmatmul.mubr.f32.gmra.mrb[0].mxu0 %v882
          %v1068 = vpop.f32.mrb[0].mxu0
          %v1069 = vadd.f32 %v977, %v1068
          %v1070 = vpop.f32.mrb[0].mxu0
          %v1071 = vadd.f32 %v981, %v1070
          %1072 = vmatprep.mubr.f32.mxu0 %v885
          %1073 = vmatmul.mubr.f32.gmra.mrb[0].mxu0 %v884
          %v1074 = vpop.f32.mrb[0].mxu0
          %v1075 = vadd.f32 %v977, %v1074
          %v1076 = vpop.f32.mrb[0].mxu0
          %v1077 = vadd.f32 %v981, %v1076
          %1078 = vmatprep.mubr.f32.mxu0 %v887
          %1079 = vmatmul.mubr.f32.gmra.mrb[0].mxu0 %v886
          %v1080 = vpop.f32.mrb[0].mxu0
          %v1081 = vadd.f32 %v977, %v1080
          %v1082 = vpop.f32.mrb[0].mxu0
          %v1083 = vadd.f32 %v981, %v1082
          %1084 = vmatprep.mubr.f32.mxu0 %v889
          %1085 = vmatmul.mubr.f32.gmra.mrb[0].mxu0 %v888
          %v1086 = vpop.f32.mrb[0].mxu0
          %v1087 = vadd.f32 %v977, %v1086
          %v1088 = vpop.f32.mrb[0].mxu0
          %v1089 = vadd.f32 %v981, %v1088
          %1090 = vmatprep.mubr.f32.mxu0 %v891
          %1091 = vmatmul.mubr.f32.gmra.mrb[0].mxu0 %v890
          %v1092 = vpop.f32.mrb[0].mxu0
          %v1093 = vadd.f32 %v977, %v1092
          %v1094 = vpop.f32.mrb[0].mxu0
          %v1095 = vadd.f32 %v981, %v1094
          %1096 = vmatprep.mubr.f32.mxu0 %v893
          %1097 = vmatmul.mubr.f32.gmra.mrb[0].mxu0 %v892
          %v1098 = vpop.f32.mrb[0].mxu0
          %v1099 = vadd.f32 %v977, %v1098
          %v1100 = vpop.f32.mrb[0].mxu0
          %v1101 = vadd.f32 %v981, %v1100
          %1102 = vmatprep.mubr.f32.mxu0 %v895
          %1103 = vmatmul.mubr.f32.gmra.mrb[0].mxu0 %v894
          %v1104 = vpop.f32.mrb[0].mxu0
          %v1105 = vadd.f32 %v977, %v1104
          %v1106 = vpop.f32.mrb[0].mxu0
          %v1107 = vadd.f32 %v981, %v1106
          %1108 = vmatprep.mubr.f32.mxu0 %v897
          %1109 = vmatmul.mubr.f32.gmra.mrb[0].mxu0 %v896
          %v1110 = vpop.f32.mrb[0].mxu0
          %v1111 = vadd.f32 %v977, %v1110
          %v1112 = vpop.f32.mrb[0].mxu0
          %v1113 = vadd.f32 %v981, %v1112
          %1114 = vmatprep.mubr.f32.mxu0 %v899
          %1115 = vmatmul.mubr.f32.gmra.mrb[0].mxu0 %v898
          %v1116 = vpop.f32.mrb[0].mxu0
          %v1117 = vadd.f32 %v977, %v1116
          %v1118 = vpop.f32.mrb[0].mxu0
          %v1119 = vadd.f32 %v981, %v1118
          %1120 = vmatprep.mubr.f32.mxu0 %v901
          %1121 = vmatmul.mubr.f32.gmra.mrb[0].mxu0 %v900
          %v1122 = vpop.f32.mrb[0].mxu0
          %v1123 = vadd.f32 %v977, %v1122
          %v1124 = vpop.f32.mrb[0].mxu0
          %v1125 = vadd.f32 %v981, %v1124
          %1126 = vmatprep.mubr.f32.mxu0 %v903
          %1127 = vmatmul.mubr.f32.gmra.mrb[0].mxu0 %v902
          %v1128 = vpop.f32.mrb[0].mxu0
          %v1129 = vadd.f32 %v977, %v1128
          %v1130 = vpop.f32.mrb[0].mxu0
          %v1131 = vadd.f32 %v981, %v1130
          %1132 = vmatprep.mubr.f32.mxu0 %v905
          %1133 = vmatmul.mubr.f32.gmra.mrb[0].mxu0 %v904
          %v1134 = vpop.f32.mrb[0].mxu0
          %v1135 = vadd.f32 %v977, %v1134
          %v1136 = vpop.f32.mrb[0].mxu0
          %v1137 = vadd.f32 %v981, %v1136
          %1138 = vmatprep.mubr.f32.mxu0 %v907
          %1139 = vmatmul.mubr.f32.gmra.mrb[0].mxu0 %v906
          %v1140 = vpop.f32.mrb[0].mxu0
          %v1141 = vadd.f32 %v977, %v1140
          %v1142 = vpop.f32.mrb[0].mxu0
          %v1143 = vadd.f32 %v981, %v1142
          %1144 = vdwg.mxu0
          %v1145 = vld [vmem:[%s4] sm:$0xff]
          %v1146 = vld [vmem:[%s4 + $0x8] sm:$0xff]
          %v1147 = vld [vmem:[%s4 + $0x10] sm:$0xff]
          %v1148 = vld [vmem:[%s4 + $0x18] sm:$0xff]
          %v1149 = vld [vmem:[%s4 + $0x20] sm:$0xff]
          %v1150 = vld [vmem:[%s4 + $0x28] sm:$0xff]
          %v1151 = vld [vmem:[%s4 + $0x30] sm:$0xff]
          %v1152 = vld [vmem:[%s4 + $0x38] sm:$0xff]
          %v1153 = vld [vmem:[%s4 + $0x40] sm:$0xff]
          %v1154 = vld [vmem:[%s4 + $0x48] sm:$0xff]
          %v1155 = vld [vmem:[%s4 + $0x50] sm:$0xff]
          %v1156 = vld [vmem:[%s4 + $0x58] sm:$0xff]
          %v1157 = vld [vmem:[%s4 + $0x60] sm:$0xff]
          %v1158 = vld [vmem:[%s4 + $0x68] sm:$0xff]
          %v1159 = vld [vmem:[%s4 + $0x70] sm:$0xff]
          %v1160 = vld [vmem:[%s4 + $0x78] sm:$0xff]
          %v1161 = vld [vmem:[%s4 + $0x80] sm:$0xff]
          %v1162 = vld [vmem:[%s4 + $0x88] sm:$0xff]
          %v1163 = vld [vmem:[%s4 + $0x90] sm:$0xff]
          %v1164 = vld [vmem:[%s4 + $0x98] sm:$0xff]
          %v1165 = vld [vmem:[%s4 + $0xa0] sm:$0xff]
          %v1166 = vld [vmem:[%s4 + $0xa8] sm:$0xff]
          %v1167 = vld [vmem:[%s4 + $0xb0] sm:$0xff]
          %v1168 = vld [vmem:[%s4 + $0xb8] sm:$0xff]
          %v1169 = vld [vmem:[%s4 + $0xc0] sm:$0xff]
          %v1170 = vld [vmem:[%s4 + $0xc8] sm:$0xff]
          %v1171 = vld [vmem:[%s4 + $0xd0] sm:$0xff]
          %v1172 = vld [vmem:[%s4 + $0xd8] sm:$0xff]
          %v1173 = vld [vmem:[%s4 + $0xe0] sm:$0xff]
          %v1174 = vld [vmem:[%s4 + $0xe8] sm:$0xff]
          %v1175 = vld [vmem:[%s4 + $0xf0] sm:$0xff]
          %v1176 = vld [vmem:[%s4 + $0xf8] sm:$0xff]
          %v1177 = vld [vmem:[%s4 + $0x100] sm:$0xff]
          %v1178 = vld [vmem:[%s4 + $0x108] sm:$0xff]
          %v1179 = vld [vmem:[%s4 + $0x110] sm:$0xff]
          %v1180 = vld [vmem:[%s4 + $0x118] sm:$0xff]
          %v1181 = vld [vmem:[%s4 + $0x120] sm:$0xff]
          %v1182 = vld [vmem:[%s4 + $0x128] sm:$0xff]
          %v1183 = vld [vmem:[%s4 + $0x130] sm:$0xff]
          %v1184 = vld [vmem:[%s4 + $0x138] sm:$0xff]
          %v1185 = vld [vmem:[%s4 + $0x140] sm:$0xff]
          %v1186 = vld [vmem:[%s4 + $0x148] sm:$0xff]
          %v1187 = vld [vmem:[%s4 + $0x150] sm:$0xff]
          %v1188 = vld [vmem:[%s4 + $0x158] sm:$0xff]
          %v1189 = vld [vmem:[%s4 + $0x160] sm:$0xff]
          %v1190 = vld [vmem:[%s4 + $0x168] sm:$0xff]
          %v1191 = vld [vmem:[%s4 + $0x170] sm:$0xff]
          %v1192 = vld [vmem:[%s4 + $0x178] sm:$0xff]
          %v1193 = vld [vmem:[%s4 + $0x180] sm:$0xff]
          %v1194 = vld [vmem:[%s4 + $0x188] sm:$0xff]
          %v1195 = vld [vmem:[%s4 + $0x190] sm:$0xff]
          %v1196 = vld [vmem:[%s4 + $0x198] sm:$0xff]
          %v1197 = vld [vmem:[%s4 + $0x1a0] sm:$0xff]
          %v1198 = vld [vmem:[%s4 + $0x1a8] sm:$0xff]
          %v1199 = vld [vmem:[%s4 + $0x1b0] sm:$0xff]
          %v1200 = vld [vmem:[%s4 + $0x1b8] sm:$0xff]
          %v1201 = vld [vmem:[%s4 + $0x1c0] sm:$0xff]
          %v1202 = vld [vmem:[%s4 + $0x1c8] sm:$0xff]
          %v1203 = vld [vmem:[%s4 + $0x1d0] sm:$0xff]
          %v1204 = vld [vmem:[%s4 + $0x1d8] sm:$0xff]
          %v1205 = vld [vmem:[%s4 + $0x1e0] sm:$0xff]
          %v1206 = vld [vmem:[%s4 + $0x1e8] sm:$0xff]
          %v1207 = vld [vmem:[%s4 + $0x1f0] sm:$0xff]
          %v1208 = vld [vmem:[%s4 + $0x1f8] sm:$0xff]
          %v1209 = vld [vmem:[%s7] sm:$0x3]
          %v1211 = vlaneseq
          %v1212 = vshrl.u32 %v1211, 7
          %v1213 = vsub.s32 0, %v1212
          %v1214 = vrot.slane %v1209, %v1213
          %v1215 = vlaneseq
          %v1216 = vshrl.u32 %v1215, 7
          %v1217 = vsub.s32 1, %v1216
          %v1218 = vrot.slane %v1209, %v1217
          %1221 = vmatprep.subr.mxu0 %v1146
          %1222 = vmatpush1.msra.mxu0 %v1145
          %1223 = vmatprep.subr.mxu0 %v1148
          %1224 = vmatpush1.msra.mxu0 %v1147
          %1225 = vmatprep.subr.mxu0 %v1150
          %1226 = vmatpush1.msra.mxu0 %v1149
          %1227 = vmatprep.subr.mxu0 %v1152
          %1228 = vmatpush1.msra.mxu0 %v1151
          %1229 = vmatprep.subr.mxu0 %v1154
          %1230 = vmatpush1.msra.mxu0 %v1153
          %1231 = vmatprep.subr.mxu0 %v1156
          %1232 = vmatpush1.msra.mxu0 %v1155
          %1233 = vmatprep.subr.mxu0 %v1158
          %1234 = vmatpush1.msra.mxu0 %v1157
          %1235 = vmatprep.subr.mxu0 %v1160
          %1236 = vmatpush1.msra.mxu0 %v1159
          %1237 = vmatprep.subr.mxu0 %v1162
          %1238 = vmatpush1.msra.mxu0 %v1161
          %1239 = vmatprep.subr.mxu0 %v1164
          %1240 = vmatpush1.msra.mxu0 %v1163
          %1241 = vmatprep.subr.mxu0 %v1166
          %1242 = vmatpush1.msra.mxu0 %v1165
          %1243 = vmatprep.subr.mxu0 %v1168
          %1244 = vmatpush1.msra.mxu0 %v1167
          %1245 = vmatprep.subr.mxu0 %v1170
          %1246 = vmatpush1.msra.mxu0 %v1169
          %1247 = vmatprep.subr.mxu0 %v1172
          %1248 = vmatpush1.msra.mxu0 %v1171
          %1249 = vmatprep.subr.mxu0 %v1174
          %1250 = vmatpush1.msra.mxu0 %v1173
          %1251 = vmatprep.subr.mxu0 %v1176
          %1252 = vmatpush1.msra.mxu0 %v1175
          %1253 = vmatprep.subr.mxu0 %v1178
          %1254 = vmatpush1.msra.mxu0 %v1177
          %1255 = vmatprep.subr.mxu0 %v1180
          %1256 = vmatpush1.msra.mxu0 %v1179
          %1257 = vmatprep.subr.mxu0 %v1182
          %1258 = vmatpush1.msra.mxu0 %v1181
          %1259 = vmatprep.subr.mxu0 %v1184
          %1260 = vmatpush1.msra.mxu0 %v1183
          %1261 = vmatprep.subr.mxu0 %v1186
          %1262 = vmatpush1.msra.mxu0 %v1185
          %1263 = vmatprep.subr.mxu0 %v1188
          %1264 = vmatpush1.msra.mxu0 %v1187
          %1265 = vmatprep.subr.mxu0 %v1190
          %1266 = vmatpush1.msra.mxu0 %v1189
          %1267 = vmatprep.subr.mxu0 %v1192
          %1268 = vmatpush1.msra.mxu0 %v1191
          %1269 = vmatprep.subr.mxu0 %v1194
          %1270 = vmatpush1.msra.mxu0 %v1193
          %1271 = vmatprep.subr.mxu0 %v1196
          %1272 = vmatpush1.msra.mxu0 %v1195
          %1273 = vmatprep.subr.mxu0 %v1198
          %1274 = vmatpush1.msra.mxu0 %v1197
          %1275 = vmatprep.subr.mxu0 %v1200
          %1276 = vmatpush1.msra.mxu0 %v1199
          %1277 = vmatprep.subr.mxu0 %v1202
          %1278 = vmatpush1.msra.mxu0 %v1201
          %1279 = vmatprep.subr.mxu0 %v1204
          %1280 = vmatpush1.msra.mxu0 %v1203
          %1281 = vmatprep.subr.mxu0 %v1206
          %1282 = vmatpush1.msra.mxu0 %v1205
          %1283 = vmatprep.subr.mxu0 %v1208
          %1284 = vmatpush1.msra.mxu0 %v1207
          %1285 = vmatprep.mubr.f32.mxu0 %v877
          %1286 = vmatmul.mubr.f32.gmra.mrb[0].mxu0 %v876
          %v1287 = vpop.f32.mrb[0].mxu0
          %v1288 = vadd.f32 %v1214, %v1287
          %v1289 = vpop.f32.mrb[0].mxu0
          %v1290 = vadd.f32 %v1218, %v1289
          %1291 = vmatprep.mubr.f32.mxu0 %v879
          %1292 = vmatmul.mubr.f32.gmra.mrb[0].mxu0 %v878
          %v1293 = vpop.f32.mrb[0].mxu0
          %v1294 = vadd.f32 %v1214, %v1293
          %v1295 = vpop.f32.mrb[0].mxu0
          %v1296 = vadd.f32 %v1218, %v1295
          %1297 = vmatprep.mubr.f32.mxu0 %v881
          %1298 = vmatmul.mubr.f32.gmra.mrb[0].mxu0 %v880
          %v1299 = vpop.f32.mrb[0].mxu0
          %v1300 = vadd.f32 %v1214, %v1299
          %v1301 = vpop.f32.mrb[0].mxu0
          %v1302 = vadd.f32 %v1218, %v1301
          %1303 = vmatprep.mubr.f32.mxu0 %v883
          %1304 = vmatmul.mubr.f32.gmra.mrb[0].mxu0 %v882
          %v1305 = vpop.f32.mrb[0].mxu0
          %v1306 = vadd.f32 %v1214, %v1305
          %v1307 = vpop.f32.mrb[0].mxu0
          %v1308 = vadd.f32 %v1218, %v1307
          %1309 = vmatprep.mubr.f32.mxu0 %v885
          %1310 = vmatmul.mubr.f32.gmra.mrb[0].mxu0 %v884
          %v1311 = vpop.f32.mrb[0].mxu0
          %v1312 = vadd.f32 %v1214, %v1311
          %v1313 = vpop.f32.mrb[0].mxu0
          %v1314 = vadd.f32 %v1218, %v1313
          %1315 = vmatprep.mubr.f32.mxu0 %v887
          %1316 = vmatmul.mubr.f32.gmra.mrb[0].mxu0 %v886
          %v1317 = vpop.f32.mrb[0].mxu0
          %v1318 = vadd.f32 %v1214, %v1317
          %v1319 = vpop.f32.mrb[0].mxu0
          %v1320 = vadd.f32 %v1218, %v1319
          %1321 = vmatprep.mubr.f32.mxu0 %v889
          %1322 = vmatmul.mubr.f32.gmra.mrb[0].mxu0 %v888
          %v1323 = vpop.f32.mrb[0].mxu0
          %v1324 = vadd.f32 %v1214, %v1323
          %v1325 = vpop.f32.mrb[0].mxu0
          %v1326 = vadd.f32 %v1218, %v1325
          %1327 = vmatprep.mubr.f32.mxu0 %v891
          %1328 = vmatmul.mubr.f32.gmra.mrb[0].mxu0 %v890
          %v1329 = vpop.f32.mrb[0].mxu0
          %v1330 = vadd.f32 %v1214, %v1329
          %v1331 = vpop.f32.mrb[0].mxu0
          %v1332 = vadd.f32 %v1218, %v1331
          %1333 = vmatprep.mubr.f32.mxu0 %v893
          %1334 = vmatmul.mubr.f32.gmra.mrb[0].mxu0 %v892
          %v1335 = vpop.f32.mrb[0].mxu0
          %v1336 = vadd.f32 %v1214, %v1335
          %v1337 = vpop.f32.mrb[0].mxu0
          %v1338 = vadd.f32 %v1218, %v1337
          %1339 = vmatprep.mubr.f32.mxu0 %v895
          %1340 = vmatmul.mubr.f32.gmra.mrb[0].mxu0 %v894
          %v1341 = vpop.f32.mrb[0].mxu0
          %v1342 = vadd.f32 %v1214, %v1341
          %v1343 = vpop.f32.mrb[0].mxu0
          %v1344 = vadd.f32 %v1218, %v1343
          %1345 = vmatprep.mubr.f32.mxu0 %v897
          %1346 = vmatmul.mubr.f32.gmra.mrb[0].mxu0 %v896
          %v1347 = vpop.f32.mrb[0].mxu0
          %v1348 = vadd.f32 %v1214, %v1347
          %v1349 = vpop.f32.mrb[0].mxu0
          %v1350 = vadd.f32 %v1218, %v1349
          %1351 = vmatprep.mubr.f32.mxu0 %v899
          %1352 = vmatmul.mubr.f32.gmra.mrb[0].mxu0 %v898
          %v1353 = vpop.f32.mrb[0].mxu0
          %v1354 = vadd.f32 %v1214, %v1353
          %v1355 = vpop.f32.mrb[0].mxu0
          %v1356 = vadd.f32 %v1218, %v1355
          %1357 = vmatprep.mubr.f32.mxu0 %v901
          %1358 = vmatmul.mubr.f32.gmra.mrb[0].mxu0 %v900
          %v1359 = vpop.f32.mrb[0].mxu0
          %v1360 = vadd.f32 %v1214, %v1359
          %v1361 = vpop.f32.mrb[0].mxu0
          %v1362 = vadd.f32 %v1218, %v1361
          %1363 = vmatprep.mubr.f32.mxu0 %v903
          %1364 = vmatmul.mubr.f32.gmra.mrb[0].mxu0 %v902
          %v1365 = vpop.f32.mrb[0].mxu0
          %v1366 = vadd.f32 %v1214, %v1365
          %v1367 = vpop.f32.mrb[0].mxu0
          %v1368 = vadd.f32 %v1218, %v1367
          %1369 = vmatprep.mubr.f32.mxu0 %v905
          %1370 = vmatmul.mubr.f32.gmra.mrb[0].mxu0 %v904
          %v1371 = vpop.f32.mrb[0].mxu0
          %v1372 = vadd.f32 %v1214, %v1371
          %v1373 = vpop.f32.mrb[0].mxu0
          %v1374 = vadd.f32 %v1218, %v1373
          %1375 = vmatprep.mubr.f32.mxu0 %v907
          %1376 = vmatmul.mubr.f32.gmra.mrb[0].mxu0 %v906
          %v1377 = vpop.f32.mrb[0].mxu0
          %v1378 = vadd.f32 %v1214, %v1377
          %v1379 = vpop.f32.mrb[0].mxu0
          %v1380 = vadd.f32 %v1218, %v1379
          %1381 = vdwg.mxu0
          %s1382 = smul.u32 %s30, 128
          %v1383 = vlaneseq
          %v1384 = vshrl.u32 %v1383, 7
          %v1385 = vadd.s32 %v1384, 8
          %v1386 = vadd.s32 %v1384, 16
          %v1387 = vadd.s32 %v1384, 24
          %v1388 = vadd.s32 %v1384, 32
          %v1389 = vadd.s32 %v1384, 40
          %v1390 = vadd.s32 %v1384, 48
          %v1391 = vadd.s32 %v1384, 56
          %v1392 = vadd.s32 %v1384, 64
          %v1393 = vadd.s32 %v1384, 72
          %v1394 = vadd.s32 %v1384, 80
          %v1395 = vadd.s32 %v1384, 88
          %v1396 = vadd.s32 %v1384, 96
          %v1397 = vadd.s32 %v1384, 104
          %v1398 = vadd.s32 %v1384, 112
          %v1399 = vadd.s32 %v1384, 120
          %v1400 = vstv %s1382
          %v1401 = vadd.s32 %v1400, %v1384
          %v1402 = vadd.s32 %v1400, %v1385
          %v1403 = vadd.s32 %v1400, %v1386
          %v1404 = vadd.s32 %v1400, %v1387
          %v1405 = vadd.s32 %v1400, %v1388
          %v1406 = vadd.s32 %v1400, %v1389
          %v1407 = vadd.s32 %v1400, %v1390
          %v1408 = vadd.s32 %v1400, %v1391
          %v1409 = vadd.s32 %v1400, %v1392
          %v1410 = vadd.s32 %v1400, %v1393
          %v1411 = vadd.s32 %v1400, %v1394
          %v1412 = vadd.s32 %v1400, %v1395
          %v1413 = vadd.s32 %v1400, %v1396
          %v1414 = vadd.s32 %v1400, %v1397
          %v1415 = vadd.s32 %v1400, %v1398
          %v1416 = vadd.s32 %v1400, %v1399
          %s1417 = smul.u32 %s31, 128
          %v1418 = vlaneseq
          %v1419 = vand.u32 %v1418, 127
          %v1420 = vstv %s1417
          %v1421 = vadd.s32 %v1420, %v1419
          %vm1422 = vcmp.le.s32.totalorder %v1421, %v1401
          %vm1423 = vcmp.le.s32.totalorder %v1421, %v1402
          %vm1424 = vcmp.le.s32.totalorder %v1421, %v1403
          %vm1425 = vcmp.le.s32.totalorder %v1421, %v1404
          %vm1426 = vcmp.le.s32.totalorder %v1421, %v1405
          %vm1427 = vcmp.le.s32.totalorder %v1421, %v1406
          %vm1428 = vcmp.le.s32.totalorder %v1421, %v1407
          %vm1429 = vcmp.le.s32.totalorder %v1421, %v1408
          %vm1430 = vcmp.le.s32.totalorder %v1421, %v1409
          %vm1431 = vcmp.le.s32.totalorder %v1421, %v1410
          %vm1432 = vcmp.le.s32.totalorder %v1421, %v1411
          %vm1433 = vcmp.le.s32.totalorder %v1421, %v1412
          %vm1434 = vcmp.le.s32.totalorder %v1421, %v1413
          %vm1435 = vcmp.le.s32.totalorder %v1421, %v1414
          %vm1436 = vcmp.le.s32.totalorder %v1421, %v1415
          %vm1437 = vcmp.le.s32.totalorder %v1421, %v1416
          %v1438 = vld [vmem:[#allocation2] sm:$0xff]
          %v1439 = vld [vmem:[#allocation2 + $0x10] sm:$0xff]
          %v1440 = vld [vmem:[#allocation2 + $0x20] sm:$0xff]
          %v1441 = vld [vmem:[#allocation2 + $0x30] sm:$0xff]
          %v1442 = vld [vmem:[#allocation2 + $0x40] sm:$0xff]
          %v1443 = vld [vmem:[#allocation2 + $0x50] sm:$0xff]
          %v1444 = vld [vmem:[#allocation2 + $0x60] sm:$0xff]
          %v1445 = vld [vmem:[#allocation2 + $0x70] sm:$0xff]
          %v1446 = vld [vmem:[#allocation2 + $0x80] sm:$0xff]
          %v1447 = vld [vmem:[#allocation2 + $0x90] sm:$0xff]
          %v1448 = vld [vmem:[#allocation2 + $0xa0] sm:$0xff]
          %v1449 = vld [vmem:[#allocation2 + $0xb0] sm:$0xff]
          %v1450 = vld [vmem:[#allocation2 + $0xc0] sm:$0xff]
          %v1451 = vld [vmem:[#allocation2 + $0xd0] sm:$0xff]
          %v1452 = vld [vmem:[#allocation2 + $0xe0] sm:$0xff]
          %v1453 = vld [vmem:[#allocation2 + $0xf0] sm:$0xff]
          %1454 = vmatprep.subr.mxu0 0.0
          %1455 = vmatpush1.xpose.msra.mxu0 %v1051
          %1456 = vmatprep.subr.mxu0 0.0
          %1457 = vmatpush1.xpose.msra.mxu0 %v1057
          %1458 = vmatprep.subr.mxu0 0.0
          %1459 = vmatpush1.xpose.msra.mxu0 %v1063
          %1460 = vmatprep.subr.mxu0 0.0
          %1461 = vmatpush1.xpose.msra.mxu0 %v1069
          %1462 = vmatprep.subr.mxu0 0.0
          %1463 = vmatpush1.xpose.msra.mxu0 %v1075
          %1464 = vmatprep.subr.mxu0 0.0
          %1465 = vmatpush1.xpose.msra.mxu0 %v1081
          %1466 = vmatprep.subr.mxu0 0.0
          %1467 = vmatpush1.xpose.msra.mxu0 %v1087
          %1468 = vmatprep.subr.mxu0 0.0
          %1469 = vmatpush1.xpose.msra.mxu0 %v1093
          %1470 = vmatprep.subr.mxu0 0.0
          %1471 = vmatpush1.xpose.msra.mxu0 %v1099
          %1472 = vmatprep.subr.mxu0 0.0
          %1473 = vmatpush1.xpose.msra.mxu0 %v1105
          %1474 = vmatprep.subr.mxu0 0.0
          %1475 = vmatpush1.xpose.msra.mxu0 %v1111
          %1476 = vmatprep.subr.mxu0 0.0
          %1477 = vmatpush1.xpose.msra.mxu0 %v1117
          %1478 = vmatprep.subr.mxu0 0.0
          %1479 = vmatpush1.xpose.msra.mxu0 %v1123
          %1480 = vmatprep.subr.mxu0 0.0
          %1481 = vmatpush1.xpose.msra.mxu0 %v1129
          %1482 = vmatprep.subr.mxu0 0.0
          %1483 = vmatpush1.xpose.msra.mxu0 %v1135
          %1484 = vmatprep.subr.mxu0 0.0
          %1485 = vmatpush1.xpose.msra.mxu0 %v1141
          %1486 = vmatprep.subr.mxu0 0.0
          %1487 = vmatpush1.xpose.msra.mxu0 0.0
          %1488 = vmatprep.subr.mxu0 0.0
          %1489 = vmatpush1.xpose.msra.mxu0 0.0
          %1490 = vmatprep.subr.mxu0 0.0
          %1491 = vmatpush1.xpose.msra.mxu0 0.0
          %1492 = vmatprep.subr.mxu0 0.0
          %1493 = vmatpush1.xpose.msra.mxu0 0.0
          %1494 = vmatprep.subr.mxu0 0.0
          %1495 = vmatpush1.xpose.msra.mxu0 0.0
          %1496 = vmatprep.subr.mxu0 0.0
          %1497 = vmatpush1.xpose.msra.mxu0 0.0
          %1498 = vmatprep.subr.mxu0 0.0
          %1499 = vmatpush1.xpose.msra.mxu0 0.0
          %1500 = vmatprep.subr.mxu0 0.0
          %1501 = vmatpush1.xpose.msra.mxu0 0.0
          %1502 = vmatprep.subr.mxu0 0.0
          %1503 = vmatpush1.xpose.msra.mxu0 0.0
          %1504 = vmatprep.subr.mxu0 0.0
          %1505 = vmatpush1.xpose.msra.mxu0 0.0
          %1506 = vmatprep.subr.mxu0 0.0
          %1507 = vmatpush1.xpose.msra.mxu0 0.0
          %1508 = vmatprep.subr.mxu0 0.0
          %1509 = vmatpush1.xpose.msra.mxu0 0.0
          %1510 = vmatprep.subr.mxu0 0.0
          %1511 = vmatpush1.xpose.msra.mxu0 0.0
          %1512 = vmatprep.subr.mxu0 0.0
          %1513 = vmatpush1.xpose.msra.mxu0 0.0
          %1514 = vmatprep.subr.mxu0 0.0
          %1515 = vmatpush1.xpose.msra.mxu0 0.0
          %1516 = vmatprep.subr.mxu0 0.0
          %1517 = vmatpush1.xpose.msra.mxu0 0.0
          %1518 = vmatprep.mubr.f32.mxu0 0.0
          %1519 = vmatmul.mubr.f32.gmra.mrb[0].mxu0 %v1438
          %v1520 = vpop.f32.mrb[0].mxu0
          %v1521 = vadd.f32 0.0, %v1520
          %v1522 = vpop.f32.mrb[0].mxu0
          %1523 = vmatprep.mubr.f32.mxu0 0.0
          %1524 = vmatmul.mubr.f32.gmra.mrb[0].mxu0 %v1439
          %v1525 = vpop.f32.mrb[0].mxu0
          %v1526 = vadd.f32 0.0, %v1525
          %v1527 = vpop.f32.mrb[0].mxu0
          %1528 = vmatprep.mubr.f32.mxu0 0.0
          %1529 = vmatmul.mubr.f32.gmra.mrb[0].mxu0 %v1440
          %v1530 = vpop.f32.mrb[0].mxu0
          %v1531 = vadd.f32 0.0, %v1530
          %v1532 = vpop.f32.mrb[0].mxu0
          %1533 = vmatprep.mubr.f32.mxu0 0.0
          %1534 = vmatmul.mubr.f32.gmra.mrb[0].mxu0 %v1441
          %v1535 = vpop.f32.mrb[0].mxu0
          %v1536 = vadd.f32 0.0, %v1535
          %v1537 = vpop.f32.mrb[0].mxu0
          %1538 = vmatprep.mubr.f32.mxu0 0.0
          %1539 = vmatmul.mubr.f32.gmra.mrb[0].mxu0 %v1442
          %v1540 = vpop.f32.mrb[0].mxu0
          %v1541 = vadd.f32 0.0, %v1540
          %v1542 = vpop.f32.mrb[0].mxu0
          %1543 = vmatprep.mubr.f32.mxu0 0.0
          %1544 = vmatmul.mubr.f32.gmra.mrb[0].mxu0 %v1443
          %v1545 = vpop.f32.mrb[0].mxu0
          %v1546 = vadd.f32 0.0, %v1545
          %v1547 = vpop.f32.mrb[0].mxu0
          %1548 = vmatprep.mubr.f32.mxu0 0.0
          %1549 = vmatmul.mubr.f32.gmra.mrb[0].mxu0 %v1444
          %v1550 = vpop.f32.mrb[0].mxu0
          %v1551 = vadd.f32 0.0, %v1550
          %v1552 = vpop.f32.mrb[0].mxu0
          %1553 = vmatprep.mubr.f32.mxu0 0.0
          %1554 = vmatmul.mubr.f32.gmra.mrb[0].mxu0 %v1445
          %v1555 = vpop.f32.mrb[0].mxu0
          %v1556 = vadd.f32 0.0, %v1555
          %v1557 = vpop.f32.mrb[0].mxu0
          %1558 = vmatprep.mubr.f32.mxu0 0.0
          %1559 = vmatmul.mubr.f32.gmra.mrb[0].mxu0 %v1446
          %v1560 = vpop.f32.mrb[0].mxu0
          %v1561 = vadd.f32 0.0, %v1560
          %v1562 = vpop.f32.mrb[0].mxu0
          %1563 = vmatprep.mubr.f32.mxu0 0.0
          %1564 = vmatmul.mubr.f32.gmra.mrb[0].mxu0 %v1447
          %v1565 = vpop.f32.mrb[0].mxu0
          %v1566 = vadd.f32 0.0, %v1565
          %v1567 = vpop.f32.mrb[0].mxu0
          %1568 = vmatprep.mubr.f32.mxu0 0.0
          %1569 = vmatmul.mubr.f32.gmra.mrb[0].mxu0 %v1448
          %v1570 = vpop.f32.mrb[0].mxu0
          %v1571 = vadd.f32 0.0, %v1570
          %v1572 = vpop.f32.mrb[0].mxu0
          %1573 = vmatprep.mubr.f32.mxu0 0.0
          %1574 = vmatmul.mubr.f32.gmra.mrb[0].mxu0 %v1449
          %v1575 = vpop.f32.mrb[0].mxu0
          %v1576 = vadd.f32 0.0, %v1575
          %v1577 = vpop.f32.mrb[0].mxu0
          %1578 = vmatprep.mubr.f32.mxu0 0.0
          %1579 = vmatmul.mubr.f32.gmra.mrb[0].mxu0 %v1450
          %v1580 = vpop.f32.mrb[0].mxu0
          %v1581 = vadd.f32 0.0, %v1580
          %v1582 = vpop.f32.mrb[0].mxu0
          %1583 = vmatprep.mubr.f32.mxu0 0.0
          %1584 = vmatmul.mubr.f32.gmra.mrb[0].mxu0 %v1451
          %v1585 = vpop.f32.mrb[0].mxu0
          %v1586 = vadd.f32 0.0, %v1585
          %v1587 = vpop.f32.mrb[0].mxu0
          %1588 = vmatprep.mubr.f32.mxu0 0.0
          %1589 = vmatmul.mubr.f32.gmra.mrb[0].mxu0 %v1452
          %v1590 = vpop.f32.mrb[0].mxu0
          %v1591 = vadd.f32 0.0, %v1590
          %v1592 = vpop.f32.mrb[0].mxu0
          %1593 = vmatprep.mubr.f32.mxu0 0.0
          %1594 = vmatmul.mubr.f32.gmra.mrb[0].mxu0 %v1453
          %v1595 = vpop.f32.mrb[0].mxu0
          %v1596 = vadd.f32 0.0, %v1595
          %v1597 = vpop.f32.mrb[0].mxu0
          %1598 = vdwg.mxu0
          %v1599 = vsel %vm1422, %v1521, -1e+30
          %v1600 = vsel %vm1423, %v1526, -1e+30
          %v1601 = vsel %vm1424, %v1531, -1e+30
          %v1602 = vsel %vm1425, %v1536, -1e+30
          %v1603 = vsel %vm1426, %v1541, -1e+30
          %v1604 = vsel %vm1427, %v1546, -1e+30
          %v1605 = vsel %vm1428, %v1551, -1e+30
          %v1606 = vsel %vm1429, %v1556, -1e+30
          %v1607 = vsel %vm1430, %v1561, -1e+30
          %v1608 = vsel %vm1431, %v1566, -1e+30
          %v1609 = vsel %vm1432, %v1571, -1e+30
          %v1610 = vsel %vm1433, %v1576, -1e+30
          %v1611 = vsel %vm1434, %v1581, -1e+30
          %v1612 = vsel %vm1435, %v1586, -1e+30
          %v1613 = vsel %vm1436, %v1591, -1e+30
          %v1614 = vsel %vm1437, %v1596, -1e+30
          %v1615 = vld [vmem:[#allocation3] sm:$0xff]
          %v1616 = vld [vmem:[#allocation3 + $0x8] sm:$0xff]
          %v1617 = vld [vmem:[#allocation3 + $0x10] sm:$0xff]
          %v1618 = vld [vmem:[#allocation3 + $0x18] sm:$0xff]
          %v1619 = vld [vmem:[#allocation3 + $0x20] sm:$0xff]
          %v1620 = vld [vmem:[#allocation3 + $0x28] sm:$0xff]
          %v1621 = vld [vmem:[#allocation3 + $0x30] sm:$0xff]
          %v1622 = vld [vmem:[#allocation3 + $0x38] sm:$0xff]
          %v1623 = vld [vmem:[#allocation3 + $0x40] sm:$0xff]
          %v1624 = vld [vmem:[#allocation3 + $0x48] sm:$0xff]
          %v1625 = vld [vmem:[#allocation3 + $0x50] sm:$0xff]
          %v1626 = vld [vmem:[#allocation3 + $0x58] sm:$0xff]
          %v1627 = vld [vmem:[#allocation3 + $0x60] sm:$0xff]
          %v1628 = vld [vmem:[#allocation3 + $0x68] sm:$0xff]
          %v1629 = vld [vmem:[#allocation3 + $0x70] sm:$0xff]
          %v1630 = vld [vmem:[#allocation3 + $0x78] sm:$0xff]
          %1631 = vmax.xlane.f32.xlu0 %v1599
          %v1632 = vpop.xlane.xlu0 %1631
          %1633 = vmax.xlane.f32.xlu0 %v1600
          %v1634 = vpop.xlane.xlu0 %1633
          %1635 = vmax.xlane.f32.xlu0 %v1601
          %v1636 = vpop.xlane.xlu0 %1635
          %1637 = vmax.xlane.f32.xlu0 %v1602
          %v1638 = vpop.xlane.xlu0 %1637
          %1639 = vmax.xlane.f32.xlu0 %v1603
          %v1640 = vpop.xlane.xlu0 %1639
          %1641 = vmax.xlane.f32.xlu0 %v1604
          %v1642 = vpop.xlane.xlu0 %1641
          %1643 = vmax.xlane.f32.xlu0 %v1605
          %v1644 = vpop.xlane.xlu0 %1643
          %1645 = vmax.xlane.f32.xlu0 %v1606
          %v1646 = vpop.xlane.xlu0 %1645
          %1647 = vmax.xlane.f32.xlu0 %v1607
          %v1648 = vpop.xlane.xlu0 %1647
          %1649 = vmax.xlane.f32.xlu0 %v1608
          %v1650 = vpop.xlane.xlu0 %1649
          %1651 = vmax.xlane.f32.xlu0 %v1609
          %v1652 = vpop.xlane.xlu0 %1651
          %1653 = vmax.xlane.f32.xlu0 %v1610
          %v1654 = vpop.xlane.xlu0 %1653
          %1655 = vmax.xlane.f32.xlu0 %v1611
          %v1656 = vpop.xlane.xlu0 %1655
          %1657 = vmax.xlane.f32.xlu0 %v1612
          %v1658 = vpop.xlane.xlu0 %1657
          %1659 = vmax.xlane.f32.xlu0 %v1613
          %v1660 = vpop.xlane.xlu0 %1659
          %1661 = vmax.xlane.f32.xlu0 %v1614
          %v1662 = vpop.xlane.xlu0 %1661
          %v1663 = vmax.f32 %v1615, %v1632
          %v1664 = vmax.f32 %v1616, %v1634
          %v1665 = vmax.f32 %v1617, %v1636
          %v1666 = vmax.f32 %v1618, %v1638
          %v1667 = vmax.f32 %v1619, %v1640
          %v1668 = vmax.f32 %v1620, %v1642
          %v1669 = vmax.f32 %v1621, %v1644
          %v1670 = vmax.f32 %v1622, %v1646
          %v1671 = vmax.f32 %v1623, %v1648
          %v1672 = vmax.f32 %v1624, %v1650
          %v1673 = vmax.f32 %v1625, %v1652
          %v1674 = vmax.f32 %v1626, %v1654
          %v1675 = vmax.f32 %v1627, %v1656
          %v1676 = vmax.f32 %v1628, %v1658
          %v1677 = vmax.f32 %v1629, %v1660
          %v1678 = vmax.f32 %v1630, %v1662
          %v1679 = vsub.f32 %v1615, %v1663
          %v1680 = vsub.f32 %v1616, %v1664
          %v1681 = vsub.f32 %v1617, %v1665
          %v1682 = vsub.f32 %v1618, %v1666
          %v1683 = vsub.f32 %v1619, %v1667
          %v1684 = vsub.f32 %v1620, %v1668
          %v1685 = vsub.f32 %v1621, %v1669
          %v1686 = vsub.f32 %v1622, %v1670
          %v1687 = vsub.f32 %v1623, %v1671
          %v1688 = vsub.f32 %v1624, %v1672
          %v1689 = vsub.f32 %v1625, %v1673
          %v1690 = vsub.f32 %v1626, %v1674
          %v1691 = vsub.f32 %v1627, %v1675
          %v1692 = vsub.f32 %v1628, %v1676
          %v1693 = vsub.f32 %v1629, %v1677
          %v1694 = vsub.f32 %v1630, %v1678
          %v1695 = vmul.f32 %v1679, 1.442695
          %v1696 = vpow.pop %v1695
          %v1697 = vmul.f32 %v1680, 1.442695
          %v1698 = vpow.pop %v1697
          %v1699 = vmul.f32 %v1681, 1.442695
          %v1700 = vpow.pop %v1699
          %v1701 = vmul.f32 %v1682, 1.442695
          %v1702 = vpow.pop %v1701
          %v1703 = vmul.f32 %v1683, 1.442695
          %v1704 = vpow.pop %v1703
          %v1705 = vmul.f32 %v1684, 1.442695
          %v1706 = vpow.pop %v1705
          %v1707 = vmul.f32 %v1685, 1.442695
          %v1708 = vpow.pop %v1707
          %v1709 = vmul.f32 %v1686, 1.442695
          %v1710 = vpow.pop %v1709
          %v1711 = vmul.f32 %v1687, 1.442695
          %v1712 = vpow.pop %v1711
          %v1713 = vmul.f32 %v1688, 1.442695
          %v1714 = vpow.pop %v1713
          %v1715 = vmul.f32 %v1689, 1.442695
          %v1716 = vpow.pop %v1715
          %v1717 = vmul.f32 %v1690, 1.442695
          %v1718 = vpow.pop %v1717
          %v1719 = vmul.f32 %v1691, 1.442695
          %v1720 = vpow.pop %v1719
          %v1721 = vmul.f32 %v1692, 1.442695
          %v1722 = vpow.pop %v1721
          %v1723 = vmul.f32 %v1693, 1.442695
          %v1724 = vpow.pop %v1723
          %v1725 = vmul.f32 %v1694, 1.442695
          %v1726 = vpow.pop %v1725
          %1728 = vset.pattern.permute.xlu0 0
          %1729 = vperm.xlu0 %1728, %v1663
          %v1730 = vpop.permute.xlu0 %1729
          %1733 = vset.pattern.permute.xlu0 0
          %1734 = vperm.xlu0 %1733, %v1664
          %v1735 = vpop.permute.xlu0 %1734
          %1738 = vset.pattern.permute.xlu0 0
          %1739 = vperm.xlu0 %1738, %v1665
          %v1740 = vpop.permute.xlu0 %1739
          %1743 = vset.pattern.permute.xlu0 0
          %1744 = vperm.xlu0 %1743, %v1666
          %v1745 = vpop.permute.xlu0 %1744
          %1748 = vset.pattern.permute.xlu0 0
          %1749 = vperm.xlu0 %1748, %v1667
          %v1750 = vpop.permute.xlu0 %1749
          %1753 = vset.pattern.permute.xlu0 0
          %1754 = vperm.xlu0 %1753, %v1668
          %v1755 = vpop.permute.xlu0 %1754
          %1758 = vset.pattern.permute.xlu0 0
          %1759 = vperm.xlu0 %1758, %v1669
          %v1760 = vpop.permute.xlu0 %1759
          %1763 = vset.pattern.permute.xlu0 0
          %1764 = vperm.xlu0 %1763, %v1670
          %v1765 = vpop.permute.xlu0 %1764
          %1768 = vset.pattern.permute.xlu0 0
          %1769 = vperm.xlu0 %1768, %v1671
          %v1770 = vpop.permute.xlu0 %1769
          %1773 = vset.pattern.permute.xlu0 0
          %1774 = vperm.xlu0 %1773, %v1672
          %v1775 = vpop.permute.xlu0 %1774
          %1778 = vset.pattern.permute.xlu0 0
          %1779 = vperm.xlu0 %1778, %v1673
          %v1780 = vpop.permute.xlu0 %1779
          %1783 = vset.pattern.permute.xlu0 0
          %1784 = vperm.xlu0 %1783, %v1674
          %v1785 = vpop.permute.xlu0 %1784
          %1788 = vset.pattern.permute.xlu0 0
          %1789 = vperm.xlu0 %1788, %v1675
          %v1790 = vpop.permute.xlu0 %1789
          %1793 = vset.pattern.permute.xlu0 0
          %1794 = vperm.xlu0 %1793, %v1676
          %v1795 = vpop.permute.xlu0 %1794
          %1798 = vset.pattern.permute.xlu0 0
          %1799 = vperm.xlu0 %1798, %v1677
          %v1800 = vpop.permute.xlu0 %1799
          %1803 = vset.pattern.permute.xlu0 0
          %1804 = vperm.xlu0 %1803, %v1678
          %v1805 = vpop.permute.xlu0 %1804
          %v1807 = vsub.f32 %v1599, %v1730
          %v1808 = vsub.f32 %v1600, %v1735
          %v1809 = vsub.f32 %v1601, %v1740
          %v1810 = vsub.f32 %v1602, %v1745
          %v1811 = vsub.f32 %v1603, %v1750
          %v1812 = vsub.f32 %v1604, %v1755
          %v1813 = vsub.f32 %v1605, %v1760
          %v1814 = vsub.f32 %v1606, %v1765
          %v1815 = vsub.f32 %v1607, %v1770
          %v1816 = vsub.f32 %v1608, %v1775
          %v1817 = vsub.f32 %v1609, %v1780
          %v1818 = vsub.f32 %v1610, %v1785
          %v1819 = vsub.f32 %v1611, %v1790
          %v1820 = vsub.f32 %v1612, %v1795
          %v1821 = vsub.f32 %v1613, %v1800
          %v1822 = vsub.f32 %v1614, %v1805
          %v1823 = vmul.f32 %v1807, 1.442695
          %v1824 = vpow.pop %v1823
          %v1825 = vmul.f32 %v1808, 1.442695
          %v1826 = vpow.pop %v1825
          %v1827 = vmul.f32 %v1809, 1.442695
          %v1828 = vpow.pop %v1827
          %v1829 = vmul.f32 %v1810, 1.442695
          %v1830 = vpow.pop %v1829
          %v1831 = vmul.f32 %v1811, 1.442695
          %v1832 = vpow.pop %v1831
          %v1833 = vmul.f32 %v1812, 1.442695
          %v1834 = vpow.pop %v1833
          %v1835 = vmul.f32 %v1813, 1.442695
          %v1836 = vpow.pop %v1835
          %v1837 = vmul.f32 %v1814, 1.442695
          %v1838 = vpow.pop %v1837
          %v1839 = vmul.f32 %v1815, 1.442695
          %v1840 = vpow.pop %v1839
          %v1841 = vmul.f32 %v1816, 1.442695
          %v1842 = vpow.pop %v1841
          %v1843 = vmul.f32 %v1817, 1.442695
          %v1844 = vpow.pop %v1843
          %v1845 = vmul.f32 %v1818, 1.442695
          %v1846 = vpow.pop %v1845
          %v1847 = vmul.f32 %v1819, 1.442695
          %v1848 = vpow.pop %v1847
          %v1849 = vmul.f32 %v1820, 1.442695
          %v1850 = vpow.pop %v1849
          %v1851 = vmul.f32 %v1821, 1.442695
          %v1852 = vpow.pop %v1851
          %v1853 = vmul.f32 %v1822, 1.442695
          %v1854 = vpow.pop %v1853
          %v1855 = vld [vmem:[#allocation4] sm:$0xff]
          %v1856 = vld [vmem:[#allocation4 + $0x8] sm:$0xff]
          %v1857 = vld [vmem:[#allocation4 + $0x10] sm:$0xff]
          %v1858 = vld [vmem:[#allocation4 + $0x18] sm:$0xff]
          %v1859 = vld [vmem:[#allocation4 + $0x20] sm:$0xff]
          %v1860 = vld [vmem:[#allocation4 + $0x28] sm:$0xff]
          %v1861 = vld [vmem:[#allocation4 + $0x30] sm:$0xff]
          %v1862 = vld [vmem:[#allocation4 + $0x38] sm:$0xff]
          %v1863 = vld [vmem:[#allocation4 + $0x40] sm:$0xff]
          %v1864 = vld [vmem:[#allocation4 + $0x48] sm:$0xff]
          %v1865 = vld [vmem:[#allocation4 + $0x50] sm:$0xff]
          %v1866 = vld [vmem:[#allocation4 + $0x58] sm:$0xff]
          %v1867 = vld [vmem:[#allocation4 + $0x60] sm:$0xff]
          %v1868 = vld [vmem:[#allocation4 + $0x68] sm:$0xff]
          %v1869 = vld [vmem:[#allocation4 + $0x70] sm:$0xff]
          %v1870 = vld [vmem:[#allocation4 + $0x78] sm:$0xff]
          %v1871 = vmul.f32 %v1696, %v1855
          %v1872 = vmul.f32 %v1698, %v1856
          %v1873 = vmul.f32 %v1700, %v1857
          %v1874 = vmul.f32 %v1702, %v1858
          %v1875 = vmul.f32 %v1704, %v1859
          %v1876 = vmul.f32 %v1706, %v1860
          %v1877 = vmul.f32 %v1708, %v1861
          %v1878 = vmul.f32 %v1710, %v1862
          %v1879 = vmul.f32 %v1712, %v1863
          %v1880 = vmul.f32 %v1714, %v1864
          %v1881 = vmul.f32 %v1716, %v1865
          %v1882 = vmul.f32 %v1718, %v1866
          %v1883 = vmul.f32 %v1720, %v1867
          %v1884 = vmul.f32 %v1722, %v1868
          %v1885 = vmul.f32 %v1724, %v1869
          %v1886 = vmul.f32 %v1726, %v1870
          %1887 = vadd.xlane.f32.xlu0 %v1824
          %v1888 = vpop.xlane.xlu0 %1887
          %1889 = vadd.xlane.f32.xlu0 %v1826
          %v1890 = vpop.xlane.xlu0 %1889
          %1891 = vadd.xlane.f32.xlu0 %v1828
          %v1892 = vpop.xlane.xlu0 %1891
          %1893 = vadd.xlane.f32.xlu0 %v1830
          %v1894 = vpop.xlane.xlu0 %1893
          %1895 = vadd.xlane.f32.xlu0 %v1832
          %v1896 = vpop.xlane.xlu0 %1895
          %1897 = vadd.xlane.f32.xlu0 %v1834
          %v1898 = vpop.xlane.xlu0 %1897
          %1899 = vadd.xlane.f32.xlu0 %v1836
          %v1900 = vpop.xlane.xlu0 %1899
          %1901 = vadd.xlane.f32.xlu0 %v1838
          %v1902 = vpop.xlane.xlu0 %1901
          %1903 = vadd.xlane.f32.xlu0 %v1840
          %v1904 = vpop.xlane.xlu0 %1903
          %1905 = vadd.xlane.f32.xlu0 %v1842
          %v1906 = vpop.xlane.xlu0 %1905
          %1907 = vadd.xlane.f32.xlu0 %v1844
          %v1908 = vpop.xlane.xlu0 %1907
          %1909 = vadd.xlane.f32.xlu0 %v1846
          %v1910 = vpop.xlane.xlu0 %1909
          %1911 = vadd.xlane.f32.xlu0 %v1848
          %v1912 = vpop.xlane.xlu0 %1911
          %1913 = vadd.xlane.f32.xlu0 %v1850
          %v1914 = vpop.xlane.xlu0 %1913
          %1915 = vadd.xlane.f32.xlu0 %v1852
          %v1916 = vpop.xlane.xlu0 %1915
          %1917 = vadd.xlane.f32.xlu0 %v1854
          %v1918 = vpop.xlane.xlu0 %1917
          %v1919 = vadd.f32 %v1871, %v1888
          %v1920 = vadd.f32 %v1872, %v1890
          %v1921 = vadd.f32 %v1873, %v1892
          %v1922 = vadd.f32 %v1874, %v1894
          %v1923 = vadd.f32 %v1875, %v1896
          %v1924 = vadd.f32 %v1876, %v1898
          %v1925 = vadd.f32 %v1877, %v1900
          %v1926 = vadd.f32 %v1878, %v1902
          %v1927 = vadd.f32 %v1879, %v1904
          %v1928 = vadd.f32 %v1880, %v1906
          %v1929 = vadd.f32 %v1881, %v1908
          %v1930 = vadd.f32 %v1882, %v1910
          %v1931 = vadd.f32 %v1883, %v1912
          %v1932 = vadd.f32 %v1884, %v1914
          %v1933 = vadd.f32 %v1885, %v1916
          %v1934 = vadd.f32 %v1886, %v1918
          %vm1935 = vcmask 7168
          %1936 = vst.msk [vmem:[#allocation4] sm:$0xff] %vm1935, %v1919
          %1937 = vst.msk [vmem:[#allocation4 + $0x8] sm:$0xff] %vm1935, %v1920
          %1938 = vst.msk [vmem:[#allocation4 + $0x10] sm:$0xff] %vm1935, %v1921
          %1939 = vst.msk [vmem:[#allocation4 + $0x18] sm:$0xff] %vm1935, %v1922
          %1940 = vst.msk [vmem:[#allocation4 + $0x20] sm:$0xff] %vm1935, %v1923
          %1941 = vst.msk [vmem:[#allocation4 + $0x28] sm:$0xff] %vm1935, %v1924
          %1942 = vst.msk [vmem:[#allocation4 + $0x30] sm:$0xff] %vm1935, %v1925
          %1943 = vst.msk [vmem:[#allocation4 + $0x38] sm:$0xff] %vm1935, %v1926
          %1944 = vst.msk [vmem:[#allocation4 + $0x40] sm:$0xff] %vm1935, %v1927
          %1945 = vst.msk [vmem:[#allocation4 + $0x48] sm:$0xff] %vm1935, %v1928
          %1946 = vst.msk [vmem:[#allocation4 + $0x50] sm:$0xff] %vm1935, %v1929
          %1947 = vst.msk [vmem:[#allocation4 + $0x58] sm:$0xff] %vm1935, %v1930
          %1948 = vst.msk [vmem:[#allocation4 + $0x60] sm:$0xff] %vm1935, %v1931
          %1949 = vst.msk [vmem:[#allocation4 + $0x68] sm:$0xff] %vm1935, %v1932
          %1950 = vst.msk [vmem:[#allocation4 + $0x70] sm:$0xff] %vm1935, %v1933
          %1951 = vst.msk [vmem:[#allocation4 + $0x78] sm:$0xff] %vm1935, %v1934
          %1952 = vst.msk [vmem:[#allocation3] sm:$0xff] %vm1935, %v1663
          %1953 = vst.msk [vmem:[#allocation3 + $0x8] sm:$0xff] %vm1935, %v1664
          %1954 = vst.msk [vmem:[#allocation3 + $0x10] sm:$0xff] %vm1935, %v1665
          %1955 = vst.msk [vmem:[#allocation3 + $0x18] sm:$0xff] %vm1935, %v1666
          %1956 = vst.msk [vmem:[#allocation3 + $0x20] sm:$0xff] %vm1935, %v1667
          %1957 = vst.msk [vmem:[#allocation3 + $0x28] sm:$0xff] %vm1935, %v1668
          %1958 = vst.msk [vmem:[#allocation3 + $0x30] sm:$0xff] %vm1935, %v1669
          %1959 = vst.msk [vmem:[#allocation3 + $0x38] sm:$0xff] %vm1935, %v1670
          %1960 = vst.msk [vmem:[#allocation3 + $0x40] sm:$0xff] %vm1935, %v1671
          %1961 = vst.msk [vmem:[#allocation3 + $0x48] sm:$0xff] %vm1935, %v1672
          %1962 = vst.msk [vmem:[#allocation3 + $0x50] sm:$0xff] %vm1935, %v1673
          %1963 = vst.msk [vmem:[#allocation3 + $0x58] sm:$0xff] %vm1935, %v1674
          %1964 = vst.msk [vmem:[#allocation3 + $0x60] sm:$0xff] %vm1935, %v1675
          %1965 = vst.msk [vmem:[#allocation3 + $0x68] sm:$0xff] %vm1935, %v1676
          %1966 = vst.msk [vmem:[#allocation3 + $0x70] sm:$0xff] %vm1935, %v1677
          %1967 = vst.msk [vmem:[#allocation3 + $0x78] sm:$0xff] %vm1935, %v1678
          %v1968 = vld [vmem:[#allocation5] sm:$0xff]
          %v1969 = vld [vmem:[#allocation5 + $0x10] sm:$0xff]
          %v1970 = vld [vmem:[#allocation5 + $0x20] sm:$0xff]
          %v1971 = vld [vmem:[#allocation5 + $0x30] sm:$0xff]
          %v1972 = vld [vmem:[#allocation5 + $0x40] sm:$0xff]
          %v1973 = vld [vmem:[#allocation5 + $0x50] sm:$0xff]
          %v1974 = vld [vmem:[#allocation5 + $0x60] sm:$0xff]
          %v1975 = vld [vmem:[#allocation5 + $0x70] sm:$0xff]
          %v1976 = vld [vmem:[#allocation5 + $0x80] sm:$0xff]
          %v1977 = vld [vmem:[#allocation5 + $0x90] sm:$0xff]
          %v1978 = vld [vmem:[#allocation5 + $0xa0] sm:$0xff]
          %v1979 = vld [vmem:[#allocation5 + $0xb0] sm:$0xff]
          %v1980 = vld [vmem:[#allocation5 + $0xc0] sm:$0xff]
          %v1981 = vld [vmem:[#allocation5 + $0xd0] sm:$0xff]
          %v1982 = vld [vmem:[#allocation5 + $0xe0] sm:$0xff]
          %v1983 = vld [vmem:[#allocation5 + $0xf0] sm:$0xff]
          %1985 = vset.pattern.permute.xlu0 0
          %1986 = vperm.xlu0 %1985, %v1696
          %v1987 = vpop.permute.xlu0 %1986
          %1990 = vset.pattern.permute.xlu0 0
          %1991 = vperm.xlu0 %1990, %v1698
          %v1992 = vpop.permute.xlu0 %1991
          %1995 = vset.pattern.permute.xlu0 0
          %1996 = vperm.xlu0 %1995, %v1700
          %v1997 = vpop.permute.xlu0 %1996
          %2000 = vset.pattern.permute.xlu0 0
          %2001 = vperm.xlu0 %2000, %v1702
          %v2002 = vpop.permute.xlu0 %2001
          %2005 = vset.pattern.permute.xlu0 0
          %2006 = vperm.xlu0 %2005, %v1704
          %v2007 = vpop.permute.xlu0 %2006
          %2010 = vset.pattern.permute.xlu0 0
          %2011 = vperm.xlu0 %2010, %v1706
          %v2012 = vpop.permute.xlu0 %2011
          %2015 = vset.pattern.permute.xlu0 0
          %2016 = vperm.xlu0 %2015, %v1708
          %v2017 = vpop.permute.xlu0 %2016
          %2020 = vset.pattern.permute.xlu0 0
          %2021 = vperm.xlu0 %2020, %v1710
          %v2022 = vpop.permute.xlu0 %2021
          %2025 = vset.pattern.permute.xlu0 0
          %2026 = vperm.xlu0 %2025, %v1712
          %v2027 = vpop.permute.xlu0 %2026
          %2030 = vset.pattern.permute.xlu0 0
          %2031 = vperm.xlu0 %2030, %v1714
          %v2032 = vpop.permute.xlu0 %2031
          %2035 = vset.pattern.permute.xlu0 0
          %2036 = vperm.xlu0 %2035, %v1716
          %v2037 = vpop.permute.xlu0 %2036
          %2040 = vset.pattern.permute.xlu0 0
          %2041 = vperm.xlu0 %2040, %v1718
          %v2042 = vpop.permute.xlu0 %2041
          %2045 = vset.pattern.permute.xlu0 0
          %2046 = vperm.xlu0 %2045, %v1720
          %v2047 = vpop.permute.xlu0 %2046
          %2050 = vset.pattern.permute.xlu0 0
          %2051 = vperm.xlu0 %2050, %v1722
          %v2052 = vpop.permute.xlu0 %2051
          %2055 = vset.pattern.permute.xlu0 0
          %2056 = vperm.xlu0 %2055, %v1724
          %v2057 = vpop.permute.xlu0 %2056
          %2060 = vset.pattern.permute.xlu0 0
          %2061 = vperm.xlu0 %2060, %v1726
          %v2062 = vpop.permute.xlu0 %2061
          %v2064 = vmul.f32 %v1987, %v1968
          %v2065 = vmul.f32 %v1992, %v1969
          %v2066 = vmul.f32 %v1997, %v1970
          %v2067 = vmul.f32 %v2002, %v1971
          %v2068 = vmul.f32 %v2007, %v1972
          %v2069 = vmul.f32 %v2012, %v1973
          %v2070 = vmul.f32 %v2017, %v1974
          %v2071 = vmul.f32 %v2022, %v1975
          %v2072 = vmul.f32 %v2027, %v1976
          %v2073 = vmul.f32 %v2032, %v1977
          %v2074 = vmul.f32 %v2037, %v1978
          %v2075 = vmul.f32 %v2042, %v1979
          %v2076 = vmul.f32 %v2047, %v1980
          %v2077 = vmul.f32 %v2052, %v1981
          %v2078 = vmul.f32 %v2057, %v1982
          %v2079 = vmul.f32 %v2062, %v1983
          %2080 = vmatprep.subr.mxu0 0.0
          %2081 = vmatpush1.msra.mxu0 %v1288
          %2082 = vmatprep.subr.mxu0 0.0
          %2083 = vmatpush1.msra.mxu0 %v1294
          %2084 = vmatprep.subr.mxu0 0.0
          %2085 = vmatpush1.msra.mxu0 %v1300
          %2086 = vmatprep.subr.mxu0 0.0
          %2087 = vmatpush1.msra.mxu0 %v1306
          %2088 = vmatprep.subr.mxu0 0.0
          %2089 = vmatpush1.msra.mxu0 %v1312
          %2090 = vmatprep.subr.mxu0 0.0
          %2091 = vmatpush1.msra.mxu0 %v1318
          %2092 = vmatprep.subr.mxu0 0.0
          %2093 = vmatpush1.msra.mxu0 %v1324
          %2094 = vmatprep.subr.mxu0 0.0
          %2095 = vmatpush1.msra.mxu0 %v1330
          %2096 = vmatprep.subr.mxu0 0.0
          %2097 = vmatpush1.msra.mxu0 %v1336
          %2098 = vmatprep.subr.mxu0 0.0
          %2099 = vmatpush1.msra.mxu0 %v1342
          %2100 = vmatprep.subr.mxu0 0.0
          %2101 = vmatpush1.msra.mxu0 %v1348
          %2102 = vmatprep.subr.mxu0 0.0
          %2103 = vmatpush1.msra.mxu0 %v1354
          %2104 = vmatprep.subr.mxu0 0.0
          %2105 = vmatpush1.msra.mxu0 %v1360
          %2106 = vmatprep.subr.mxu0 0.0
          %2107 = vmatpush1.msra.mxu0 %v1366
          %2108 = vmatprep.subr.mxu0 0.0
          %2109 = vmatpush1.msra.mxu0 %v1372
          %2110 = vmatprep.subr.mxu0 0.0
          %2111 = vmatpush1.msra.mxu0 %v1378
          %2112 = vmatprep.subr.mxu0 0.0
          %2113 = vmatpush1.msra.mxu0 0.0
          %2114 = vmatprep.subr.mxu0 0.0
          %2115 = vmatpush1.msra.mxu0 0.0
          %2116 = vmatprep.subr.mxu0 0.0
          %2117 = vmatpush1.msra.mxu0 0.0
          %2118 = vmatprep.subr.mxu0 0.0
          %2119 = vmatpush1.msra.mxu0 0.0
          %2120 = vmatprep.subr.mxu0 0.0
          %2121 = vmatpush1.msra.mxu0 0.0
          %2122 = vmatprep.subr.mxu0 0.0
          %2123 = vmatpush1.msra.mxu0 0.0
          %2124 = vmatprep.subr.mxu0 0.0
          %2125 = vmatpush1.msra.mxu0 0.0
          %2126 = vmatprep.subr.mxu0 0.0
          %2127 = vmatpush1.msra.mxu0 0.0
          %2128 = vmatprep.subr.mxu0 0.0
          %2129 = vmatpush1.msra.mxu0 0.0
          %2130 = vmatprep.subr.mxu0 0.0
          %2131 = vmatpush1.msra.mxu0 0.0
          %2132 = vmatprep.subr.mxu0 0.0
          %2133 = vmatpush1.msra.mxu0 0.0
          %2134 = vmatprep.subr.mxu0 0.0
          %2135 = vmatpush1.msra.mxu0 0.0
          %2136 = vmatprep.subr.mxu0 0.0
          %2137 = vmatpush1.msra.mxu0 0.0
          %2138 = vmatprep.subr.mxu0 0.0
          %2139 = vmatpush1.msra.mxu0 0.0
          %2140 = vmatprep.subr.mxu0 0.0
          %2141 = vmatpush1.msra.mxu0 0.0
          %2142 = vmatprep.subr.mxu0 0.0
          %2143 = vmatpush1.msra.mxu0 0.0
          %2144 = vmatprep.mubr.f32.mxu0 0.0
          %2145 = vmatmul.mubr.f32.gmra.mrb[0].mxu0 %v1824
          %v2146 = vpop.f32.mrb[0].mxu0
          %v2147 = vadd.f32 0.0, %v2146
          %v2148 = vpop.f32.mrb[0].mxu0
          %2149 = vmatprep.mubr.f32.mxu0 0.0
          %2150 = vmatmul.mubr.f32.gmra.mrb[0].mxu0 %v1826
          %v2151 = vpop.f32.mrb[0].mxu0
          %v2152 = vadd.f32 0.0, %v2151
          %v2153 = vpop.f32.mrb[0].mxu0
          %2154 = vmatprep.mubr.f32.mxu0 0.0
          %2155 = vmatmul.mubr.f32.gmra.mrb[0].mxu0 %v1828
          %v2156 = vpop.f32.mrb[0].mxu0
          %v2157 = vadd.f32 0.0, %v2156
          %v2158 = vpop.f32.mrb[0].mxu0
          %2159 = vmatprep.mubr.f32.mxu0 0.0
          %2160 = vmatmul.mubr.f32.gmra.mrb[0].mxu0 %v1830
          %v2161 = vpop.f32.mrb[0].mxu0
          %v2162 = vadd.f32 0.0, %v2161
          %v2163 = vpop.f32.mrb[0].mxu0
          %2164 = vmatprep.mubr.f32.mxu0 0.0
          %2165 = vmatmul.mubr.f32.gmra.mrb[0].mxu0 %v1832
          %v2166 = vpop.f32.mrb[0].mxu0
          %v2167 = vadd.f32 0.0, %v2166
          %v2168 = vpop.f32.mrb[0].mxu0
          %2169 = vmatprep.mubr.f32.mxu0 0.0
          %2170 = vmatmul.mubr.f32.gmra.mrb[0].mxu0 %v1834
          %v2171 = vpop.f32.mrb[0].mxu0
          %v2172 = vadd.f32 0.0, %v2171
          %v2173 = vpop.f32.mrb[0].mxu0
          %2174 = vmatprep.mubr.f32.mxu0 0.0
          %2175 = vmatmul.mubr.f32.gmra.mrb[0].mxu0 %v1836
          %v2176 = vpop.f32.mrb[0].mxu0
          %v2177 = vadd.f32 0.0, %v2176
          %v2178 = vpop.f32.mrb[0].mxu0
          %2179 = vmatprep.mubr.f32.mxu0 0.0
          %2180 = vmatmul.mubr.f32.gmra.mrb[0].mxu0 %v1838
          %v2181 = vpop.f32.mrb[0].mxu0
          %v2182 = vadd.f32 0.0, %v2181
          %v2183 = vpop.f32.mrb[0].mxu0
          %2184 = vmatprep.mubr.f32.mxu0 0.0
          %2185 = vmatmul.mubr.f32.gmra.mrb[0].mxu0 %v1840
          %v2186 = vpop.f32.mrb[0].mxu0
          %v2187 = vadd.f32 0.0, %v2186
          %v2188 = vpop.f32.mrb[0].mxu0
          %2189 = vmatprep.mubr.f32.mxu0 0.0
          %2190 = vmatmul.mubr.f32.gmra.mrb[0].mxu0 %v1842
          %v2191 = vpop.f32.mrb[0].mxu0
          %v2192 = vadd.f32 0.0, %v2191
          %v2193 = vpop.f32.mrb[0].mxu0
          %2194 = vmatprep.mubr.f32.mxu0 0.0
          %2195 = vmatmul.mubr.f32.gmra.mrb[0].mxu0 %v1844
          %v2196 = vpop.f32.mrb[0].mxu0
          %v2197 = vadd.f32 0.0, %v2196
          %v2198 = vpop.f32.mrb[0].mxu0
          %2199 = vmatprep.mubr.f32.mxu0 0.0
          %2200 = vmatmul.mubr.f32.gmra.mrb[0].mxu0 %v1846
          %v2201 = vpop.f32.mrb[0].mxu0
          %v2202 = vadd.f32 0.0, %v2201
          %v2203 = vpop.f32.mrb[0].mxu0
          %2204 = vmatprep.mubr.f32.mxu0 0.0
          %2205 = vmatmul.mubr.f32.gmra.mrb[0].mxu0 %v1848
          %v2206 = vpop.f32.mrb[0].mxu0
          %v2207 = vadd.f32 0.0, %v2206
          %v2208 = vpop.f32.mrb[0].mxu0
          %2209 = vmatprep.mubr.f32.mxu0 0.0
          %2210 = vmatmul.mubr.f32.gmra.mrb[0].mxu0 %v1850
          %v2211 = vpop.f32.mrb[0].mxu0
          %v2212 = vadd.f32 0.0, %v2211
          %v2213 = vpop.f32.mrb[0].mxu0
          %2214 = vmatprep.mubr.f32.mxu0 0.0
          %2215 = vmatmul.mubr.f32.gmra.mrb[0].mxu0 %v1852
          %v2216 = vpop.f32.mrb[0].mxu0
          %v2217 = vadd.f32 0.0, %v2216
          %v2218 = vpop.f32.mrb[0].mxu0
          %2219 = vmatprep.mubr.f32.mxu0 0.0
          %2220 = vmatmul.mubr.f32.gmra.mrb[0].mxu0 %v1854
          %v2221 = vpop.f32.mrb[0].mxu0
          %v2222 = vadd.f32 0.0, %v2221
          %v2223 = vpop.f32.mrb[0].mxu0
          %2224 = vdwg.mxu0
          %v2225 = vadd.f32 %v2064, %v2147
          %v2226 = vadd.f32 %v2065, %v2152
          %v2227 = vadd.f32 %v2066, %v2157
          %v2228 = vadd.f32 %v2067, %v2162
          %v2229 = vadd.f32 %v2068, %v2167
          %v2230 = vadd.f32 %v2069, %v2172
          %v2231 = vadd.f32 %v2070, %v2177
          %v2232 = vadd.f32 %v2071, %v2182
          %v2233 = vadd.f32 %v2072, %v2187
          %v2234 = vadd.f32 %v2073, %v2192
          %v2235 = vadd.f32 %v2074, %v2197
          %v2236 = vadd.f32 %v2075, %v2202
          %v2237 = vadd.f32 %v2076, %v2207
          %v2238 = vadd.f32 %v2077, %v2212
          %v2239 = vadd.f32 %v2078, %v2217
          %v2240 = vadd.f32 %v2079, %v2222
          %2241 = vst [vmem:[#allocation5] sm:$0xff] %v2225
          %2242 = vst [vmem:[#allocation5 + $0x10] sm:$0xff] %v2226
          %2243 = vst [vmem:[#allocation5 + $0x20] sm:$0xff] %v2227
          %2244 = vst [vmem:[#allocation5 + $0x30] sm:$0xff] %v2228
          %2245 = vst [vmem:[#allocation5 + $0x40] sm:$0xff] %v2229
          %2246 = vst [vmem:[#allocation5 + $0x50] sm:$0xff] %v2230
          %2247 = vst [vmem:[#allocation5 + $0x60] sm:$0xff] %v2231
          %2248 = vst [vmem:[#allocation5 + $0x70] sm:$0xff] %v2232
          %2249 = vst [vmem:[#allocation5 + $0x80] sm:$0xff] %v2233
          %2250 = vst [vmem:[#allocation5 + $0x90] sm:$0xff] %v2234
          %2251 = vst [vmem:[#allocation5 + $0xa0] sm:$0xff] %v2235
          %2252 = vst [vmem:[#allocation5 + $0xb0] sm:$0xff] %v2236
          %2253 = vst [vmem:[#allocation5 + $0xc0] sm:$0xff] %v2237
          %2254 = vst [vmem:[#allocation5 + $0xd0] sm:$0xff] %v2238
          %2255 = vst [vmem:[#allocation5 + $0xe0] sm:$0xff] %v2239
          %2256 = vst [vmem:[#allocation5 + $0xf0] sm:$0xff] %v2240
          %v2257 = vld [vmem:[#allocation2 + $0x8] sm:$0xff]
          %v2258 = vld [vmem:[#allocation2 + $0x18] sm:$0xff]
          %v2259 = vld [vmem:[#allocation2 + $0x28] sm:$0xff]
          %v2260 = vld [vmem:[#allocation2 + $0x38] sm:$0xff]
          %v2261 = vld [vmem:[#allocation2 + $0x48] sm:$0xff]
          %v2262 = vld [vmem:[#allocation2 + $0x58] sm:$0xff]
          %v2263 = vld [vmem:[#allocation2 + $0x68] sm:$0xff]
          %v2264 = vld [vmem:[#allocation2 + $0x78] sm:$0xff]
          %v2265 = vld [vmem:[#allocation2 + $0x88] sm:$0xff]
          %v2266 = vld [vmem:[#allocation2 + $0x98] sm:$0xff]
          %v2267 = vld [vmem:[#allocation2 + $0xa8] sm:$0xff]
          %v2268 = vld [vmem:[#allocation2 + $0xb8] sm:$0xff]
          %v2269 = vld [vmem:[#allocation2 + $0xc8] sm:$0xff]
          %v2270 = vld [vmem:[#allocation2 + $0xd8] sm:$0xff]
          %v2271 = vld [vmem:[#allocation2 + $0xe8] sm:$0xff]
          %v2272 = vld [vmem:[#allocation2 + $0xf8] sm:$0xff]
          %2273 = vmatprep.subr.mxu0 0.0
          %2274 = vmatpush1.xpose.msra.mxu0 %v1053
          %2275 = vmatprep.subr.mxu0 0.0
          %2276 = vmatpush1.xpose.msra.mxu0 %v1059
          %2277 = vmatprep.subr.mxu0 0.0
          %2278 = vmatpush1.xpose.msra.mxu0 %v1065
          %2279 = vmatprep.subr.mxu0 0.0
          %2280 = vmatpush1.xpose.msra.mxu0 %v1071
          %2281 = vmatprep.subr.mxu0 0.0
          %2282 = vmatpush1.xpose.msra.mxu0 %v1077
          %2283 = vmatprep.subr.mxu0 0.0
          %2284 = vmatpush1.xpose.msra.mxu0 %v1083
          %2285 = vmatprep.subr.mxu0 0.0
          %2286 = vmatpush1.xpose.msra.mxu0 %v1089
          %2287 = vmatprep.subr.mxu0 0.0
          %2288 = vmatpush1.xpose.msra.mxu0 %v1095
          %2289 = vmatprep.subr.mxu0 0.0
          %2290 = vmatpush1.xpose.msra.mxu0 %v1101
          %2291 = vmatprep.subr.mxu0 0.0
          %2292 = vmatpush1.xpose.msra.mxu0 %v1107
          %2293 = vmatprep.subr.mxu0 0.0
          %2294 = vmatpush1.xpose.msra.mxu0 %v1113
          %2295 = vmatprep.subr.mxu0 0.0
          %2296 = vmatpush1.xpose.msra.mxu0 %v1119
          %2297 = vmatprep.subr.mxu0 0.0
          %2298 = vmatpush1.xpose.msra.mxu0 %v1125
          %2299 = vmatprep.subr.mxu0 0.0
          %2300 = vmatpush1.xpose.msra.mxu0 %v1131
          %2301 = vmatprep.subr.mxu0 0.0
          %2302 = vmatpush1.xpose.msra.mxu0 %v1137
          %2303 = vmatprep.subr.mxu0 0.0
          %2304 = vmatpush1.xpose.msra.mxu0 %v1143
          %2305 = vmatprep.subr.mxu0 0.0
          %2306 = vmatpush1.xpose.msra.mxu0 0.0
          %2307 = vmatprep.subr.mxu0 0.0
          %2308 = vmatpush1.xpose.msra.mxu0 0.0
          %2309 = vmatprep.subr.mxu0 0.0
          %2310 = vmatpush1.xpose.msra.mxu0 0.0
          %2311 = vmatprep.subr.mxu0 0.0
          %2312 = vmatpush1.xpose.msra.mxu0 0.0
          %2313 = vmatprep.subr.mxu0 0.0
          %2314 = vmatpush1.xpose.msra.mxu0 0.0
          %2315 = vmatprep.subr.mxu0 0.0
          %2316 = vmatpush1.xpose.msra.mxu0 0.0
          %2317 = vmatprep.subr.mxu0 0.0
          %2318 = vmatpush1.xpose.msra.mxu0 0.0
          %2319 = vmatprep.subr.mxu0 0.0
          %2320 = vmatpush1.xpose.msra.mxu0 0.0
          %2321 = vmatprep.subr.mxu0 0.0
          %2322 = vmatpush1.xpose.msra.mxu0 0.0
          %2323 = vmatprep.subr.mxu0 0.0
          %2324 = vmatpush1.xpose.msra.mxu0 0.0
          %2325 = vmatprep.subr.mxu0 0.0
          %2326 = vmatpush1.xpose.msra.mxu0 0.0
          %2327 = vmatprep.subr.mxu0 0.0
          %2328 = vmatpush1.xpose.msra.mxu0 0.0
          %2329 = vmatprep.subr.mxu0 0.0
          %2330 = vmatpush1.xpose.msra.mxu0 0.0
          %2331 = vmatprep.subr.mxu0 0.0
          %2332 = vmatpush1.xpose.msra.mxu0 0.0
          %2333 = vmatprep.subr.mxu0 0.0
          %2334 = vmatpush1.xpose.msra.mxu0 0.0
          %2335 = vmatprep.subr.mxu0 0.0
          %2336 = vmatpush1.xpose.msra.mxu0 0.0
          %2337 = vmatprep.mubr.f32.mxu0 0.0
          %2338 = vmatmul.mubr.f32.gmra.mrb[0].mxu0 %v2257
          %v2339 = vpop.f32.mrb[0].mxu0
          %v2340 = vadd.f32 0.0, %v2339
          %v2341 = vpop.f32.mrb[0].mxu0
          %2342 = vmatprep.mubr.f32.mxu0 0.0
          %2343 = vmatmul.mubr.f32.gmra.mrb[0].mxu0 %v2258
          %v2344 = vpop.f32.mrb[0].mxu0
          %v2345 = vadd.f32 0.0, %v2344
          %v2346 = vpop.f32.mrb[0].mxu0
          %2347 = vmatprep.mubr.f32.mxu0 0.0
          %2348 = vmatmul.mubr.f32.gmra.mrb[0].mxu0 %v2259
          %v2349 = vpop.f32.mrb[0].mxu0
          %v2350 = vadd.f32 0.0, %v2349
          %v2351 = vpop.f32.mrb[0].mxu0
          %2352 = vmatprep.mubr.f32.mxu0 0.0
          %2353 = vmatmul.mubr.f32.gmra.mrb[0].mxu0 %v2260
          %v2354 = vpop.f32.mrb[0].mxu0
          %v2355 = vadd.f32 0.0, %v2354
          %v2356 = vpop.f32.mrb[0].mxu0
          %2357 = vmatprep.mubr.f32.mxu0 0.0
          %2358 = vmatmul.mubr.f32.gmra.mrb[0].mxu0 %v2261
          %v2359 = vpop.f32.mrb[0].mxu0
          %v2360 = vadd.f32 0.0, %v2359
          %v2361 = vpop.f32.mrb[0].mxu0
          %2362 = vmatprep.mubr.f32.mxu0 0.0
          %2363 = vmatmul.mubr.f32.gmra.mrb[0].mxu0 %v2262
          %v2364 = vpop.f32.mrb[0].mxu0
          %v2365 = vadd.f32 0.0, %v2364
          %v2366 = vpop.f32.mrb[0].mxu0
          %2367 = vmatprep.mubr.f32.mxu0 0.0
          %2368 = vmatmul.mubr.f32.gmra.mrb[0].mxu0 %v2263
          %v2369 = vpop.f32.mrb[0].mxu0
          %v2370 = vadd.f32 0.0, %v2369
          %v2371 = vpop.f32.mrb[0].mxu0
          %2372 = vmatprep.mubr.f32.mxu0 0.0
          %2373 = vmatmul.mubr.f32.gmra.mrb[0].mxu0 %v2264
          %v2374 = vpop.f32.mrb[0].mxu0
          %v2375 = vadd.f32 0.0, %v2374
          %v2376 = vpop.f32.mrb[0].mxu0
          %2377 = vmatprep.mubr.f32.mxu0 0.0
          %2378 = vmatmul.mubr.f32.gmra.mrb[0].mxu0 %v2265
          %v2379 = vpop.f32.mrb[0].mxu0
          %v2380 = vadd.f32 0.0, %v2379
          %v2381 = vpop.f32.mrb[0].mxu0
          %2382 = vmatprep.mubr.f32.mxu0 0.0
          %2383 = vmatmul.mubr.f32.gmra.mrb[0].mxu0 %v2266
          %v2384 = vpop.f32.mrb[0].mxu0
          %v2385 = vadd.f32 0.0, %v2384
          %v2386 = vpop.f32.mrb[0].mxu0
          %2387 = vmatprep.mubr.f32.mxu0 0.0
          %2388 = vmatmul.mubr.f32.gmra.mrb[0].mxu0 %v2267
          %v2389 = vpop.f32.mrb[0].mxu0
          %v2390 = vadd.f32 0.0, %v2389
          %v2391 = vpop.f32.mrb[0].mxu0
          %2392 = vmatprep.mubr.f32.mxu0 0.0
          %2393 = vmatmul.mubr.f32.gmra.mrb[0].mxu0 %v2268
          %v2394 = vpop.f32.mrb[0].mxu0
          %v2395 = vadd.f32 0.0, %v2394
          %v2396 = vpop.f32.mrb[0].mxu0
          %2397 = vmatprep.mubr.f32.mxu0 0.0
          %2398 = vmatmul.mubr.f32.gmra.mrb[0].mxu0 %v2269
          %v2399 = vpop.f32.mrb[0].mxu0
          %v2400 = vadd.f32 0.0, %v2399
          %v2401 = vpop.f32.mrb[0].mxu0
          %2402 = vmatprep.mubr.f32.mxu0 0.0
          %2403 = vmatmul.mubr.f32.gmra.mrb[0].mxu0 %v2270
          %v2404 = vpop.f32.mrb[0].mxu0
          %v2405 = vadd.f32 0.0, %v2404
          %v2406 = vpop.f32.mrb[0].mxu0
          %2407 = vmatprep.mubr.f32.mxu0 0.0
          %2408 = vmatmul.mubr.f32.gmra.mrb[0].mxu0 %v2271
          %v2409 = vpop.f32.mrb[0].mxu0
          %v2410 = vadd.f32 0.0, %v2409
          %v2411 = vpop.f32.mrb[0].mxu0
          %2412 = vmatprep.mubr.f32.mxu0 0.0
          %2413 = vmatmul.mubr.f32.gmra.mrb[0].mxu0 %v2272
          %v2414 = vpop.f32.mrb[0].mxu0
          %v2415 = vadd.f32 0.0, %v2414
          %v2416 = vpop.f32.mrb[0].mxu0
          %2417 = vdwg.mxu0
          %v2418 = vsel %vm1422, %v2340, -1e+30
          %v2419 = vsel %vm1423, %v2345, -1e+30
          %v2420 = vsel %vm1424, %v2350, -1e+30
          %v2421 = vsel %vm1425, %v2355, -1e+30
          %v2422 = vsel %vm1426, %v2360, -1e+30
          %v2423 = vsel %vm1427, %v2365, -1e+30
          %v2424 = vsel %vm1428, %v2370, -1e+30
          %v2425 = vsel %vm1429, %v2375, -1e+30
          %v2426 = vsel %vm1430, %v2380, -1e+30
          %v2427 = vsel %vm1431, %v2385, -1e+30
          %v2428 = vsel %vm1432, %v2390, -1e+30
          %v2429 = vsel %vm1433, %v2395, -1e+30
          %v2430 = vsel %vm1434, %v2400, -1e+30
          %v2431 = vsel %vm1435, %v2405, -1e+30
          %v2432 = vsel %vm1436, %v2410, -1e+30
          %v2433 = vsel %vm1437, %v2415, -1e+30
          %s2434 = scalar_lea.vmem [#allocation3], 128
          %v2435 = vld [vmem:[%s2434] sm:$0xff]
          %v2436 = vld [vmem:[%s2434 + $0x8] sm:$0xff]
          %v2437 = vld [vmem:[%s2434 + $0x10] sm:$0xff]
          %v2438 = vld [vmem:[%s2434 + $0x18] sm:$0xff]
          %v2439 = vld [vmem:[%s2434 + $0x20] sm:$0xff]
          %v2440 = vld [vmem:[%s2434 + $0x28] sm:$0xff]
          %v2441 = vld [vmem:[%s2434 + $0x30] sm:$0xff]
          %v2442 = vld [vmem:[%s2434 + $0x38] sm:$0xff]
          %v2443 = vld [vmem:[%s2434 + $0x40] sm:$0xff]
          %v2444 = vld [vmem:[%s2434 + $0x48] sm:$0xff]
          %v2445 = vld [vmem:[%s2434 + $0x50] sm:$0xff]
          %v2446 = vld [vmem:[%s2434 + $0x58] sm:$0xff]
          %v2447 = vld [vmem:[%s2434 + $0x60] sm:$0xff]
          %v2448 = vld [vmem:[%s2434 + $0x68] sm:$0xff]
          %v2449 = vld [vmem:[%s2434 + $0x70] sm:$0xff]
          %v2450 = vld [vmem:[%s2434 + $0x78] sm:$0xff]
          %2451 = vmax.xlane.f32.xlu0 %v2418
          %v2452 = vpop.xlane.xlu0 %2451
          %2453 = vmax.xlane.f32.xlu0 %v2419
          %v2454 = vpop.xlane.xlu0 %2453
          %2455 = vmax.xlane.f32.xlu0 %v2420
          %v2456 = vpop.xlane.xlu0 %2455
          %2457 = vmax.xlane.f32.xlu0 %v2421
          %v2458 = vpop.xlane.xlu0 %2457
          %2459 = vmax.xlane.f32.xlu0 %v2422
          %v2460 = vpop.xlane.xlu0 %2459
          %2461 = vmax.xlane.f32.xlu0 %v2423
          %v2462 = vpop.xlane.xlu0 %2461
          %2463 = vmax.xlane.f32.xlu0 %v2424
          %v2464 = vpop.xlane.xlu0 %2463
          %2465 = vmax.xlane.f32.xlu0 %v2425
          %v2466 = vpop.xlane.xlu0 %2465
          %2467 = vmax.xlane.f32.xlu0 %v2426
          %v2468 = vpop.xlane.xlu0 %2467
          %2469 = vmax.xlane.f32.xlu0 %v2427
          %v2470 = vpop.xlane.xlu0 %2469
          %2471 = vmax.xlane.f32.xlu0 %v2428
          %v2472 = vpop.xlane.xlu0 %2471
          %2473 = vmax.xlane.f32.xlu0 %v2429
          %v2474 = vpop.xlane.xlu0 %2473
          %2475 = vmax.xlane.f32.xlu0 %v2430
          %v2476 = vpop.xlane.xlu0 %2475
          %2477 = vmax.xlane.f32.xlu0 %v2431
          %v2478 = vpop.xlane.xlu0 %2477
          %2479 = vmax.xlane.f32.xlu0 %v2432
          %v2480 = vpop.xlane.xlu0 %2479
          %2481 = vmax.xlane.f32.xlu0 %v2433
          %v2482 = vpop.xlane.xlu0 %2481
          %v2483 = vmax.f32 %v2435, %v2452
          %v2484 = vmax.f32 %v2436, %v2454
          %v2485 = vmax.f32 %v2437, %v2456
          %v2486 = vmax.f32 %v2438, %v2458
          %v2487 = vmax.f32 %v2439, %v2460
          %v2488 = vmax.f32 %v2440, %v2462
          %v2489 = vmax.f32 %v2441, %v2464
          %v2490 = vmax.f32 %v2442, %v2466
          %v2491 = vmax.f32 %v2443, %v2468
          %v2492 = vmax.f32 %v2444, %v2470
          %v2493 = vmax.f32 %v2445, %v2472
          %v2494 = vmax.f32 %v2446, %v2474
          %v2495 = vmax.f32 %v2447, %v2476
          %v2496 = vmax.f32 %v2448, %v2478
          %v2497 = vmax.f32 %v2449, %v2480
          %v2498 = vmax.f32 %v2450, %v2482
          %v2499 = vsub.f32 %v2435, %v2483
          %v2500 = vsub.f32 %v2436, %v2484
          %v2501 = vsub.f32 %v2437, %v2485
          %v2502 = vsub.f32 %v2438, %v2486
          %v2503 = vsub.f32 %v2439, %v2487
          %v2504 = vsub.f32 %v2440, %v2488
          %v2505 = vsub.f32 %v2441, %v2489
          %v2506 = vsub.f32 %v2442, %v2490
          %v2507 = vsub.f32 %v2443, %v2491
          %v2508 = vsub.f32 %v2444, %v2492
          %v2509 = vsub.f32 %v2445, %v2493
          %v2510 = vsub.f32 %v2446, %v2494
          %v2511 = vsub.f32 %v2447, %v2495
          %v2512 = vsub.f32 %v2448, %v2496
          %v2513 = vsub.f32 %v2449, %v2497
          %v2514 = vsub.f32 %v2450, %v2498
          %v2515 = vmul.f32 %v2499, 1.442695
          %v2516 = vpow.pop %v2515
          %v2517 = vmul.f32 %v2500, 1.442695
          %v2518 = vpow.pop %v2517
          %v2519 = vmul.f32 %v2501, 1.442695
          %v2520 = vpow.pop %v2519
          %v2521 = vmul.f32 %v2502, 1.442695
          %v2522 = vpow.pop %v2521
          %v2523 = vmul.f32 %v2503, 1.442695
          %v2524 = vpow.pop %v2523
          %v2525 = vmul.f32 %v2504, 1.442695
          %v2526 = vpow.pop %v2525
          %v2527 = vmul.f32 %v2505, 1.442695
          %v2528 = vpow.pop %v2527
          %v2529 = vmul.f32 %v2506, 1.442695
          %v2530 = vpow.pop %v2529
          %v2531 = vmul.f32 %v2507, 1.442695
          %v2532 = vpow.pop %v2531
          %v2533 = vmul.f32 %v2508, 1.442695
          %v2534 = vpow.pop %v2533
          %v2535 = vmul.f32 %v2509, 1.442695
          %v2536 = vpow.pop %v2535
          %v2537 = vmul.f32 %v2510, 1.442695
          %v2538 = vpow.pop %v2537
          %v2539 = vmul.f32 %v2511, 1.442695
          %v2540 = vpow.pop %v2539
          %v2541 = vmul.f32 %v2512, 1.442695
          %v2542 = vpow.pop %v2541
          %v2543 = vmul.f32 %v2513, 1.442695
          %v2544 = vpow.pop %v2543
          %v2545 = vmul.f32 %v2514, 1.442695
          %v2546 = vpow.pop %v2545
          %2548 = vset.pattern.permute.xlu0 0
          %2549 = vperm.xlu0 %2548, %v2483
          %v2550 = vpop.permute.xlu0 %2549
          %2553 = vset.pattern.permute.xlu0 0
          %2554 = vperm.xlu0 %2553, %v2484
          %v2555 = vpop.permute.xlu0 %2554
          %2558 = vset.pattern.permute.xlu0 0
          %2559 = vperm.xlu0 %2558, %v2485
          %v2560 = vpop.permute.xlu0 %2559
          %2563 = vset.pattern.permute.xlu0 0
          %2564 = vperm.xlu0 %2563, %v2486
          %v2565 = vpop.permute.xlu0 %2564
          %2568 = vset.pattern.permute.xlu0 0
          %2569 = vperm.xlu0 %2568, %v2487
          %v2570 = vpop.permute.xlu0 %2569
          %2573 = vset.pattern.permute.xlu0 0
          %2574 = vperm.xlu0 %2573, %v2488
          %v2575 = vpop.permute.xlu0 %2574
          %2578 = vset.pattern.permute.xlu0 0
          %2579 = vperm.xlu0 %2578, %v2489
          %v2580 = vpop.permute.xlu0 %2579
          %2583 = vset.pattern.permute.xlu0 0
          %2584 = vperm.xlu0 %2583, %v2490
          %v2585 = vpop.permute.xlu0 %2584
          %2588 = vset.pattern.permute.xlu0 0
          %2589 = vperm.xlu0 %2588, %v2491
          %v2590 = vpop.permute.xlu0 %2589
          %2593 = vset.pattern.permute.xlu0 0
          %2594 = vperm.xlu0 %2593, %v2492
          %v2595 = vpop.permute.xlu0 %2594
          %2598 = vset.pattern.permute.xlu0 0
          %2599 = vperm.xlu0 %2598, %v2493
          %v2600 = vpop.permute.xlu0 %2599
          %2603 = vset.pattern.permute.xlu0 0
          %2604 = vperm.xlu0 %2603, %v2494
          %v2605 = vpop.permute.xlu0 %2604
          %2608 = vset.pattern.permute.xlu0 0
          %2609 = vperm.xlu0 %2608, %v2495
          %v2610 = vpop.permute.xlu0 %2609
          %2613 = vset.pattern.permute.xlu0 0
          %2614 = vperm.xlu0 %2613, %v2496
          %v2615 = vpop.permute.xlu0 %2614
          %2618 = vset.pattern.permute.xlu0 0
          %2619 = vperm.xlu0 %2618, %v2497
          %v2620 = vpop.permute.xlu0 %2619
          %2623 = vset.pattern.permute.xlu0 0
          %2624 = vperm.xlu0 %2623, %v2498
          %v2625 = vpop.permute.xlu0 %2624
          %v2627 = vsub.f32 %v2418, %v2550
          %v2628 = vsub.f32 %v2419, %v2555
          %v2629 = vsub.f32 %v2420, %v2560
          %v2630 = vsub.f32 %v2421, %v2565
          %v2631 = vsub.f32 %v2422, %v2570
          %v2632 = vsub.f32 %v2423, %v2575
          %v2633 = vsub.f32 %v2424, %v2580
          %v2634 = vsub.f32 %v2425, %v2585
          %v2635 = vsub.f32 %v2426, %v2590
          %v2636 = vsub.f32 %v2427, %v2595
          %v2637 = vsub.f32 %v2428, %v2600
          %v2638 = vsub.f32 %v2429, %v2605
          %v2639 = vsub.f32 %v2430, %v2610
          %v2640 = vsub.f32 %v2431, %v2615
          %v2641 = vsub.f32 %v2432, %v2620
          %v2642 = vsub.f32 %v2433, %v2625
          %v2643 = vmul.f32 %v2627, 1.442695
          %v2644 = vpow.pop %v2643
          %v2645 = vmul.f32 %v2628, 1.442695
          %v2646 = vpow.pop %v2645
          %v2647 = vmul.f32 %v2629, 1.442695
          %v2648 = vpow.pop %v2647
          %v2649 = vmul.f32 %v2630, 1.442695
          %v2650 = vpow.pop %v2649
          %v2651 = vmul.f32 %v2631, 1.442695
          %v2652 = vpow.pop %v2651
          %v2653 = vmul.f32 %v2632, 1.442695
          %v2654 = vpow.pop %v2653
          %v2655 = vmul.f32 %v2633, 1.442695
          %v2656 = vpow.pop %v2655
          %v2657 = vmul.f32 %v2634, 1.442695
          %v2658 = vpow.pop %v2657
          %v2659 = vmul.f32 %v2635, 1.442695
          %v2660 = vpow.pop %v2659
          %v2661 = vmul.f32 %v2636, 1.442695
          %v2662 = vpow.pop %v2661
          %v2663 = vmul.f32 %v2637, 1.442695
          %v2664 = vpow.pop %v2663
          %v2665 = vmul.f32 %v2638, 1.442695
          %v2666 = vpow.pop %v2665
          %v2667 = vmul.f32 %v2639, 1.442695
          %v2668 = vpow.pop %v2667
          %v2669 = vmul.f32 %v2640, 1.442695
          %v2670 = vpow.pop %v2669
          %v2671 = vmul.f32 %v2641, 1.442695
          %v2672 = vpow.pop %v2671
          %v2673 = vmul.f32 %v2642, 1.442695
          %v2674 = vpow.pop %v2673
          %s2675 = scalar_lea.vmem [#allocation4], 128
          %v2676 = vld [vmem:[%s2675] sm:$0xff]
          %v2677 = vld [vmem:[%s2675 + $0x8] sm:$0xff]
          %v2678 = vld [vmem:[%s2675 + $0x10] sm:$0xff]
          %v2679 = vld [vmem:[%s2675 + $0x18] sm:$0xff]
          %v2680 = vld [vmem:[%s2675 + $0x20] sm:$0xff]
          %v2681 = vld [vmem:[%s2675 + $0x28] sm:$0xff]
          %v2682 = vld [vmem:[%s2675 + $0x30] sm:$0xff]
          %v2683 = vld [vmem:[%s2675 + $0x38] sm:$0xff]
          %v2684 = vld [vmem:[%s2675 + $0x40] sm:$0xff]
          %v2685 = vld [vmem:[%s2675 + $0x48] sm:$0xff]
          %v2686 = vld [vmem:[%s2675 + $0x50] sm:$0xff]
          %v2687 = vld [vmem:[%s2675 + $0x58] sm:$0xff]
          %v2688 = vld [vmem:[%s2675 + $0x60] sm:$0xff]
          %v2689 = vld [vmem:[%s2675 + $0x68] sm:$0xff]
          %v2690 = vld [vmem:[%s2675 + $0x70] sm:$0xff]
          %v2691 = vld [vmem:[%s2675 + $0x78] sm:$0xff]
          %v2692 = vmul.f32 %v2516, %v2676
          %v2693 = vmul.f32 %v2518, %v2677
          %v2694 = vmul.f32 %v2520, %v2678
          %v2695 = vmul.f32 %v2522, %v2679
          %v2696 = vmul.f32 %v2524, %v2680
          %v2697 = vmul.f32 %v2526, %v2681
          %v2698 = vmul.f32 %v2528, %v2682
          %v2699 = vmul.f32 %v2530, %v2683
          %v2700 = vmul.f32 %v2532, %v2684
          %v2701 = vmul.f32 %v2534, %v2685
          %v2702 = vmul.f32 %v2536, %v2686
          %v2703 = vmul.f32 %v2538, %v2687
          %v2704 = vmul.f32 %v2540, %v2688
          %v2705 = vmul.f32 %v2542, %v2689
          %v2706 = vmul.f32 %v2544, %v2690
          %v2707 = vmul.f32 %v2546, %v2691
          %2708 = vadd.xlane.f32.xlu0 %v2644
          %v2709 = vpop.xlane.xlu0 %2708
          %2710 = vadd.xlane.f32.xlu0 %v2646
          %v2711 = vpop.xlane.xlu0 %2710
          %2712 = vadd.xlane.f32.xlu0 %v2648
          %v2713 = vpop.xlane.xlu0 %2712
          %2714 = vadd.xlane.f32.xlu0 %v2650
          %v2715 = vpop.xlane.xlu0 %2714
          %2716 = vadd.xlane.f32.xlu0 %v2652
          %v2717 = vpop.xlane.xlu0 %2716
          %2718 = vadd.xlane.f32.xlu0 %v2654
          %v2719 = vpop.xlane.xlu0 %2718
          %2720 = vadd.xlane.f32.xlu0 %v2656
          %v2721 = vpop.xlane.xlu0 %2720
          %2722 = vadd.xlane.f32.xlu0 %v2658
          %v2723 = vpop.xlane.xlu0 %2722
          %2724 = vadd.xlane.f32.xlu0 %v2660
          %v2725 = vpop.xlane.xlu0 %2724
          %2726 = vadd.xlane.f32.xlu0 %v2662
          %v2727 = vpop.xlane.xlu0 %2726
          %2728 = vadd.xlane.f32.xlu0 %v2664
          %v2729 = vpop.xlane.xlu0 %2728
          %2730 = vadd.xlane.f32.xlu0 %v2666
          %v2731 = vpop.xlane.xlu0 %2730
          %2732 = vadd.xlane.f32.xlu0 %v2668
          %v2733 = vpop.xlane.xlu0 %2732
          %2734 = vadd.xlane.f32.xlu0 %v2670
          %v2735 = vpop.xlane.xlu0 %2734
          %2736 = vadd.xlane.f32.xlu0 %v2672
          %v2737 = vpop.xlane.xlu0 %2736
          %2738 = vadd.xlane.f32.xlu0 %v2674
          %v2739 = vpop.xlane.xlu0 %2738
          %v2740 = vadd.f32 %v2692, %v2709
          %v2741 = vadd.f32 %v2693, %v2711
          %v2742 = vadd.f32 %v2694, %v2713
          %v2743 = vadd.f32 %v2695, %v2715
          %v2744 = vadd.f32 %v2696, %v2717
          %v2745 = vadd.f32 %v2697, %v2719
          %v2746 = vadd.f32 %v2698, %v2721
          %v2747 = vadd.f32 %v2699, %v2723
          %v2748 = vadd.f32 %v2700, %v2725
          %v2749 = vadd.f32 %v2701, %v2727
          %v2750 = vadd.f32 %v2702, %v2729
          %v2751 = vadd.f32 %v2703, %v2731
          %v2752 = vadd.f32 %v2704, %v2733
          %v2753 = vadd.f32 %v2705, %v2735
          %v2754 = vadd.f32 %v2706, %v2737
          %v2755 = vadd.f32 %v2707, %v2739
          %2756 = vst.msk [vmem:[%s2675] sm:$0xff] %vm1935, %v2740
          %2757 = vst.msk [vmem:[%s2675 + $0x8] sm:$0xff] %vm1935, %v2741
          %2758 = vst.msk [vmem:[%s2675 + $0x10] sm:$0xff] %vm1935, %v2742
          %2759 = vst.msk [vmem:[%s2675 + $0x18] sm:$0xff] %vm1935, %v2743
          %2760 = vst.msk [vmem:[%s2675 + $0x20] sm:$0xff] %vm1935, %v2744
          %2761 = vst.msk [vmem:[%s2675 + $0x28] sm:$0xff] %vm1935, %v2745
          %2762 = vst.msk [vmem:[%s2675 + $0x30] sm:$0xff] %vm1935, %v2746
          %2763 = vst.msk [vmem:[%s2675 + $0x38] sm:$0xff] %vm1935, %v2747
          %2764 = vst.msk [vmem:[%s2675 + $0x40] sm:$0xff] %vm1935, %v2748
          %2765 = vst.msk [vmem:[%s2675 + $0x48] sm:$0xff] %vm1935, %v2749
          %2766 = vst.msk [vmem:[%s2675 + $0x50] sm:$0xff] %vm1935, %v2750
          %2767 = vst.msk [vmem:[%s2675 + $0x58] sm:$0xff] %vm1935, %v2751
          %2768 = vst.msk [vmem:[%s2675 + $0x60] sm:$0xff] %vm1935, %v2752
          %2769 = vst.msk [vmem:[%s2675 + $0x68] sm:$0xff] %vm1935, %v2753
          %2770 = vst.msk [vmem:[%s2675 + $0x70] sm:$0xff] %vm1935, %v2754
          %2771 = vst.msk [vmem:[%s2675 + $0x78] sm:$0xff] %vm1935, %v2755
          %2772 = vst.msk [vmem:[%s2434] sm:$0xff] %vm1935, %v2483
          %2773 = vst.msk [vmem:[%s2434 + $0x8] sm:$0xff] %vm1935, %v2484
          %2774 = vst.msk [vmem:[%s2434 + $0x10] sm:$0xff] %vm1935, %v2485
          %2775 = vst.msk [vmem:[%s2434 + $0x18] sm:$0xff] %vm1935, %v2486
          %2776 = vst.msk [vmem:[%s2434 + $0x20] sm:$0xff] %vm1935, %v2487
          %2777 = vst.msk [vmem:[%s2434 + $0x28] sm:$0xff] %vm1935, %v2488
          %2778 = vst.msk [vmem:[%s2434 + $0x30] sm:$0xff] %vm1935, %v2489
          %2779 = vst.msk [vmem:[%s2434 + $0x38] sm:$0xff] %vm1935, %v2490
          %2780 = vst.msk [vmem:[%s2434 + $0x40] sm:$0xff] %vm1935, %v2491
          %2781 = vst.msk [vmem:[%s2434 + $0x48] sm:$0xff] %vm1935, %v2492
          %2782 = vst.msk [vmem:[%s2434 + $0x50] sm:$0xff] %vm1935, %v2493
          %2783 = vst.msk [vmem:[%s2434 + $0x58] sm:$0xff] %vm1935, %v2494
          %2784 = vst.msk [vmem:[%s2434 + $0x60] sm:$0xff] %vm1935, %v2495
          %2785 = vst.msk [vmem:[%s2434 + $0x68] sm:$0xff] %vm1935, %v2496
          %2786 = vst.msk [vmem:[%s2434 + $0x70] sm:$0xff] %vm1935, %v2497
          %2787 = vst.msk [vmem:[%s2434 + $0x78] sm:$0xff] %vm1935, %v2498
          %v2788 = vld [vmem:[#allocation5 + $0x8] sm:$0xff]
          %v2789 = vld [vmem:[#allocation5 + $0x18] sm:$0xff]
          %v2790 = vld [vmem:[#allocation5 + $0x28] sm:$0xff]
          %v2791 = vld [vmem:[#allocation5 + $0x38] sm:$0xff]
          %v2792 = vld [vmem:[#allocation5 + $0x48] sm:$0xff]
          %v2793 = vld [vmem:[#allocation5 + $0x58] sm:$0xff]
          %v2794 = vld [vmem:[#allocation5 + $0x68] sm:$0xff]
          %v2795 = vld [vmem:[#allocation5 + $0x78] sm:$0xff]
          %v2796 = vld [vmem:[#allocation5 + $0x88] sm:$0xff]
          %v2797 = vld [vmem:[#allocation5 + $0x98] sm:$0xff]
          %v2798 = vld [vmem:[#allocation5 + $0xa8] sm:$0xff]
          %v2799 = vld [vmem:[#allocation5 + $0xb8] sm:$0xff]
          %v2800 = vld [vmem:[#allocation5 + $0xc8] sm:$0xff]
          %v2801 = vld [vmem:[#allocation5 + $0xd8] sm:$0xff]
          %v2802 = vld [vmem:[#allocation5 + $0xe8] sm:$0xff]
          %v2803 = vld [vmem:[#allocation5 + $0xf8] sm:$0xff]
          %2805 = vset.pattern.permute.xlu0 0
          %2806 = vperm.xlu0 %2805, %v2516
          %v2807 = vpop.permute.xlu0 %2806
          %2810 = vset.pattern.permute.xlu0 0
          %2811 = vperm.xlu0 %2810, %v2518
          %v2812 = vpop.permute.xlu0 %2811
          %2815 = vset.pattern.permute.xlu0 0
          %2816 = vperm.xlu0 %2815, %v2520
          %v2817 = vpop.permute.xlu0 %2816
          %2820 = vset.pattern.permute.xlu0 0
          %2821 = vperm.xlu0 %2820, %v2522
          %v2822 = vpop.permute.xlu0 %2821
          %2825 = vset.pattern.permute.xlu0 0
          %2826 = vperm.xlu0 %2825, %v2524
          %v2827 = vpop.permute.xlu0 %2826
          %2830 = vset.pattern.permute.xlu0 0
          %2831 = vperm.xlu0 %2830, %v2526
          %v2832 = vpop.permute.xlu0 %2831
          %2835 = vset.pattern.permute.xlu0 0
          %2836 = vperm.xlu0 %2835, %v2528
          %v2837 = vpop.permute.xlu0 %2836
          %2840 = vset.pattern.permute.xlu0 0
          %2841 = vperm.xlu0 %2840, %v2530
          %v2842 = vpop.permute.xlu0 %2841
          %2845 = vset.pattern.permute.xlu0 0
          %2846 = vperm.xlu0 %2845, %v2532
          %v2847 = vpop.permute.xlu0 %2846
          %2850 = vset.pattern.permute.xlu0 0
          %2851 = vperm.xlu0 %2850, %v2534
          %v2852 = vpop.permute.xlu0 %2851
          %2855 = vset.pattern.permute.xlu0 0
          %2856 = vperm.xlu0 %2855, %v2536
          %v2857 = vpop.permute.xlu0 %2856
          %2860 = vset.pattern.permute.xlu0 0
          %2861 = vperm.xlu0 %2860, %v2538
          %v2862 = vpop.permute.xlu0 %2861
          %2865 = vset.pattern.permute.xlu0 0
          %2866 = vperm.xlu0 %2865, %v2540
          %v2867 = vpop.permute.xlu0 %2866
          %2870 = vset.pattern.permute.xlu0 0
          %2871 = vperm.xlu0 %2870, %v2542
          %v2872 = vpop.permute.xlu0 %2871
          %2875 = vset.pattern.permute.xlu0 0
          %2876 = vperm.xlu0 %2875, %v2544
          %v2877 = vpop.permute.xlu0 %2876
          %2880 = vset.pattern.permute.xlu0 0
          %2881 = vperm.xlu0 %2880, %v2546
          %v2882 = vpop.permute.xlu0 %2881
          %v2884 = vmul.f32 %v2807, %v2788
          %v2885 = vmul.f32 %v2812, %v2789
          %v2886 = vmul.f32 %v2817, %v2790
          %v2887 = vmul.f32 %v2822, %v2791
          %v2888 = vmul.f32 %v2827, %v2792
          %v2889 = vmul.f32 %v2832, %v2793
          %v2890 = vmul.f32 %v2837, %v2794
          %v2891 = vmul.f32 %v2842, %v2795
          %v2892 = vmul.f32 %v2847, %v2796
          %v2893 = vmul.f32 %v2852, %v2797
          %v2894 = vmul.f32 %v2857, %v2798
          %v2895 = vmul.f32 %v2862, %v2799
          %v2896 = vmul.f32 %v2867, %v2800
          %v2897 = vmul.f32 %v2872, %v2801
          %v2898 = vmul.f32 %v2877, %v2802
          %v2899 = vmul.f32 %v2882, %v2803
          %2900 = vmatprep.subr.mxu0 0.0
          %2901 = vmatpush1.msra.mxu0 %v1290
          %2902 = vmatprep.subr.mxu0 0.0
          %2903 = vmatpush1.msra.mxu0 %v1296
          %2904 = vmatprep.subr.mxu0 0.0
          %2905 = vmatpush1.msra.mxu0 %v1302
          %2906 = vmatprep.subr.mxu0 0.0
          %2907 = vmatpush1.msra.mxu0 %v1308
          %2908 = vmatprep.subr.mxu0 0.0
          %2909 = vmatpush1.msra.mxu0 %v1314
          %2910 = vmatprep.subr.mxu0 0.0
          %2911 = vmatpush1.msra.mxu0 %v1320
          %2912 = vmatprep.subr.mxu0 0.0
          %2913 = vmatpush1.msra.mxu0 %v1326
          %2914 = vmatprep.subr.mxu0 0.0
          %2915 = vmatpush1.msra.mxu0 %v1332
          %2916 = vmatprep.subr.mxu0 0.0
          %2917 = vmatpush1.msra.mxu0 %v1338
          %2918 = vmatprep.subr.mxu0 0.0
          %2919 = vmatpush1.msra.mxu0 %v1344
          %2920 = vmatprep.subr.mxu0 0.0
          %2921 = vmatpush1.msra.mxu0 %v1350
          %2922 = vmatprep.subr.mxu0 0.0
          %2923 = vmatpush1.msra.mxu0 %v1356
          %2924 = vmatprep.subr.mxu0 0.0
          %2925 = vmatpush1.msra.mxu0 %v1362
          %2926 = vmatprep.subr.mxu0 0.0
          %2927 = vmatpush1.msra.mxu0 %v1368
          %2928 = vmatprep.subr.mxu0 0.0
          %2929 = vmatpush1.msra.mxu0 %v1374
          %2930 = vmatprep.subr.mxu0 0.0
          %2931 = vmatpush1.msra.mxu0 %v1380
          %2932 = vmatprep.subr.mxu0 0.0
          %2933 = vmatpush1.msra.mxu0 0.0
          %2934 = vmatprep.subr.mxu0 0.0
          %2935 = vmatpush1.msra.mxu0 0.0
          %2936 = vmatprep.subr.mxu0 0.0
          %2937 = vmatpush1.msra.mxu0 0.0
          %2938 = vmatprep.subr.mxu0 0.0
          %2939 = vmatpush1.msra.mxu0 0.0
          %2940 = vmatprep.subr.mxu0 0.0
          %2941 = vmatpush1.msra.mxu0 0.0
          %2942 = vmatprep.subr.mxu0 0.0
          %2943 = vmatpush1.msra.mxu0 0.0
          %2944 = vmatprep.subr.mxu0 0.0
          %2945 = vmatpush1.msra.mxu0 0.0
          %2946 = vmatprep.subr.mxu0 0.0
          %2947 = vmatpush1.msra.mxu0 0.0
          %2948 = vmatprep.subr.mxu0 0.0
          %2949 = vmatpush1.msra.mxu0 0.0
          %2950 = vmatprep.subr.mxu0 0.0
          %2951 = vmatpush1.msra.mxu0 0.0
          %2952 = vmatprep.subr.mxu0 0.0
          %2953 = vmatpush1.msra.mxu0 0.0
          %2954 = vmatprep.subr.mxu0 0.0
          %2955 = vmatpush1.msra.mxu0 0.0
          %2956 = vmatprep.subr.mxu0 0.0
          %2957 = vmatpush1.msra.mxu0 0.0
          %2958 = vmatprep.subr.mxu0 0.0
          %2959 = vmatpush1.msra.mxu0 0.0
          %2960 = vmatprep.subr.mxu0 0.0
          %2961 = vmatpush1.msra.mxu0 0.0
          %2962 = vmatprep.subr.mxu0 0.0
          %2963 = vmatpush1.msra.mxu0 0.0
          %2964 = vmatprep.mubr.f32.mxu0 0.0
          %2965 = vmatmul.mubr.f32.gmra.mrb[0].mxu0 %v2644
          %v2966 = vpop.f32.mrb[0].mxu0
          %v2967 = vadd.f32 0.0, %v2966
          %v2968 = vpop.f32.mrb[0].mxu0
          %2969 = vmatprep.mubr.f32.mxu0 0.0
          %2970 = vmatmul.mubr.f32.gmra.mrb[0].mxu0 %v2646
          %v2971 = vpop.f32.mrb[0].mxu0
          %v2972 = vadd.f32 0.0, %v2971
          %v2973 = vpop.f32.mrb[0].mxu0
          %2974 = vmatprep.mubr.f32.mxu0 0.0
          %2975 = vmatmul.mubr.f32.gmra.mrb[0].mxu0 %v2648
          %v2976 = vpop.f32.mrb[0].mxu0
          %v2977 = vadd.f32 0.0, %v2976
          %v2978 = vpop.f32.mrb[0].mxu0
          %2979 = vmatprep.mubr.f32.mxu0 0.0
          %2980 = vmatmul.mubr.f32.gmra.mrb[0].mxu0 %v2650
          %v2981 = vpop.f32.mrb[0].mxu0
          %v2982 = vadd.f32 0.0, %v2981
          %v2983 = vpop.f32.mrb[0].mxu0
          %2984 = vmatprep.mubr.f32.mxu0 0.0
          %2985 = vmatmul.mubr.f32.gmra.mrb[0].mxu0 %v2652
          %v2986 = vpop.f32.mrb[0].mxu0
          %v2987 = vadd.f32 0.0, %v2986
          %v2988 = vpop.f32.mrb[0].mxu0
          %2989 = vmatprep.mubr.f32.mxu0 0.0
          %2990 = vmatmul.mubr.f32.gmra.mrb[0].mxu0 %v2654
          %v2991 = vpop.f32.mrb[0].mxu0
          %v2992 = vadd.f32 0.0, %v2991
          %v2993 = vpop.f32.mrb[0].mxu0
          %2994 = vmatprep.mubr.f32.mxu0 0.0
          %2995 = vmatmul.mubr.f32.gmra.mrb[0].mxu0 %v2656
          %v2996 = vpop.f32.mrb[0].mxu0
          %v2997 = vadd.f32 0.0, %v2996
          %v2998 = vpop.f32.mrb[0].mxu0
          %2999 = vmatprep.mubr.f32.mxu0 0.0
          %3000 = vmatmul.mubr.f32.gmra.mrb[0].mxu0 %v2658
          %v3001 = vpop.f32.mrb[0].mxu0
          %v3002 = vadd.f32 0.0, %v3001
          %v3003 = vpop.f32.mrb[0].mxu0
          %3004 = vmatprep.mubr.f32.mxu0 0.0
          %3005 = vmatmul.mubr.f32.gmra.mrb[0].mxu0 %v2660
          %v3006 = vpop.f32.mrb[0].mxu0
          %v3007 = vadd.f32 0.0, %v3006
          %v3008 = vpop.f32.mrb[0].mxu0
          %3009 = vmatprep.mubr.f32.mxu0 0.0
          %3010 = vmatmul.mubr.f32.gmra.mrb[0].mxu0 %v2662
          %v3011 = vpop.f32.mrb[0].mxu0
          %v3012 = vadd.f32 0.0, %v3011
          %v3013 = vpop.f32.mrb[0].mxu0
          %3014 = vmatprep.mubr.f32.mxu0 0.0
          %3015 = vmatmul.mubr.f32.gmra.mrb[0].mxu0 %v2664
          %v3016 = vpop.f32.mrb[0].mxu0
          %v3017 = vadd.f32 0.0, %v3016
          %v3018 = vpop.f32.mrb[0].mxu0
          %3019 = vmatprep.mubr.f32.mxu0 0.0
          %3020 = vmatmul.mubr.f32.gmra.mrb[0].mxu0 %v2666
          %v3021 = vpop.f32.mrb[0].mxu0
          %v3022 = vadd.f32 0.0, %v3021
          %v3023 = vpop.f32.mrb[0].mxu0
          %3024 = vmatprep.mubr.f32.mxu0 0.0
          %3025 = vmatmul.mubr.f32.gmra.mrb[0].mxu0 %v2668
          %v3026 = vpop.f32.mrb[0].mxu0
          %v3027 = vadd.f32 0.0, %v3026
          %v3028 = vpop.f32.mrb[0].mxu0
          %3029 = vmatprep.mubr.f32.mxu0 0.0
          %3030 = vmatmul.mubr.f32.gmra.mrb[0].mxu0 %v2670
          %v3031 = vpop.f32.mrb[0].mxu0
          %v3032 = vadd.f32 0.0, %v3031
          %v3033 = vpop.f32.mrb[0].mxu0
          %3034 = vmatprep.mubr.f32.mxu0 0.0
          %3035 = vmatmul.mubr.f32.gmra.mrb[0].mxu0 %v2672
          %v3036 = vpop.f32.mrb[0].mxu0
          %v3037 = vadd.f32 0.0, %v3036
          %v3038 = vpop.f32.mrb[0].mxu0
          %3039 = vmatprep.mubr.f32.mxu0 0.0
          %3040 = vmatmul.mubr.f32.gmra.mrb[0].mxu0 %v2674
          %v3041 = vpop.f32.mrb[0].mxu0
          %v3042 = vadd.f32 0.0, %v3041
          %v3043 = vpop.f32.mrb[0].mxu0
          %3044 = vdwg.mxu0
          %v3045 = vadd.f32 %v2884, %v2967
          %v3046 = vadd.f32 %v2885, %v2972
          %v3047 = vadd.f32 %v2886, %v2977
          %v3048 = vadd.f32 %v2887, %v2982
          %v3049 = vadd.f32 %v2888, %v2987
          %v3050 = vadd.f32 %v2889, %v2992
          %v3051 = vadd.f32 %v2890, %v2997
          %v3052 = vadd.f32 %v2891, %v3002
          %v3053 = vadd.f32 %v2892, %v3007
          %v3054 = vadd.f32 %v2893, %v3012
          %v3055 = vadd.f32 %v2894, %v3017
          %v3056 = vadd.f32 %v2895, %v3022
          %v3057 = vadd.f32 %v2896, %v3027
          %v3058 = vadd.f32 %v2897, %v3032
          %v3059 = vadd.f32 %v2898, %v3037
          %v3060 = vadd.f32 %v2899, %v3042
          %3061 = vst [vmem:[#allocation5 + $0x8] sm:$0xff] %v3045
          %3062 = vst [vmem:[#allocation5 + $0x18] sm:$0xff] %v3046
          %3063 = vst [vmem:[#allocation5 + $0x28] sm:$0xff] %v3047
          %3064 = vst [vmem:[#allocation5 + $0x38] sm:$0xff] %v3048
          %3065 = vst [vmem:[#allocation5 + $0x48] sm:$0xff] %v3049
          %3066 = vst [vmem:[#allocation5 + $0x58] sm:$0xff] %v3050
          %3067 = vst [vmem:[#allocation5 + $0x68] sm:$0xff] %v3051
          %3068 = vst [vmem:[#allocation5 + $0x78] sm:$0xff] %v3052
          %3069 = vst [vmem:[#allocation5 + $0x88] sm:$0xff] %v3053
          %3070 = vst [vmem:[#allocation5 + $0x98] sm:$0xff] %v3054
          %3071 = vst [vmem:[#allocation5 + $0xa8] sm:$0xff] %v3055
          %3072 = vst [vmem:[#allocation5 + $0xb8] sm:$0xff] %v3056
          %3073 = vst [vmem:[#allocation5 + $0xc8] sm:$0xff] %v3057
          %3074 = vst [vmem:[#allocation5 + $0xd8] sm:$0xff] %v3058
          %3075 = vst [vmem:[#allocation5 + $0xe8] sm:$0xff] %v3059
          %3076 = vst [vmem:[#allocation5 + $0xf8] sm:$0xff] %v3060
        $region68: #{mhsa_forward.1} parent=59 // pred_fallthru
          _
        %p3077 = scmp.eq.s32.totalorder %s31, 1
        // Predicated region
        $region69: #{mhsa_forward.1} parent=59 // pred_check
          %p3078 = pneg %p3077
        $region70: #{mhsa_forward.1} parent=59 // pred_check_branch
          %3080 = sbr.rel (%p3078) target = $region72
        $region71: #{mhsa_forward.1} parent=59 // pred_region
          %v3081 = vld [vmem:[#allocation5] sm:$0xff]
          %v3082 = vld [vmem:[#allocation5 + $0x10] sm:$0xff]
          %v3083 = vld [vmem:[#allocation5 + $0x20] sm:$0xff]
          %v3084 = vld [vmem:[#allocation5 + $0x30] sm:$0xff]
          %v3085 = vld [vmem:[#allocation5 + $0x40] sm:$0xff]
          %v3086 = vld [vmem:[#allocation5 + $0x50] sm:$0xff]
          %v3087 = vld [vmem:[#allocation5 + $0x60] sm:$0xff]
          %v3088 = vld [vmem:[#allocation5 + $0x70] sm:$0xff]
          %v3089 = vld [vmem:[#allocation5 + $0x80] sm:$0xff]
          %v3090 = vld [vmem:[#allocation5 + $0x90] sm:$0xff]
          %v3091 = vld [vmem:[#allocation5 + $0xa0] sm:$0xff]
          %v3092 = vld [vmem:[#allocation5 + $0xb0] sm:$0xff]
          %v3093 = vld [vmem:[#allocation5 + $0xc0] sm:$0xff]
          %v3094 = vld [vmem:[#allocation5 + $0xd0] sm:$0xff]
          %v3095 = vld [vmem:[#allocation5 + $0xe0] sm:$0xff]
          %v3096 = vld [vmem:[#allocation5 + $0xf0] sm:$0xff]
          %v3097 = vld [vmem:[#allocation4] sm:$0xff]
          %v3098 = vld [vmem:[#allocation4 + $0x8] sm:$0xff]
          %v3099 = vld [vmem:[#allocation4 + $0x10] sm:$0xff]
          %v3100 = vld [vmem:[#allocation4 + $0x18] sm:$0xff]
          %v3101 = vld [vmem:[#allocation4 + $0x20] sm:$0xff]
          %v3102 = vld [vmem:[#allocation4 + $0x28] sm:$0xff]
          %v3103 = vld [vmem:[#allocation4 + $0x30] sm:$0xff]
          %v3104 = vld [vmem:[#allocation4 + $0x38] sm:$0xff]
          %v3105 = vld [vmem:[#allocation4 + $0x40] sm:$0xff]
          %v3106 = vld [vmem:[#allocation4 + $0x48] sm:$0xff]
          %v3107 = vld [vmem:[#allocation4 + $0x50] sm:$0xff]
          %v3108 = vld [vmem:[#allocation4 + $0x58] sm:$0xff]
          %v3109 = vld [vmem:[#allocation4 + $0x60] sm:$0xff]
          %v3110 = vld [vmem:[#allocation4 + $0x68] sm:$0xff]
          %v3111 = vld [vmem:[#allocation4 + $0x70] sm:$0xff]
          %v3112 = vld [vmem:[#allocation4 + $0x78] sm:$0xff]
          %v3113 = vrcp.pop %v3097
          %v3114 = vrcp.pop %v3098
          %v3115 = vrcp.pop %v3099
          %v3116 = vrcp.pop %v3100
          %v3117 = vrcp.pop %v3101
          %v3118 = vrcp.pop %v3102
          %v3119 = vrcp.pop %v3103
          %v3120 = vrcp.pop %v3104
          %v3121 = vrcp.pop %v3105
          %v3122 = vrcp.pop %v3106
          %v3123 = vrcp.pop %v3107
          %v3124 = vrcp.pop %v3108
          %v3125 = vrcp.pop %v3109
          %v3126 = vrcp.pop %v3110
          %v3127 = vrcp.pop %v3111
          %v3128 = vrcp.pop %v3112
          %3130 = vset.pattern.permute.xlu0 0
          %3131 = vperm.xlu0 %3130, %v3113
          %v3132 = vpop.permute.xlu0 %3131
          %3135 = vset.pattern.permute.xlu0 0
          %3136 = vperm.xlu0 %3135, %v3114
          %v3137 = vpop.permute.xlu0 %3136
          %3140 = vset.pattern.permute.xlu0 0
          %3141 = vperm.xlu0 %3140, %v3115
          %v3142 = vpop.permute.xlu0 %3141
          %3145 = vset.pattern.permute.xlu0 0
          %3146 = vperm.xlu0 %3145, %v3116
          %v3147 = vpop.permute.xlu0 %3146
          %3150 = vset.pattern.permute.xlu0 0
          %3151 = vperm.xlu0 %3150, %v3117
          %v3152 = vpop.permute.xlu0 %3151
          %3155 = vset.pattern.permute.xlu0 0
          %3156 = vperm.xlu0 %3155, %v3118
          %v3157 = vpop.permute.xlu0 %3156
          %3160 = vset.pattern.permute.xlu0 0
          %3161 = vperm.xlu0 %3160, %v3119
          %v3162 = vpop.permute.xlu0 %3161
          %3165 = vset.pattern.permute.xlu0 0
          %3166 = vperm.xlu0 %3165, %v3120
          %v3167 = vpop.permute.xlu0 %3166
          %3170 = vset.pattern.permute.xlu0 0
          %3171 = vperm.xlu0 %3170, %v3121
          %v3172 = vpop.permute.xlu0 %3171
          %3175 = vset.pattern.permute.xlu0 0
          %3176 = vperm.xlu0 %3175, %v3122
          %v3177 = vpop.permute.xlu0 %3176
          %3180 = vset.pattern.permute.xlu0 0
          %3181 = vperm.xlu0 %3180, %v3123
          %v3182 = vpop.permute.xlu0 %3181
          %3185 = vset.pattern.permute.xlu0 0
          %3186 = vperm.xlu0 %3185, %v3124
          %v3187 = vpop.permute.xlu0 %3186
          %3190 = vset.pattern.permute.xlu0 0
          %3191 = vperm.xlu0 %3190, %v3125
          %v3192 = vpop.permute.xlu0 %3191
          %3195 = vset.pattern.permute.xlu0 0
          %3196 = vperm.xlu0 %3195, %v3126
          %v3197 = vpop.permute.xlu0 %3196
          %3200 = vset.pattern.permute.xlu0 0
          %3201 = vperm.xlu0 %3200, %v3127
          %v3202 = vpop.permute.xlu0 %3201
          %3205 = vset.pattern.permute.xlu0 0
          %3206 = vperm.xlu0 %3205, %v3128
          %v3207 = vpop.permute.xlu0 %3206
          %v3209 = vmul.f32 %v3081, %v3132
          %v3210 = vmul.f32 %v3082, %v3137
          %v3211 = vmul.f32 %v3083, %v3142
          %v3212 = vmul.f32 %v3084, %v3147
          %v3213 = vmul.f32 %v3085, %v3152
          %v3214 = vmul.f32 %v3086, %v3157
          %v3215 = vmul.f32 %v3087, %v3162
          %v3216 = vmul.f32 %v3088, %v3167
          %v3217 = vmul.f32 %v3089, %v3172
          %v3218 = vmul.f32 %v3090, %v3177
          %v3219 = vmul.f32 %v3091, %v3182
          %v3220 = vmul.f32 %v3092, %v3187
          %v3221 = vmul.f32 %v3093, %v3192
          %v3222 = vmul.f32 %v3094, %v3197
          %v3223 = vmul.f32 %v3095, %v3202
          %v3224 = vmul.f32 %v3096, %v3207
          %3225 = vst [vmem:[#allocation5] sm:$0xff] %v3209
          %3226 = vst [vmem:[#allocation5 + $0x10] sm:$0xff] %v3210
          %3227 = vst [vmem:[#allocation5 + $0x20] sm:$0xff] %v3211
          %3228 = vst [vmem:[#allocation5 + $0x30] sm:$0xff] %v3212
          %3229 = vst [vmem:[#allocation5 + $0x40] sm:$0xff] %v3213
          %3230 = vst [vmem:[#allocation5 + $0x50] sm:$0xff] %v3214
          %3231 = vst [vmem:[#allocation5 + $0x60] sm:$0xff] %v3215
          %3232 = vst [vmem:[#allocation5 + $0x70] sm:$0xff] %v3216
          %3233 = vst [vmem:[#allocation5 + $0x80] sm:$0xff] %v3217
          %3234 = vst [vmem:[#allocation5 + $0x90] sm:$0xff] %v3218
          %3235 = vst [vmem:[#allocation5 + $0xa0] sm:$0xff] %v3219
          %3236 = vst [vmem:[#allocation5 + $0xb0] sm:$0xff] %v3220
          %3237 = vst [vmem:[#allocation5 + $0xc0] sm:$0xff] %v3221
          %3238 = vst [vmem:[#allocation5 + $0xd0] sm:$0xff] %v3222
          %3239 = vst [vmem:[#allocation5 + $0xe0] sm:$0xff] %v3223
          %3240 = vst [vmem:[#allocation5 + $0xf0] sm:$0xff] %v3224
          %v3241 = vld [vmem:[#allocation5 + $0x8] sm:$0xff]
          %v3242 = vld [vmem:[#allocation5 + $0x18] sm:$0xff]
          %v3243 = vld [vmem:[#allocation5 + $0x28] sm:$0xff]
          %v3244 = vld [vmem:[#allocation5 + $0x38] sm:$0xff]
          %v3245 = vld [vmem:[#allocation5 + $0x48] sm:$0xff]
          %v3246 = vld [vmem:[#allocation5 + $0x58] sm:$0xff]
          %v3247 = vld [vmem:[#allocation5 + $0x68] sm:$0xff]
          %v3248 = vld [vmem:[#allocation5 + $0x78] sm:$0xff]
          %v3249 = vld [vmem:[#allocation5 + $0x88] sm:$0xff]
          %v3250 = vld [vmem:[#allocation5 + $0x98] sm:$0xff]
          %v3251 = vld [vmem:[#allocation5 + $0xa8] sm:$0xff]
          %v3252 = vld [vmem:[#allocation5 + $0xb8] sm:$0xff]
          %v3253 = vld [vmem:[#allocation5 + $0xc8] sm:$0xff]
          %v3254 = vld [vmem:[#allocation5 + $0xd8] sm:$0xff]
          %v3255 = vld [vmem:[#allocation5 + $0xe8] sm:$0xff]
          %v3256 = vld [vmem:[#allocation5 + $0xf8] sm:$0xff]
          %s3257 = scalar_lea.vmem [#allocation4], 128
          %v3258 = vld [vmem:[%s3257] sm:$0xff]
          %v3259 = vld [vmem:[%s3257 + $0x8] sm:$0xff]
          %v3260 = vld [vmem:[%s3257 + $0x10] sm:$0xff]
          %v3261 = vld [vmem:[%s3257 + $0x18] sm:$0xff]
          %v3262 = vld [vmem:[%s3257 + $0x20] sm:$0xff]
          %v3263 = vld [vmem:[%s3257 + $0x28] sm:$0xff]
          %v3264 = vld [vmem:[%s3257 + $0x30] sm:$0xff]
          %v3265 = vld [vmem:[%s3257 + $0x38] sm:$0xff]
          %v3266 = vld [vmem:[%s3257 + $0x40] sm:$0xff]
          %v3267 = vld [vmem:[%s3257 + $0x48] sm:$0xff]
          %v3268 = vld [vmem:[%s3257 + $0x50] sm:$0xff]
          %v3269 = vld [vmem:[%s3257 + $0x58] sm:$0xff]
          %v3270 = vld [vmem:[%s3257 + $0x60] sm:$0xff]
          %v3271 = vld [vmem:[%s3257 + $0x68] sm:$0xff]
          %v3272 = vld [vmem:[%s3257 + $0x70] sm:$0xff]
          %v3273 = vld [vmem:[%s3257 + $0x78] sm:$0xff]
          %v3274 = vrcp.pop %v3258
          %v3275 = vrcp.pop %v3259
          %v3276 = vrcp.pop %v3260
          %v3277 = vrcp.pop %v3261
          %v3278 = vrcp.pop %v3262
          %v3279 = vrcp.pop %v3263
          %v3280 = vrcp.pop %v3264
          %v3281 = vrcp.pop %v3265
          %v3282 = vrcp.pop %v3266
          %v3283 = vrcp.pop %v3267
          %v3284 = vrcp.pop %v3268
          %v3285 = vrcp.pop %v3269
          %v3286 = vrcp.pop %v3270
          %v3287 = vrcp.pop %v3271
          %v3288 = vrcp.pop %v3272
          %v3289 = vrcp.pop %v3273
          %3291 = vset.pattern.permute.xlu0 0
          %3292 = vperm.xlu0 %3291, %v3274
          %v3293 = vpop.permute.xlu0 %3292
          %3296 = vset.pattern.permute.xlu0 0
          %3297 = vperm.xlu0 %3296, %v3275
          %v3298 = vpop.permute.xlu0 %3297
          %3301 = vset.pattern.permute.xlu0 0
          %3302 = vperm.xlu0 %3301, %v3276
          %v3303 = vpop.permute.xlu0 %3302
          %3306 = vset.pattern.permute.xlu0 0
          %3307 = vperm.xlu0 %3306, %v3277
          %v3308 = vpop.permute.xlu0 %3307
          %3311 = vset.pattern.permute.xlu0 0
          %3312 = vperm.xlu0 %3311, %v3278
          %v3313 = vpop.permute.xlu0 %3312
          %3316 = vset.pattern.permute.xlu0 0
          %3317 = vperm.xlu0 %3316, %v3279
          %v3318 = vpop.permute.xlu0 %3317
          %3321 = vset.pattern.permute.xlu0 0
          %3322 = vperm.xlu0 %3321, %v3280
          %v3323 = vpop.permute.xlu0 %3322
          %3326 = vset.pattern.permute.xlu0 0
          %3327 = vperm.xlu0 %3326, %v3281
          %v3328 = vpop.permute.xlu0 %3327
          %3331 = vset.pattern.permute.xlu0 0
          %3332 = vperm.xlu0 %3331, %v3282
          %v3333 = vpop.permute.xlu0 %3332
          %3336 = vset.pattern.permute.xlu0 0
          %3337 = vperm.xlu0 %3336, %v3283
          %v3338 = vpop.permute.xlu0 %3337
          %3341 = vset.pattern.permute.xlu0 0
          %3342 = vperm.xlu0 %3341, %v3284
          %v3343 = vpop.permute.xlu0 %3342
          %3346 = vset.pattern.permute.xlu0 0
          %3347 = vperm.xlu0 %3346, %v3285
          %v3348 = vpop.permute.xlu0 %3347
          %3351 = vset.pattern.permute.xlu0 0
          %3352 = vperm.xlu0 %3351, %v3286
          %v3353 = vpop.permute.xlu0 %3352
          %3356 = vset.pattern.permute.xlu0 0
          %3357 = vperm.xlu0 %3356, %v3287
          %v3358 = vpop.permute.xlu0 %3357
          %3361 = vset.pattern.permute.xlu0 0
          %3362 = vperm.xlu0 %3361, %v3288
          %v3363 = vpop.permute.xlu0 %3362
          %3366 = vset.pattern.permute.xlu0 0
          %3367 = vperm.xlu0 %3366, %v3289
          %v3368 = vpop.permute.xlu0 %3367
          %v3370 = vmul.f32 %v3241, %v3293
          %v3371 = vmul.f32 %v3242, %v3298
          %v3372 = vmul.f32 %v3243, %v3303
          %v3373 = vmul.f32 %v3244, %v3308
          %v3374 = vmul.f32 %v3245, %v3313
          %v3375 = vmul.f32 %v3246, %v3318
          %v3376 = vmul.f32 %v3247, %v3323
          %v3377 = vmul.f32 %v3248, %v3328
          %v3378 = vmul.f32 %v3249, %v3333
          %v3379 = vmul.f32 %v3250, %v3338
          %v3380 = vmul.f32 %v3251, %v3343
          %v3381 = vmul.f32 %v3252, %v3348
          %v3382 = vmul.f32 %v3253, %v3353
          %v3383 = vmul.f32 %v3254, %v3358
          %v3384 = vmul.f32 %v3255, %v3363
          %v3385 = vmul.f32 %v3256, %v3368
          %3386 = vst [vmem:[#allocation5 + $0x8] sm:$0xff] %v3370
          %3387 = vst [vmem:[#allocation5 + $0x18] sm:$0xff] %v3371
          %3388 = vst [vmem:[#allocation5 + $0x28] sm:$0xff] %v3372
          %3389 = vst [vmem:[#allocation5 + $0x38] sm:$0xff] %v3373
          %3390 = vst [vmem:[#allocation5 + $0x48] sm:$0xff] %v3374
          %3391 = vst [vmem:[#allocation5 + $0x58] sm:$0xff] %v3375
          %3392 = vst [vmem:[#allocation5 + $0x68] sm:$0xff] %v3376
          %3393 = vst [vmem:[#allocation5 + $0x78] sm:$0xff] %v3377
          %3394 = vst [vmem:[#allocation5 + $0x88] sm:$0xff] %v3378
          %3395 = vst [vmem:[#allocation5 + $0x98] sm:$0xff] %v3379
          %3396 = vst [vmem:[#allocation5 + $0xa8] sm:$0xff] %v3380
          %3397 = vst [vmem:[#allocation5 + $0xb8] sm:$0xff] %v3381
          %3398 = vst [vmem:[#allocation5 + $0xc8] sm:$0xff] %v3382
          %3399 = vst [vmem:[#allocation5 + $0xd8] sm:$0xff] %v3383
          %3400 = vst [vmem:[#allocation5 + $0xe8] sm:$0xff] %v3384
          %3401 = vst [vmem:[#allocation5 + $0xf8] sm:$0xff] %v3385
          %v3402 = vld [vmem:[#allocation5] sm:$0xff]
          %v3403 = vld [vmem:[#allocation5 + $0x8] sm:$0xff]
          %v3404 = vld [vmem:[#allocation5 + $0x10] sm:$0xff]
          %v3405 = vld [vmem:[#allocation5 + $0x18] sm:$0xff]
          %v3406 = vld [vmem:[#allocation5 + $0x20] sm:$0xff]
          %v3407 = vld [vmem:[#allocation5 + $0x28] sm:$0xff]
          %v3408 = vld [vmem:[#allocation5 + $0x30] sm:$0xff]
          %v3409 = vld [vmem:[#allocation5 + $0x38] sm:$0xff]
          %v3410 = vld [vmem:[#allocation5 + $0x40] sm:$0xff]
          %v3411 = vld [vmem:[#allocation5 + $0x48] sm:$0xff]
          %v3412 = vld [vmem:[#allocation5 + $0x50] sm:$0xff]
          %v3413 = vld [vmem:[#allocation5 + $0x58] sm:$0xff]
          %v3414 = vld [vmem:[#allocation5 + $0x60] sm:$0xff]
          %v3415 = vld [vmem:[#allocation5 + $0x68] sm:$0xff]
          %v3416 = vld [vmem:[#allocation5 + $0x70] sm:$0xff]
          %v3417 = vld [vmem:[#allocation5 + $0x78] sm:$0xff]
          %v3418 = vld [vmem:[#allocation5 + $0x80] sm:$0xff]
          %v3419 = vld [vmem:[#allocation5 + $0x88] sm:$0xff]
          %v3420 = vld [vmem:[#allocation5 + $0x90] sm:$0xff]
          %v3421 = vld [vmem:[#allocation5 + $0x98] sm:$0xff]
          %v3422 = vld [vmem:[#allocation5 + $0xa0] sm:$0xff]
          %v3423 = vld [vmem:[#allocation5 + $0xa8] sm:$0xff]
          %v3424 = vld [vmem:[#allocation5 + $0xb0] sm:$0xff]
          %v3425 = vld [vmem:[#allocation5 + $0xb8] sm:$0xff]
          %v3426 = vld [vmem:[#allocation5 + $0xc0] sm:$0xff]
          %v3427 = vld [vmem:[#allocation5 + $0xc8] sm:$0xff]
          %v3428 = vld [vmem:[#allocation5 + $0xd0] sm:$0xff]
          %v3429 = vld [vmem:[#allocation5 + $0xd8] sm:$0xff]
          %v3430 = vld [vmem:[#allocation5 + $0xe0] sm:$0xff]
          %v3431 = vld [vmem:[#allocation5 + $0xe8] sm:$0xff]
          %v3432 = vld [vmem:[#allocation5 + $0xf0] sm:$0xff]
          %v3433 = vld [vmem:[#allocation5 + $0xf8] sm:$0xff]
          %v3434 = vld [vmem:[%s8] sm:$0xff]
          %v3435 = vld [vmem:[%s8 + $0x8] sm:$0xff]
          %v3436 = vld [vmem:[%s8 + $0x10] sm:$0xff]
          %v3437 = vld [vmem:[%s8 + $0x18] sm:$0xff]
          %v3438 = vld [vmem:[%s8 + $0x20] sm:$0xff]
          %v3439 = vld [vmem:[%s8 + $0x28] sm:$0xff]
          %v3440 = vld [vmem:[%s8 + $0x30] sm:$0xff]
          %v3441 = vld [vmem:[%s8 + $0x38] sm:$0xff]
          %v3442 = vld [vmem:[%s8 + $0x40] sm:$0xff]
          %v3443 = vld [vmem:[%s8 + $0x48] sm:$0xff]
          %v3444 = vld [vmem:[%s8 + $0x50] sm:$0xff]
          %v3445 = vld [vmem:[%s8 + $0x58] sm:$0xff]
          %v3446 = vld [vmem:[%s8 + $0x60] sm:$0xff]
          %v3447 = vld [vmem:[%s8 + $0x68] sm:$0xff]
          %v3448 = vld [vmem:[%s8 + $0x70] sm:$0xff]
          %v3449 = vld [vmem:[%s8 + $0x78] sm:$0xff]
          %v3450 = vld [vmem:[%s8 + $0x80] sm:$0xff]
          %v3451 = vld [vmem:[%s8 + $0x88] sm:$0xff]
          %v3452 = vld [vmem:[%s8 + $0x90] sm:$0xff]
          %v3453 = vld [vmem:[%s8 + $0x98] sm:$0xff]
          %v3454 = vld [vmem:[%s8 + $0xa0] sm:$0xff]
          %v3455 = vld [vmem:[%s8 + $0xa8] sm:$0xff]
          %v3456 = vld [vmem:[%s8 + $0xb0] sm:$0xff]
          %v3457 = vld [vmem:[%s8 + $0xb8] sm:$0xff]
          %v3458 = vld [vmem:[%s8 + $0xc0] sm:$0xff]
          %v3459 = vld [vmem:[%s8 + $0xc8] sm:$0xff]
          %v3460 = vld [vmem:[%s8 + $0xd0] sm:$0xff]
          %v3461 = vld [vmem:[%s8 + $0xd8] sm:$0xff]
          %v3462 = vld [vmem:[%s8 + $0xe0] sm:$0xff]
          %v3463 = vld [vmem:[%s8 + $0xe8] sm:$0xff]
          %v3464 = vld [vmem:[%s8 + $0xf0] sm:$0xff]
          %v3465 = vld [vmem:[%s8 + $0xf8] sm:$0xff]
          %v3466 = vld [vmem:[%s8 + $0x100] sm:$0xff]
          %v3467 = vld [vmem:[%s8 + $0x108] sm:$0xff]
          %v3468 = vld [vmem:[%s8 + $0x110] sm:$0xff]
          %v3469 = vld [vmem:[%s8 + $0x118] sm:$0xff]
          %v3470 = vld [vmem:[%s8 + $0x120] sm:$0xff]
          %v3471 = vld [vmem:[%s8 + $0x128] sm:$0xff]
          %v3472 = vld [vmem:[%s8 + $0x130] sm:$0xff]
          %v3473 = vld [vmem:[%s8 + $0x138] sm:$0xff]
          %v3474 = vld [vmem:[%s8 + $0x140] sm:$0xff]
          %v3475 = vld [vmem:[%s8 + $0x148] sm:$0xff]
          %v3476 = vld [vmem:[%s8 + $0x150] sm:$0xff]
          %v3477 = vld [vmem:[%s8 + $0x158] sm:$0xff]
          %v3478 = vld [vmem:[%s8 + $0x160] sm:$0xff]
          %v3479 = vld [vmem:[%s8 + $0x168] sm:$0xff]
          %v3480 = vld [vmem:[%s8 + $0x170] sm:$0xff]
          %v3481 = vld [vmem:[%s8 + $0x178] sm:$0xff]
          %v3482 = vld [vmem:[%s8 + $0x180] sm:$0xff]
          %v3483 = vld [vmem:[%s8 + $0x188] sm:$0xff]
          %v3484 = vld [vmem:[%s8 + $0x190] sm:$0xff]
          %v3485 = vld [vmem:[%s8 + $0x198] sm:$0xff]
          %v3486 = vld [vmem:[%s8 + $0x1a0] sm:$0xff]
          %v3487 = vld [vmem:[%s8 + $0x1a8] sm:$0xff]
          %v3488 = vld [vmem:[%s8 + $0x1b0] sm:$0xff]
          %v3489 = vld [vmem:[%s8 + $0x1b8] sm:$0xff]
          %v3490 = vld [vmem:[%s8 + $0x1c0] sm:$0xff]
          %v3491 = vld [vmem:[%s8 + $0x1c8] sm:$0xff]
          %v3492 = vld [vmem:[%s8 + $0x1d0] sm:$0xff]
          %v3493 = vld [vmem:[%s8 + $0x1d8] sm:$0xff]
          %v3494 = vld [vmem:[%s8 + $0x1e0] sm:$0xff]
          %v3495 = vld [vmem:[%s8 + $0x1e8] sm:$0xff]
          %v3496 = vld [vmem:[%s8 + $0x1f0] sm:$0xff]
          %v3497 = vld [vmem:[%s8 + $0x1f8] sm:$0xff]
          %v3498 = vld [vmem:[%s9] sm:$0x3]
          %v3500 = vlaneseq
          %v3501 = vshrl.u32 %v3500, 7
          %v3502 = vsub.s32 0, %v3501
          %v3503 = vrot.slane %v3498, %v3502
          %v3504 = vlaneseq
          %v3505 = vshrl.u32 %v3504, 7
          %v3506 = vsub.s32 1, %v3505
          %v3507 = vrot.slane %v3498, %v3506
          %3510 = vmatprep.subr.mxu0 %v3435
          %3511 = vmatpush1.msra.mxu0 %v3434
          %3512 = vmatprep.subr.mxu0 %v3437
          %3513 = vmatpush1.msra.mxu0 %v3436
          %3514 = vmatprep.subr.mxu0 %v3439
          %3515 = vmatpush1.msra.mxu0 %v3438
          %3516 = vmatprep.subr.mxu0 %v3441
          %3517 = vmatpush1.msra.mxu0 %v3440
          %3518 = vmatprep.subr.mxu0 %v3443
          %3519 = vmatpush1.msra.mxu0 %v3442
          %3520 = vmatprep.subr.mxu0 %v3445
          %3521 = vmatpush1.msra.mxu0 %v3444
          %3522 = vmatprep.subr.mxu0 %v3447
          %3523 = vmatpush1.msra.mxu0 %v3446
          %3524 = vmatprep.subr.mxu0 %v3449
          %3525 = vmatpush1.msra.mxu0 %v3448
          %3526 = vmatprep.subr.mxu0 %v3451
          %3527 = vmatpush1.msra.mxu0 %v3450
          %3528 = vmatprep.subr.mxu0 %v3453
          %3529 = vmatpush1.msra.mxu0 %v3452
          %3530 = vmatprep.subr.mxu0 %v3455
          %3531 = vmatpush1.msra.mxu0 %v3454
          %3532 = vmatprep.subr.mxu0 %v3457
          %3533 = vmatpush1.msra.mxu0 %v3456
          %3534 = vmatprep.subr.mxu0 %v3459
          %3535 = vmatpush1.msra.mxu0 %v3458
          %3536 = vmatprep.subr.mxu0 %v3461
          %3537 = vmatpush1.msra.mxu0 %v3460
          %3538 = vmatprep.subr.mxu0 %v3463
          %3539 = vmatpush1.msra.mxu0 %v3462
          %3540 = vmatprep.subr.mxu0 %v3465
          %3541 = vmatpush1.msra.mxu0 %v3464
          %3542 = vmatprep.subr.mxu0 %v3467
          %3543 = vmatpush1.msra.mxu0 %v3466
          %3544 = vmatprep.subr.mxu0 %v3469
          %3545 = vmatpush1.msra.mxu0 %v3468
          %3546 = vmatprep.subr.mxu0 %v3471
          %3547 = vmatpush1.msra.mxu0 %v3470
          %3548 = vmatprep.subr.mxu0 %v3473
          %3549 = vmatpush1.msra.mxu0 %v3472
          %3550 = vmatprep.subr.mxu0 %v3475
          %3551 = vmatpush1.msra.mxu0 %v3474
          %3552 = vmatprep.subr.mxu0 %v3477
          %3553 = vmatpush1.msra.mxu0 %v3476
          %3554 = vmatprep.subr.mxu0 %v3479
          %3555 = vmatpush1.msra.mxu0 %v3478
          %3556 = vmatprep.subr.mxu0 %v3481
          %3557 = vmatpush1.msra.mxu0 %v3480
          %3558 = vmatprep.subr.mxu0 %v3483
          %3559 = vmatpush1.msra.mxu0 %v3482
          %3560 = vmatprep.subr.mxu0 %v3485
          %3561 = vmatpush1.msra.mxu0 %v3484
          %3562 = vmatprep.subr.mxu0 %v3487
          %3563 = vmatpush1.msra.mxu0 %v3486
          %3564 = vmatprep.subr.mxu0 %v3489
          %3565 = vmatpush1.msra.mxu0 %v3488
          %3566 = vmatprep.subr.mxu0 %v3491
          %3567 = vmatpush1.msra.mxu0 %v3490
          %3568 = vmatprep.subr.mxu0 %v3493
          %3569 = vmatpush1.msra.mxu0 %v3492
          %3570 = vmatprep.subr.mxu0 %v3495
          %3571 = vmatpush1.msra.mxu0 %v3494
          %3572 = vmatprep.subr.mxu0 %v3497
          %3573 = vmatpush1.msra.mxu0 %v3496
          %3574 = vmatprep.mubr.f32.mxu0 %v3403
          %3575 = vmatmul.mubr.f32.gmra.mrb[0].mxu0 %v3402
          %v3576 = vpop.f32.mrb[0].mxu0
          %v3577 = vadd.f32 %v3503, %v3576
          %v3578 = vpop.f32.mrb[0].mxu0
          %v3579 = vadd.f32 %v3507, %v3578
          %3580 = vmatprep.mubr.f32.mxu0 %v3405
          %3581 = vmatmul.mubr.f32.gmra.mrb[0].mxu0 %v3404
          %v3582 = vpop.f32.mrb[0].mxu0
          %v3583 = vadd.f32 %v3503, %v3582
          %v3584 = vpop.f32.mrb[0].mxu0
          %v3585 = vadd.f32 %v3507, %v3584
          %3586 = vmatprep.mubr.f32.mxu0 %v3407
          %3587 = vmatmul.mubr.f32.gmra.mrb[0].mxu0 %v3406
          %v3588 = vpop.f32.mrb[0].mxu0
          %v3589 = vadd.f32 %v3503, %v3588
          %v3590 = vpop.f32.mrb[0].mxu0
          %v3591 = vadd.f32 %v3507, %v3590
          %3592 = vmatprep.mubr.f32.mxu0 %v3409
          %3593 = vmatmul.mubr.f32.gmra.mrb[0].mxu0 %v3408
          %v3594 = vpop.f32.mrb[0].mxu0
          %v3595 = vadd.f32 %v3503, %v3594
          %v3596 = vpop.f32.mrb[0].mxu0
          %v3597 = vadd.f32 %v3507, %v3596
          %3598 = vmatprep.mubr.f32.mxu0 %v3411
          %3599 = vmatmul.mubr.f32.gmra.mrb[0].mxu0 %v3410
          %v3600 = vpop.f32.mrb[0].mxu0
          %v3601 = vadd.f32 %v3503, %v3600
          %v3602 = vpop.f32.mrb[0].mxu0
          %v3603 = vadd.f32 %v3507, %v3602
          %3604 = vmatprep.mubr.f32.mxu0 %v3413
          %3605 = vmatmul.mubr.f32.gmra.mrb[0].mxu0 %v3412
          %v3606 = vpop.f32.mrb[0].mxu0
          %v3607 = vadd.f32 %v3503, %v3606
          %v3608 = vpop.f32.mrb[0].mxu0
          %v3609 = vadd.f32 %v3507, %v3608
          %3610 = vmatprep.mubr.f32.mxu0 %v3415
          %3611 = vmatmul.mubr.f32.gmra.mrb[0].mxu0 %v3414
          %v3612 = vpop.f32.mrb[0].mxu0
          %v3613 = vadd.f32 %v3503, %v3612
          %v3614 = vpop.f32.mrb[0].mxu0
          %v3615 = vadd.f32 %v3507, %v3614
          %3616 = vmatprep.mubr.f32.mxu0 %v3417
          %3617 = vmatmul.mubr.f32.gmra.mrb[0].mxu0 %v3416
          %v3618 = vpop.f32.mrb[0].mxu0
          %v3619 = vadd.f32 %v3503, %v3618
          %v3620 = vpop.f32.mrb[0].mxu0
          %v3621 = vadd.f32 %v3507, %v3620
          %3622 = vmatprep.mubr.f32.mxu0 %v3419
          %3623 = vmatmul.mubr.f32.gmra.mrb[0].mxu0 %v3418
          %v3624 = vpop.f32.mrb[0].mxu0
          %v3625 = vadd.f32 %v3503, %v3624
          %v3626 = vpop.f32.mrb[0].mxu0
          %v3627 = vadd.f32 %v3507, %v3626
          %3628 = vmatprep.mubr.f32.mxu0 %v3421
          %3629 = vmatmul.mubr.f32.gmra.mrb[0].mxu0 %v3420
          %v3630 = vpop.f32.mrb[0].mxu0
          %v3631 = vadd.f32 %v3503, %v3630
          %v3632 = vpop.f32.mrb[0].mxu0
          %v3633 = vadd.f32 %v3507, %v3632
          %3634 = vmatprep.mubr.f32.mxu0 %v3423
          %3635 = vmatmul.mubr.f32.gmra.mrb[0].mxu0 %v3422
          %v3636 = vpop.f32.mrb[0].mxu0
          %v3637 = vadd.f32 %v3503, %v3636
          %v3638 = vpop.f32.mrb[0].mxu0
          %v3639 = vadd.f32 %v3507, %v3638
          %3640 = vmatprep.mubr.f32.mxu0 %v3425
          %3641 = vmatmul.mubr.f32.gmra.mrb[0].mxu0 %v3424
          %v3642 = vpop.f32.mrb[0].mxu0
          %v3643 = vadd.f32 %v3503, %v3642
          %v3644 = vpop.f32.mrb[0].mxu0
          %v3645 = vadd.f32 %v3507, %v3644
          %3646 = vmatprep.mubr.f32.mxu0 %v3427
          %3647 = vmatmul.mubr.f32.gmra.mrb[0].mxu0 %v3426
          %v3648 = vpop.f32.mrb[0].mxu0
          %v3649 = vadd.f32 %v3503, %v3648
          %v3650 = vpop.f32.mrb[0].mxu0
          %v3651 = vadd.f32 %v3507, %v3650
          %3652 = vmatprep.mubr.f32.mxu0 %v3429
          %3653 = vmatmul.mubr.f32.gmra.mrb[0].mxu0 %v3428
          %v3654 = vpop.f32.mrb[0].mxu0
          %v3655 = vadd.f32 %v3503, %v3654
          %v3656 = vpop.f32.mrb[0].mxu0
          %v3657 = vadd.f32 %v3507, %v3656
          %3658 = vmatprep.mubr.f32.mxu0 %v3431
          %3659 = vmatmul.mubr.f32.gmra.mrb[0].mxu0 %v3430
          %v3660 = vpop.f32.mrb[0].mxu0
          %v3661 = vadd.f32 %v3503, %v3660
          %v3662 = vpop.f32.mrb[0].mxu0
          %v3663 = vadd.f32 %v3507, %v3662
          %3664 = vmatprep.mubr.f32.mxu0 %v3433
          %3665 = vmatmul.mubr.f32.gmra.mrb[0].mxu0 %v3432
          %v3666 = vpop.f32.mrb[0].mxu0
          %v3667 = vadd.f32 %v3503, %v3666
          %v3668 = vpop.f32.mrb[0].mxu0
          %v3669 = vadd.f32 %v3507, %v3668
          %3670 = vdwg.mxu0
          %3671 = vst [vmem:[%s414] sm:$0xff] %v3577
          %3672 = vst [vmem:[%s414 + $0x8] sm:$0xff] %v3579
          %3673 = vst [vmem:[%s414 + $0x10] sm:$0xff] %v3583
          %3674 = vst [vmem:[%s414 + $0x18] sm:$0xff] %v3585
          %3675 = vst [vmem:[%s414 + $0x20] sm:$0xff] %v3589
          %3676 = vst [vmem:[%s414 + $0x28] sm:$0xff] %v3591
          %3677 = vst [vmem:[%s414 + $0x30] sm:$0xff] %v3595
          %3678 = vst [vmem:[%s414 + $0x38] sm:$0xff] %v3597
          %3679 = vst [vmem:[%s414 + $0x40] sm:$0xff] %v3601
          %3680 = vst [vmem:[%s414 + $0x48] sm:$0xff] %v3603
          %3681 = vst [vmem:[%s414 + $0x50] sm:$0xff] %v3607
          %3682 = vst [vmem:[%s414 + $0x58] sm:$0xff] %v3609
          %3683 = vst [vmem:[%s414 + $0x60] sm:$0xff] %v3613
          %3684 = vst [vmem:[%s414 + $0x68] sm:$0xff] %v3615
          %3685 = vst [vmem:[%s414 + $0x70] sm:$0xff] %v3619
          %3686 = vst [vmem:[%s414 + $0x78] sm:$0xff] %v3621
          %3687 = vst [vmem:[%s414 + $0x80] sm:$0xff] %v3625
          %3688 = vst [vmem:[%s414 + $0x88] sm:$0xff] %v3627
          %3689 = vst [vmem:[%s414 + $0x90] sm:$0xff] %v3631
          %3690 = vst [vmem:[%s414 + $0x98] sm:$0xff] %v3633
          %3691 = vst [vmem:[%s414 + $0xa0] sm:$0xff] %v3637
          %3692 = vst [vmem:[%s414 + $0xa8] sm:$0xff] %v3639
          %3693 = vst [vmem:[%s414 + $0xb0] sm:$0xff] %v3643
          %3694 = vst [vmem:[%s414 + $0xb8] sm:$0xff] %v3645
          %3695 = vst [vmem:[%s414 + $0xc0] sm:$0xff] %v3649
          %3696 = vst [vmem:[%s414 + $0xc8] sm:$0xff] %v3651
          %3697 = vst [vmem:[%s414 + $0xd0] sm:$0xff] %v3655
          %3698 = vst [vmem:[%s414 + $0xd8] sm:$0xff] %v3657
          %3699 = vst [vmem:[%s414 + $0xe0] sm:$0xff] %v3661
          %3700 = vst [vmem:[%s414 + $0xe8] sm:$0xff] %v3663
          %3701 = vst [vmem:[%s414 + $0xf0] sm:$0xff] %v3667
          %3702 = vst [vmem:[%s414 + $0xf8] sm:$0xff] %v3669
        $region72: #{mhsa_forward.1} parent=59 // pred_fallthru
          _
        %s3703 = sand.u32 %s277, 1
        %s3704 = scalar_lea.sflag [#allocation7], %s3703
        %s3705 = sand.u32 %s277, 1
        %s3706 = smul.addr %s3705, 256
        %s3707 = scalar_lea.vmem [#allocation6], %s3706
        // Predicated region
        $region73: #{mhsa_forward.1} parent=59 // pred_check
          %p3708 = pneg %p287
        $region74: #{mhsa_forward.1} parent=59 // pred_check_branch
          %3710 = sbr.rel (%p3708) target = $region76
        $region75: #{mhsa_forward.1} parent=59 // pred_region
          %s3711 = smul.u32 16, %s30
          %s3713 = ssub.s32 4096, 4096
          %3714 = vsyncadd %s3704, %s3713
          %s3715 = smul.addr %s3711, 2
          %s3716 = smul.addr %s29, 64
          %s3717 = sadd.s32 %s3715, %s3716
          %s3718 = smul.addr %s3717, 128
          %s3719 = scalar_lea.hbm %s10, %s3718
          %s3720 = sshll.u32 %s3707, 4
          %s3721 = int_to_ptr.vmem [resolvable:$true] %s3720
          %3726 = dma.vmem_to_hbm [thread:$0]  %s3721, 4096, %s3719, %s3704, 256, 256, 16
        $region76: #{mhsa_forward.1} parent=59 // pred_fallthru
          _
      $region60: #{mhsa_forward.1} parent=5 // pred_fallthru
        _
      %p3727 = scmp.le.s32.totalorder 2, %s19
      // Predicated region
      $region77: #{mhsa_forward.1} parent=5 // pred_check
        %p3728 = pneg %p3727
      $region78: #{mhsa_forward.1} parent=5 // pred_check_branch
        %3730 = sbr.rel (%p3728) target = $region80
      $region79: #{mhsa_forward.1} parent=5 // pred_region
        %s3731 = ssub.s32 %s19, 2
        // Predicated region
        $region81: #{mhsa_forward.1} parent=79 // pred_check
          %p3732 = pneg %p293
        $region82: #{mhsa_forward.1} parent=79 // pred_check_branch
          %3734 = sbr.rel (%p3732) target = $region84
        $region83: #{mhsa_forward.1} parent=79 // pred_region
          %s3735 = sand.u32 %s278, 1
          %s3736 = scalar_lea.sflag [#allocation7], %s3735
          %s3737 = sand.u32 %s278, 1
          %s3738 = smul.addr %s3737, 256
          %s3739 = scalar_lea.vmem [#allocation6], %s3738
          %3740 = dma.done %s3736, 4096
        $region84: #{mhsa_forward.1} parent=79 // pred_fallthru
          _
      $region80: #{mhsa_forward.1} parent=5 // pred_fallthru
        _
    $region6: #{mhsa_forward.1} parent=1 // loop_footer
      %s23 = sadd.s32 1, %s19
    $region7: #{mhsa_forward.1} parent=1 // loop_footer_branch
      %18 = sbr.rel target = $region3
    $region8: #{mhsa_forward.1} parent=1 // loop_exit
      _
    %3741 = vsyncpa [#allocation7], 1
    %s3742 = scalar_lea.sflag [#allocation7], 1
    %3743 = vsyncpa %s3742, 1

</llo_original>
